<compile_context>
chip_gen: v5e
topology: v5e:2x2
jax: 0.10.0
libtpu: 0.0.40
codegen_flags: <defaults>
</compile_context>

<pallas_src>
import functools
import math

import jax
import jax.numpy as jnp
import numpy as np
from jax import lax
from jax.experimental import pallas as pl
from jax.experimental.pallas import tpu as pltpu


# ----------------------------------------------------------------------------
# Static helpers (identical semantics to the torch module's precomputed buffers)
# ----------------------------------------------------------------------------
def position_encoding(d_model, length):
    if d_model % 2 != 0:
        raise ValueError("Cannot use sin/cos positional encoding with odd dim")
    position = np.arange(length, dtype=np.float32)[:, None]
    div_term = np.exp(np.arange(0, d_model, 2, dtype=np.float32)
                      * -(math.log(10000.0) / d_model))
    pe = np.zeros((length, d_model), dtype=np.float32)
    pe[:, 0::2] = np.sin(position * div_term)
    pe[:, 1::2] = np.cos(position * div_term)
    return jnp.asarray(pe)


def _vox_index(reso):
    X, Y, Z = np.meshgrid(np.arange(reso), np.arange(reso), np.arange(reso), indexing="ij")
    return np.stack([X, Y, Z], axis=-1).reshape(-1, 3)      # token t = x*r^2 + y*r + z


def _vox_coor(reso, padding):
    idx = _vox_index(reso).astype(np.float32)
    c = idx / (reso - 1)
    return (c - 0.5) * 2.0 * (1.0 + padding + 1e-5)


def _vit_coords(vit_reso):
    X, Y = np.meshgrid(np.arange(vit_reso), np.arange(vit_reso))    # 'xy' indexing (torch default here)
    return np.stack([X, Y], axis=-1).reshape(vit_reso * vit_reso, 2).astype(np.float32)


def _project_vox_to_vit(proj_mat, reso, vit_reso, padding):
    """Project voxel centres into ViT patch coordinates -> (B, T, 2) f32."""
    T = reso ** 3
    hp = jax.lax.Precision.HIGHEST
    vox = jnp.asarray(_vox_coor(reso, padding))
    vox_homo = jnp.concatenate([vox, jnp.ones((T, 1), jnp.float32)], axis=-1)   # (T, 4)
    coord = jnp.einsum("tc,bkc->btk", vox_homo, proj_mat.astype(jnp.float32), precision=hp)
    x = coord[..., 0] / coord[..., 2]
    y = coord[..., 1] / coord[..., 2]
    s = (vit_reso - 1.0) / (224.0 - 1.0)
    xy = jnp.stack([x * s, y * s], axis=-1)
    return jnp.clip(xy, 0.0, vit_reso - 1.0)


# ----------------------------------------------------------------------------
# Pallas kernel: fused masked cross-attention for one (batch, T-tile) block
# ----------------------------------------------------------------------------
def sampler_kernel(tri_ref, img_ref, xy_ref, vit_ref,
                   wq_ref, qb_ref, wkv_ref, kvb_ref, wot_ref, bot_ref,
                   out_ref, attn_buf, *, n_heads, head_dim):
    f32 = jnp.float32
    bf16 = jnp.bfloat16
    D = n_heads * head_dim

    # Fused q / [k|v] projections: bf16 MXU operands, f32 accumulation.
    # The bias tensors already contain (linear bias + positional encoding) folded
    # through the MHA in-projection (and the 1/sqrt(head_dim) scale for q).
    q2 = jnp.dot(tri_ref[0], wq_ref[...], preferred_element_type=f32) + qb_ref[...]   # (Tt, D)
    kv = jnp.dot(img_ref[0], wkv_ref[...], preferred_element_type=f32) + kvb_ref[...]  # (S, 2D)

    # Attention-mask bias from projected voxel coordinates (f32 elementwise).
    # vit_ref rows: [patch x | patch y | 1.0 for image tokens, 0.0 for CLS column].
    xy = xy_ref[0]                                    # (Tt, 2)
    dx = xy[:, 0:1] - vit_ref[0:1, :]                 # (Tt, S)
    dy = xy[:, 1:2] - vit_ref[1:2, :]
    dist2 = dx * dx + dy * dy
    bias = jnp.where(dist2 > 0.25, -1e30, 0.0) * vit_ref[2:3, :]

    q2b = q2.astype(bf16)
    kvb = kv.astype(bf16)

    # Per-head attention with static 2-D lane slices (no 3-D relayouts).
    for h in range(n_heads):
        lo = h * head_dim
        qh = q2b[:, lo:lo + head_dim]                 # (Tt, hd)
        kh = kvb[:, lo:lo + head_dim]                 # (S, hd)
        vh = kvb[:, D + lo:D + lo + head_dim]         # (S, hd)
        s = lax.dot_general(qh, kh, (((1,), (1,)), ((), ())),
                            preferred_element_type=f32)          # (Tt, S)
        s = s + bias
        s = s - jnp.max(s, axis=-1, keepdims=True)
        p = jnp.exp(s)
        p = p * pl.reciprocal(jnp.sum(p, axis=-1, keepdims=True), approx=True)
        attn_buf[:, lo:lo + head_dim] = jnp.dot(
            p.astype(bf16), vh, preferred_element_type=f32)

    # Fused (MHA out-proj o out_proj), emitted transposed -> lane-dense stores along T.
    outT = lax.dot_general(wot_ref[...], attn_buf[...].astype(bf16),
                           (((1,), (1,)), ((), ())),
                           preferred_element_type=f32) + bot_ref[...]     # (Cout, Tt)
    out_ref[0] = outT.astype(out_ref.dtype)


# ----------------------------------------------------------------------------
# Wrapper: layout glue, fused weight precompute, pallas_call, tri-plane pooling
# ----------------------------------------------------------------------------
def _choose_t_tile(T, cap=256):
    c = (cap // 128) * 128
    while c >= 128:
        if c <= T and T % c == 0:
            return c
        c -= 128
    return T


def image_expandvox_attn_sampler(triplane_feat, image_feat, proj_mat, params, *,
                                 reso, vit_reso, padding=0.1, n_heads=8, t_tile_cap=256):
    f32 = jnp.float32
    bf16 = jnp.bfloat16
    hp = jax.lax.Precision.HIGHEST

    B, C_tri, H3, W = triplane_feat.shape
    assert H3 == 3 * reso and W == reso
    T = reso ** 3
    S, C_img = image_feat.shape[1], image_feat.shape[2]
    L = vit_reso ** 2
    assert S == L + 1
    D = params["wq"].shape[1]
    hd = D // n_heads
    Cout = params["wp"].shape[1]
    C3 = 3 * C_tri

    # ---- voxel-expanded triplane features: pure broadcast, no gather ---------
    xz_f, xy_f, yz_f = jnp.split(triplane_feat.astype(f32), 3, axis=2)
    xz_p = jnp.transpose(xz_f, (0, 3, 2, 1))          # (B, x, z, C)
    xy_p = jnp.transpose(xy_f, (0, 3, 2, 1))          # (B, x, y, C)
    yz_p = jnp.transpose(yz_f, (0, 3, 2, 1))          # (B, y, z, C)
    shape5 = (B, reso, reso, reso, C_tri)
    tri_expand = jnp.concatenate([
        jnp.broadcast_to(xz_p[:, :, None, :, :], shape5),
        jnp.broadcast_to(xy_p[:, :, :, None, :], shape5),
        jnp.broadcast_to(yz_p[:, None, :, :, :], shape5),
    ], axis=-1).reshape(B, T, C3)

    # ---- projected voxel coords + ViT lookup table for the in-kernel mask ----
    xy = _project_vox_to_vit(proj_mat, reso, vit_reso, padding)          # (B, T, 2) f32
    vitc = _vit_coords(vit_reso)
    vit_table = np.zeros((3, S), np.float32)
    vit_table[0, 1:] = vitc[:, 0]
    vit_table[1, 1:] = vitc[:, 1]
    vit_table[2, 1:] = 1.0               # column 0 (CLS token) stays unmasked
    vit_table = jnp.asarray(vit_table)

    # ---- algebraic fusion of the chained linear layers ------------------------
    scale = 1.0 / math.sqrt(hd)
    dotf = functools.partial(jnp.dot, precision=hp)
    wq_f = dotf(params["wq"], params["wiq"]) * scale                                   # (C3, D)
    q_bias = (dotf(params["bq"] + params["triplane_pe"], params["wiq"])
              + params["biq"]) * scale                                                 # (T, D)
    wkv_f = jnp.concatenate([dotf(params["wk"], params["wik"]),
                             dotf(params["wv"], params["wiv"])], axis=1)               # (C_img, 2D)
    kv_bias = jnp.concatenate(
        [dotf(params["bk"] + params["image_pe"], params["wik"]) + params["bik"],
         dotf(params["bv"] + params["image_pe"], params["wiv"]) + params["biv"]],
        axis=1)                                                                        # (S, 2D)
    wo_f_t = dotf(params["wo"], params["wp"]).T                                        # (Cout, D)
    bo_f_t = (dotf(params["bo"], params["wp"]) + params["bp"]).T                       # (Cout, 1)

    # bf16 MXU operands (bias / PE / mask tensors stay f32)
    tri_b = tri_expand.astype(bf16)
    img_b = image_feat.astype(bf16)
    wq_b, wkv_b, wot_b = wq_f.astype(bf16), wkv_f.astype(bf16), wo_f_t.astype(bf16)

    t_tile = _choose_t_tile(T, t_tile_cap)
    n_t = T // t_tile

    out_ct = pl.pallas_call(
        functools.partial(sampler_kernel, n_heads=n_heads, head_dim=hd),
        out_shape=jax.ShapeDtypeStruct((B, Cout, T), f32),
        grid=(B, n_t),
        in_specs=[
            pl.BlockSpec((1, t_tile, C3), lambda b, t: (b, t, 0)),      # triplane tokens (tiled)
            pl.BlockSpec((1, S, C_img), lambda b, t: (b, 0, 0)),        # image tokens (resident over t)
            pl.BlockSpec((1, t_tile, 2), lambda b, t: (b, t, 0)),       # projected voxel coords
            pl.BlockSpec((3, S), lambda b, t: (0, 0)),                  # vit coord / CLS-flag table
            pl.BlockSpec((C3, D), lambda b, t: (0, 0)),                 # fused q weight (scaled)
            pl.BlockSpec((t_tile, D), lambda b, t: (t, 0)),             # fused q bias + PE (scaled)
            pl.BlockSpec((C_img, 2 * D), lambda b, t: (0, 0)),          # fused [k|v] weight
            pl.BlockSpec((S, 2 * D), lambda b, t: (0, 0)),              # fused [k|v] bias + PE
            pl.BlockSpec((Cout, D), lambda b, t: (0, 0)),               # fused out weight (transposed)
            pl.BlockSpec((Cout, 1), lambda b, t: (0, 0)),               # fused out bias (transposed)
        ],
        out_specs=pl.BlockSpec((1, Cout, t_tile), lambda b, t: (b, 0, t)),
        scratch_shapes=[pltpu.VMEM((t_tile, D), jnp.float32)],
        compiler_params=pltpu.CompilerParams(
            dimension_semantics=("parallel", "parallel")),
    )(tri_b, img_b, xy, vit_table, wq_b, q_bias, wkv_b, kv_bias, wot_b, bo_f_t)

    # ---- volume mean-pooling back to the tri-plane layout (cheap XLA glue) ----
    vol = out_ct.reshape(B, Cout, reso, reso, reso)          # (B, C, x, y, z)
    xz_o = jnp.swapaxes(jnp.mean(vol, axis=3), 2, 3)         # (B, C, z, x)
    xy_o = jnp.swapaxes(jnp.mean(vol, axis=4), 2, 3)         # (B, C, y, x)
    yz_o = jnp.swapaxes(jnp.mean(vol, axis=2), 2, 3)         # (B, C, z, y)
    return jnp.concatenate([xz_o, xy_o, yz_o], axis=2)       # (B, C, 3*reso, reso)


# ----------------------------------------------------------------------------
# Pure-JAX reference (unfused weights, mirrors the torch forward) for checking
# ----------------------------------------------------------------------------
def reference_forward(triplane_feat, image_feat, proj_mat, params, *,
                      reso, vit_reso, padding, n_heads):
    f32 = jnp.float32
    hp = jax.lax.Precision.HIGHEST
    B = triplane_feat.shape[0]
    T = reso ** 3
    S = image_feat.shape[1]
    D = params["wq"].shape[1]
    hd = D // n_heads

    vox_index = _vox_index(reso)
    xi, yi, zi = vox_index[:, 0], vox_index[:, 1], vox_index[:, 2]
    xz_f, xy_f, yz_f = jnp.split(triplane_feat.astype(f32), 3, axis=2)
    xz_vox = jnp.transpose(xz_f[:, :, zi, xi], (0, 2, 1))
    xy_vox = jnp.transpose(xy_f[:, :, yi, xi], (0, 2, 1))
    yz_vox = jnp.transpose(yz_f[:, :, zi, yi], (0, 2, 1))
    tri_expand = jnp.concatenate([xz_vox, xy_vox, yz_vox], axis=-1)     # (B, T, 3C)

    q1 = jnp.einsum("btc,cd->btd", tri_expand, params["wq"], precision=hp) \
        + params["bq"] + params["triplane_pe"][None]
    k1 = jnp.einsum("bsc,cd->bsd", image_feat.astype(f32), params["wk"], precision=hp) \
        + params["bk"] + params["image_pe"][None]
    v1 = jnp.einsum("bsc,cd->bsd", image_feat.astype(f32), params["wv"], precision=hp) \
        + params["bv"] + params["image_pe"][None]

    xy = _project_vox_to_vit(proj_mat, reso, vit_reso, padding)
    vitc = _vit_coords(vit_reso)
    dx = xy[..., 0:1] - vitc[None, None, :, 0]
    dy = xy[..., 1:2] - vitc[None, None, :, 1]
    mask_img = (dx * dx + dy * dy) > 0.25                    # True = disallowed
    mask = jnp.concatenate([jnp.zeros((B, T, 1), bool), mask_img], axis=-1)
    bias = jnp.where(mask, -1e30, 0.0).astype(f32)

    q2 = jnp.einsum("btd,de->bte", q1, params["wiq"], precision=hp) + params["biq"]
    k2 = jnp.einsum("bsd,de->bse", k1, params["wik"], precision=hp) + params["bik"]
    v2 = jnp.einsum("bsd,de->bse", v1, params["wiv"], precision=hp) + params["biv"]

    qh = q2.reshape(B, T, n_heads, hd).transpose(0, 2, 1, 3)
    kh = k2.reshape(B, S, n_heads, hd).transpose(0, 2, 1, 3)
    vh = v2.reshape(B, S, n_heads, hd).transpose(0, 2, 1, 3)
    s = jnp.einsum("bhtd,bhsd->bhts", qh, kh, precision=hp) / math.sqrt(hd)
    s = s + bias[:, None, :, :]
    p = jax.nn.softmax(s, axis=-1)
    attn = jnp.einsum("bhts,bhsd->bhtd", p, vh, precision=hp)
    attn = attn.transpose(0, 2, 1, 3).reshape(B, T, D)

    o = jnp.einsum("btd,de->bte", attn, params["wo"], precision=hp) + params["bo"]
    o = jnp.einsum("btd,dc->btc", o, params["wp"], precision=hp) + params["bp"]   # (B, T, Cout)

    vol = jnp.transpose(o, (0, 2, 1)).reshape(B, -1, reso, reso, reso)
    xz_o = jnp.swapaxes(jnp.mean(vol, axis=3), 2, 3)
    xy_o = jnp.swapaxes(jnp.mean(vol, axis=4), 2, 3)
    yz_o = jnp.swapaxes(jnp.mean(vol, axis=2), 2, 3)
    return jnp.concatenate([xz_o, xy_o, yz_o], axis=2)


# ----------------------------------------------------------------------------
# Main
# ----------------------------------------------------------------------------
if __name__ == "__main__":
    reso = 8                    # voxel/triplane resolution -> T = 512 query tokens
    vit_reso = 4                # L = 16 image patch tokens (+1 CLS)
    padding = 0.1
    B = 2
    triplane_in_channels = 16   # per-plane channels; q in-features = 3*16 = 48
    img_in_channels = 32
    inner_channel = 32
    n_heads = 4
    out_channels = 16

    T = reso ** 3
    L = vit_reso ** 2
    S = L + 1

    key = jax.random.PRNGKey(0)
    keys = jax.random.split(key, 24)

    def w(k, shape, scale=0.1):
        return jax.random.normal(k, shape, dtype=jnp.float32) * scale

    # synthetic parameters stored as (in_features, out_features); a real PyTorch
    # checkpoint stores (out, in) and would need a transpose when loading.
    params = {
        "wq": w(keys[0], (3 * triplane_in_channels, inner_channel)), "bq": w(keys[1], (1, inner_channel)),
        "wk": w(keys[2], (img_in_channels, inner_channel)),          "bk": w(keys[3], (1, inner_channel)),
        "wv": w(keys[4], (img_in_channels, inner_channel)),          "bv": w(keys[5], (1, inner_channel)),
        "wiq": w(keys[6], (inner_channel, inner_channel)),           "biq": w(keys[7], (1, inner_channel)),
        "wik": w(keys[8], (inner_channel, inner_channel)),           "bik": w(keys[9], (1, inner_channel)),
        "wiv": w(keys[10], (inner_channel, inner_channel)),          "biv": w(keys[11], (1, inner_channel)),
        "wo": w(keys[12], (inner_channel, inner_channel)),           "bo": w(keys[13], (1, inner_channel)),
        "wp": w(keys[14], (inner_channel, out_channels)),            "bp": w(keys[15], (1, out_channels)),
        "triplane_pe": position_encoding(inner_channel, T),          # (T, D)
        "image_pe": position_encoding(inner_channel, S),             # (S, D), CLS slot included
    }

    triplane_feat = jax.random.normal(keys[16], (B, triplane_in_channels, 3 * reso, reso), jnp.float32)
    image_feat = jax.random.normal(keys[17], (B, S, img_in_channels), jnp.float32)

    # camera-like projection matrices with a well-conditioned depth row
    pk = jax.random.split(keys[18], 3)
    rows01 = jax.random.normal(pk[0], (B, 2, 4), jnp.float32) * jnp.array([60.0, 60.0, 60.0, 20.0]) \
        + jnp.array([0.0, 0.0, 0.0, 112.0])
    row2 = jax.random.normal(pk[1], (B, 1, 4), jnp.float32) * jnp.array([0.05, 0.05, 0.05, 0.2]) \
        + jnp.array([0.0, 0.0, 0.0, 2.0])
    row3 = jax.random.normal(pk[2], (B, 1, 4), jnp.float32) * 0.1 + jnp.array([0.0, 0.0, 0.0, 1.0])
    proj_mat = jnp.concatenate([rows01, row2, row3], axis=1)          # (B, 4, 4)

    out = image_expandvox_attn_sampler(
        triplane_feat, image_feat, proj_mat, params,
        reso=reso, vit_reso=vit_reso, padding=padding, n_heads=n_heads)
    out = jax.block_until_ready(out)

    ref = jax.block_until_ready(
        reference_forward(triplane_feat, image_feat, proj_mat, params,
                          reso=reso, vit_reso=vit_reso, padding=padding, n_heads=n_heads))

    assert out.shape == (B, out_channels, 3 * reso, reso), out.shape
    np.testing.assert_allclose(np.asarray(out), np.asarray(ref), rtol=2e-2, atol=1e-2)

    print("KERNEL_OK")
</pallas_src>

<mosaic_0001>
module attributes {stable_mosaic.version = 11 : i64} {
  func.func @sampler_kernel(%arg0: i32, %arg1: i32, %arg2: memref<1x256x48xbf16, #tpu.memory_space<vmem>>, %arg3: memref<1x17x32xbf16, #tpu.memory_space<vmem>>, %arg4: memref<1x256x2xf32, #tpu.memory_space<vmem>>, %arg5: memref<3x17xf32, #tpu.memory_space<vmem>>, %arg6: memref<48x32xbf16, #tpu.memory_space<vmem>>, %arg7: memref<256x32xf32, #tpu.memory_space<vmem>>, %arg8: memref<32x64xbf16, #tpu.memory_space<vmem>>, %arg9: memref<17x64xf32, #tpu.memory_space<vmem>>, %arg10: memref<16x32xbf16, #tpu.memory_space<vmem>>, %arg11: memref<16x1xf32, #tpu.memory_space<vmem>>, %arg12: memref<1x16x256xf32, #tpu.memory_space<vmem>>, %arg13: memref<256x32xf32, #tpu.memory_space<vmem>>) attributes {dimension_semantics = [#tpu.dimension_semantics<parallel>, #tpu.dimension_semantics<parallel>], iteration_bounds = array<i64: 2, 2>, scalar_prefetch = 0 : i64, scratch_operands = 1 : i64, tpu.core_type = #tpu.core_type<tc>, window_params = [{transform_indices = @transform_0, window_bounds = array<i64: 1, 256, 48>}, {transform_indices = @transform_1, window_bounds = array<i64: 1, 17, 32>}, {transform_indices = @transform_2, window_bounds = array<i64: 1, 256, 2>}, {pipeline_mode = #tpu.pipeline_mode<synchronous>, transform_indices = @transform_3, window_bounds = array<i64: 3, 17>}, {pipeline_mode = #tpu.pipeline_mode<synchronous>, transform_indices = @transform_4, window_bounds = array<i64: 48, 32>}, {transform_indices = @transform_5, window_bounds = array<i64: 256, 32>}, {pipeline_mode = #tpu.pipeline_mode<synchronous>, transform_indices = @transform_6, window_bounds = array<i64: 32, 64>}, {pipeline_mode = #tpu.pipeline_mode<synchronous>, transform_indices = @transform_7, window_bounds = array<i64: 17, 64>}, {pipeline_mode = #tpu.pipeline_mode<synchronous>, transform_indices = @transform_8, window_bounds = array<i64: 16, 32>}, {pipeline_mode = #tpu.pipeline_mode<synchronous>, transform_indices = @transform_9, window_bounds = array<i64: 16, 1>}, {transform_indices = @transform_10, window_bounds = array<i64: 1, 16, 256>}]} {
    %c0 = arith.constant 0 : index
    %c0_0 = arith.constant 0 : index
    %c0_1 = arith.constant 0 : index
    %0 = vector.load %arg2[%c0, %c0_0, %c0_1] : memref<1x256x48xbf16, #tpu.memory_space<vmem>>, vector<1x256x48xbf16>
    %1 = vector.shape_cast %0 : vector<1x256x48xbf16> to vector<256x48xbf16>
    %c0_2 = arith.constant 0 : index
    %c0_3 = arith.constant 0 : index
    %2 = vector.load %arg6[%c0_2, %c0_3] : memref<48x32xbf16, #tpu.memory_space<vmem>>, vector<48x32xbf16>
    %cst = arith.constant dense<0.000000e+00> : vector<256x32xf32>
    %3 = tpu.matmul %1, %2, %cst {dimension_numbers = #tpu.dot_dimension_numbers<[1], [0], [0], [1], [0, 0, 1, 1], [], []>} : vector<256x48xbf16>, vector<48x32xbf16>, vector<256x32xf32> -> vector<256x32xf32>
    %c0_4 = arith.constant 0 : index
    %c0_5 = arith.constant 0 : index
    %4 = vector.load %arg7[%c0_4, %c0_5] : memref<256x32xf32, #tpu.memory_space<vmem>>, vector<256x32xf32>
    %5 = arith.addf %3, %4 : vector<256x32xf32>
    %c0_6 = arith.constant 0 : index
    %c0_7 = arith.constant 0 : index
    %c0_8 = arith.constant 0 : index
    %6 = vector.load %arg3[%c0_6, %c0_7, %c0_8] : memref<1x17x32xbf16, #tpu.memory_space<vmem>>, vector<1x17x32xbf16>
    %7 = vector.shape_cast %6 : vector<1x17x32xbf16> to vector<17x32xbf16>
    %c0_9 = arith.constant 0 : index
    %c0_10 = arith.constant 0 : index
    %8 = vector.load %arg8[%c0_9, %c0_10] : memref<32x64xbf16, #tpu.memory_space<vmem>>, vector<32x64xbf16>
    %cst_11 = arith.constant dense<0.000000e+00> : vector<17x64xf32>
    %9 = tpu.matmul %7, %8, %cst_11 {dimension_numbers = #tpu.dot_dimension_numbers<[1], [0], [0], [1], [0, 0, 1, 1], [], []>} : vector<17x32xbf16>, vector<32x64xbf16>, vector<17x64xf32> -> vector<17x64xf32>
    %c0_12 = arith.constant 0 : index
    %c0_13 = arith.constant 0 : index
    %10 = vector.load %arg9[%c0_12, %c0_13] : memref<17x64xf32, #tpu.memory_space<vmem>>, vector<17x64xf32>
    %11 = arith.addf %9, %10 : vector<17x64xf32>
    %c0_14 = arith.constant 0 : index
    %c0_15 = arith.constant 0 : index
    %c0_16 = arith.constant 0 : index
    %12 = vector.load %arg4[%c0_14, %c0_15, %c0_16] : memref<1x256x2xf32, #tpu.memory_space<vmem>>, vector<1x256x2xf32>
    %13 = vector.shape_cast %12 : vector<1x256x2xf32> to vector<256x2xf32>
    %14 = vector.extract_strided_slice %13 {offsets = [0, 0], sizes = [256, 1], strides = [1, 1]} : vector<256x2xf32> to vector<256x1xf32>
    %c0_17 = arith.constant 0 : index
    %c0_18 = arith.constant 0 : index
    %15 = vector.load %arg5[%c0_17, %c0_18] : memref<3x17xf32, #tpu.memory_space<vmem>>, vector<1x17xf32>
    %16 = vector.broadcast %14 : vector<256x1xf32> to vector<256x17xf32>
    %17 = vector.broadcast %15 : vector<1x17xf32> to vector<256x17xf32>
    %18 = arith.subf %16, %17 : vector<256x17xf32>
    %19 = vector.extract_strided_slice %13 {offsets = [0, 1], sizes = [256, 1], strides = [1, 1]} : vector<256x2xf32> to vector<256x1xf32>
    %c1 = arith.constant 1 : index
    %c0_19 = arith.constant 0 : index
    %20 = vector.load %arg5[%c1, %c0_19] : memref<3x17xf32, #tpu.memory_space<vmem>>, vector<1x17xf32>
    %21 = vector.broadcast %19 : vector<256x1xf32> to vector<256x17xf32>
    %22 = vector.broadcast %20 : vector<1x17xf32> to vector<256x17xf32>
    %23 = arith.subf %21, %22 : vector<256x17xf32>
    %24 = arith.mulf %18, %18 : vector<256x17xf32>
    %25 = arith.mulf %23, %23 : vector<256x17xf32>
    %26 = arith.addf %24, %25 : vector<256x17xf32>
    %cst_20 = arith.constant 2.500000e-01 : f32
    %27 = vector.broadcast %cst_20 : f32 to vector<256x17xf32>
    %28 = arith.cmpf ogt, %26, %27 : vector<256x17xf32>
    %cst_21 = arith.constant -1.000000e+30 : f32
    %cst_22 = arith.constant 0.000000e+00 : f32
    %29 = vector.broadcast %cst_21 : f32 to vector<256x17xf32>
    %30 = vector.broadcast %cst_22 : f32 to vector<256x17xf32>
    %31 = arith.select %28, %29, %30 : vector<256x17xi1>, vector<256x17xf32>
    %c2 = arith.constant 2 : index
    %c0_23 = arith.constant 0 : index
    %32 = vector.load %arg5[%c2, %c0_23] : memref<3x17xf32, #tpu.memory_space<vmem>>, vector<1x17xf32>
    %33 = vector.broadcast %32 : vector<1x17xf32> to vector<256x17xf32>
    %34 = arith.mulf %31, %33 : vector<256x17xf32>
    %35 = arith.truncf %5 : vector<256x32xf32> to vector<256x32xbf16>
    %36 = arith.truncf %11 : vector<17x64xf32> to vector<17x64xbf16>
    %37 = vector.extract_strided_slice %35 {offsets = [0, 0], sizes = [256, 8], strides = [1, 1]} : vector<256x32xbf16> to vector<256x8xbf16>
    %38 = vector.extract_strided_slice %36 {offsets = [0, 0], sizes = [17, 8], strides = [1, 1]} : vector<17x64xbf16> to vector<17x8xbf16>
    %39 = vector.extract_strided_slice %36 {offsets = [0, 32], sizes = [17, 8], strides = [1, 1]} : vector<17x64xbf16> to vector<17x8xbf16>
    %cst_24 = arith.constant dense<0.000000e+00> : vector<256x17xf32>
    %40 = tpu.matmul %37, %38, %cst_24 {dimension_numbers = #tpu.dot_dimension_numbers<[1], [1], [0], [0], [0, 0, 1, 0], [], []>} : vector<256x8xbf16>, vector<17x8xbf16>, vector<256x17xf32> -> vector<256x17xf32>
    %41 = arith.addf %40, %34 : vector<256x17xf32>
    %cst_25 = arith.constant dense<0xFF800000> : vector<256xf32>
    %42 = vector.multi_reduction <maximumf>, %41, %cst_25 [1] : vector<256x17xf32> to vector<256xf32>
    %43 = vector.shape_cast %42 : vector<256xf32> to vector<256x1xf32>
    %44 = vector.broadcast %43 : vector<256x1xf32> to vector<256x17xf32>
    %45 = arith.subf %41, %44 : vector<256x17xf32>
    %46 = math.exp %45 : vector<256x17xf32>
    %cst_26 = arith.constant dense<0.000000e+00> : vector<256xf32>
    %47 = vector.multi_reduction <add>, %46, %cst_26 [1] : vector<256x17xf32> to vector<256xf32>
    %48 = vector.shape_cast %47 : vector<256xf32> to vector<256x1xf32>
    %49 = tpu.reciprocal %48 {approx = true} : vector<256x1xf32> -> vector<256x1xf32>
    %50 = vector.broadcast %49 : vector<256x1xf32> to vector<256x17xf32>
    %51 = arith.mulf %46, %50 : vector<256x17xf32>
    %52 = arith.truncf %51 : vector<256x17xf32> to vector<256x17xbf16>
    %cst_27 = arith.constant dense<0.000000e+00> : vector<256x8xf32>
    %53 = tpu.matmul %52, %39, %cst_27 {dimension_numbers = #tpu.dot_dimension_numbers<[1], [0], [0], [1], [0, 0, 1, 1], [], []>} : vector<256x17xbf16>, vector<17x8xbf16>, vector<256x8xf32> -> vector<256x8xf32>
    %c0_28 = arith.constant 0 : index
    %c0_29 = arith.constant 0 : index
    %54 = vector.load %arg13[%c0_28, %c0_29] : memref<256x32xf32, #tpu.memory_space<vmem>>, vector<256x8xf32>
    tpu.vector_store %arg13[%c0_28, %c0_29], %53 {strides = array<i32>} : memref<256x32xf32, #tpu.memory_space<vmem>>, vector<256x8xf32>,
    %55 = vector.extract_strided_slice %35 {offsets = [0, 8], sizes = [256, 8], strides = [1, 1]} : vector<256x32xbf16> to vector<256x8xbf16>
    %56 = vector.extract_strided_slice %36 {offsets = [0, 8], sizes = [17, 8], strides = [1, 1]} : vector<17x64xbf16> to vector<17x8xbf16>
    %57 = vector.extract_strided_slice %36 {offsets = [0, 40], sizes = [17, 8], strides = [1, 1]} : vector<17x64xbf16> to vector<17x8xbf16>
    %cst_30 = arith.constant dense<0.000000e+00> : vector<256x17xf32>
    %58 = tpu.matmul %55, %56, %cst_30 {dimension_numbers = #tpu.dot_dimension_numbers<[1], [1], [0], [0], [0, 0, 1, 0], [], []>} : vector<256x8xbf16>, vector<17x8xbf16>, vector<256x17xf32> -> vector<256x17xf32>
    %59 = arith.addf %58, %34 : vector<256x17xf32>
    %cst_31 = arith.constant dense<0xFF800000> : vector<256xf32>
    %60 = vector.multi_reduction <maximumf>, %59, %cst_31 [1] : vector<256x17xf32> to vector<256xf32>
    %61 = vector.shape_cast %60 : vector<256xf32> to vector<256x1xf32>
    %62 = vector.broadcast %61 : vector<256x1xf32> to vector<256x17xf32>
    %63 = arith.subf %59, %62 : vector<256x17xf32>
    %64 = math.exp %63 : vector<256x17xf32>
    %cst_32 = arith.constant dense<0.000000e+00> : vector<256xf32>
    %65 = vector.multi_reduction <add>, %64, %cst_32 [1] : vector<256x17xf32> to vector<256xf32>
    %66 = vector.shape_cast %65 : vector<256xf32> to vector<256x1xf32>
    %67 = tpu.reciprocal %66 {approx = true} : vector<256x1xf32> -> vector<256x1xf32>
    %68 = vector.broadcast %67 : vector<256x1xf32> to vector<256x17xf32>
    %69 = arith.mulf %64, %68 : vector<256x17xf32>
    %70 = arith.truncf %69 : vector<256x17xf32> to vector<256x17xbf16>
    %cst_33 = arith.constant dense<0.000000e+00> : vector<256x8xf32>
    %71 = tpu.matmul %70, %57, %cst_33 {dimension_numbers = #tpu.dot_dimension_numbers<[1], [0], [0], [1], [0, 0, 1, 1], [], []>} : vector<256x17xbf16>, vector<17x8xbf16>, vector<256x8xf32> -> vector<256x8xf32>
    %c0_34 = arith.constant 0 : index
    %c8 = arith.constant 8 : index
    %72 = vector.load %arg13[%c0_34, %c8] : memref<256x32xf32, #tpu.memory_space<vmem>>, vector<256x8xf32>
    tpu.vector_store %arg13[%c0_34, %c8], %71 {strides = array<i32>} : memref<256x32xf32, #tpu.memory_space<vmem>>, vector<256x8xf32>,
    %73 = vector.extract_strided_slice %35 {offsets = [0, 16], sizes = [256, 8], strides = [1, 1]} : vector<256x32xbf16> to vector<256x8xbf16>
    %74 = vector.extract_strided_slice %36 {offsets = [0, 16], sizes = [17, 8], strides = [1, 1]} : vector<17x64xbf16> to vector<17x8xbf16>
    %75 = vector.extract_strided_slice %36 {offsets = [0, 48], sizes = [17, 8], strides = [1, 1]} : vector<17x64xbf16> to vector<17x8xbf16>
    %cst_35 = arith.constant dense<0.000000e+00> : vector<256x17xf32>
    %76 = tpu.matmul %73, %74, %cst_35 {dimension_numbers = #tpu.dot_dimension_numbers<[1], [1], [0], [0], [0, 0, 1, 0], [], []>} : vector<256x8xbf16>, vector<17x8xbf16>, vector<256x17xf32> -> vector<256x17xf32>
    %77 = arith.addf %76, %34 : vector<256x17xf32>
    %cst_36 = arith.constant dense<0xFF800000> : vector<256xf32>
    %78 = vector.multi_reduction <maximumf>, %77, %cst_36 [1] : vector<256x17xf32> to vector<256xf32>
    %79 = vector.shape_cast %78 : vector<256xf32> to vector<256x1xf32>
    %80 = vector.broadcast %79 : vector<256x1xf32> to vector<256x17xf32>
    %81 = arith.subf %77, %80 : vector<256x17xf32>
    %82 = math.exp %81 : vector<256x17xf32>
    %cst_37 = arith.constant dense<0.000000e+00> : vector<256xf32>
    %83 = vector.multi_reduction <add>, %82, %cst_37 [1] : vector<256x17xf32> to vector<256xf32>
    %84 = vector.shape_cast %83 : vector<256xf32> to vector<256x1xf32>
    %85 = tpu.reciprocal %84 {approx = true} : vector<256x1xf32> -> vector<256x1xf32>
    %86 = vector.broadcast %85 : vector<256x1xf32> to vector<256x17xf32>
    %87 = arith.mulf %82, %86 : vector<256x17xf32>
    %88 = arith.truncf %87 : vector<256x17xf32> to vector<256x17xbf16>
    %cst_38 = arith.constant dense<0.000000e+00> : vector<256x8xf32>
    %89 = tpu.matmul %88, %75, %cst_38 {dimension_numbers = #tpu.dot_dimension_numbers<[1], [0], [0], [1], [0, 0, 1, 1], [], []>} : vector<256x17xbf16>, vector<17x8xbf16>, vector<256x8xf32> -> vector<256x8xf32>
    %c0_39 = arith.constant 0 : index
    %c16 = arith.constant 16 : index
    %90 = vector.load %arg13[%c0_39, %c16] : memref<256x32xf32, #tpu.memory_space<vmem>>, vector<256x8xf32>
    tpu.vector_store %arg13[%c0_39, %c16], %89 {strides = array<i32>} : memref<256x32xf32, #tpu.memory_space<vmem>>, vector<256x8xf32>,
    %91 = vector.extract_strided_slice %35 {offsets = [0, 24], sizes = [256, 8], strides = [1, 1]} : vector<256x32xbf16> to vector<256x8xbf16>
    %92 = vector.extract_strided_slice %36 {offsets = [0, 24], sizes = [17, 8], strides = [1, 1]} : vector<17x64xbf16> to vector<17x8xbf16>
    %93 = vector.extract_strided_slice %36 {offsets = [0, 56], sizes = [17, 8], strides = [1, 1]} : vector<17x64xbf16> to vector<17x8xbf16>
    %cst_40 = arith.constant dense<0.000000e+00> : vector<256x17xf32>
    %94 = tpu.matmul %91, %92, %cst_40 {dimension_numbers = #tpu.dot_dimension_numbers<[1], [1], [0], [0], [0, 0, 1, 0], [], []>} : vector<256x8xbf16>, vector<17x8xbf16>, vector<256x17xf32> -> vector<256x17xf32>
    %95 = arith.addf %94, %34 : vector<256x17xf32>
    %cst_41 = arith.constant dense<0xFF800000> : vector<256xf32>
    %96 = vector.multi_reduction <maximumf>, %95, %cst_41 [1] : vector<256x17xf32> to vector<256xf32>
    %97 = vector.shape_cast %96 : vector<256xf32> to vector<256x1xf32>
    %98 = vector.broadcast %97 : vector<256x1xf32> to vector<256x17xf32>
    %99 = arith.subf %95, %98 : vector<256x17xf32>
    %100 = math.exp %99 : vector<256x17xf32>
    %cst_42 = arith.constant dense<0.000000e+00> : vector<256xf32>
    %101 = vector.multi_reduction <add>, %100, %cst_42 [1] : vector<256x17xf32> to vector<256xf32>
    %102 = vector.shape_cast %101 : vector<256xf32> to vector<256x1xf32>
    %103 = tpu.reciprocal %102 {approx = true} : vector<256x1xf32> -> vector<256x1xf32>
    %104 = vector.broadcast %103 : vector<256x1xf32> to vector<256x17xf32>
    %105 = arith.mulf %100, %104 : vector<256x17xf32>
    %106 = arith.truncf %105 : vector<256x17xf32> to vector<256x17xbf16>
    %cst_43 = arith.constant dense<0.000000e+00> : vector<256x8xf32>
    %107 = tpu.matmul %106, %93, %cst_43 {dimension_numbers = #tpu.dot_dimension_numbers<[1], [0], [0], [1], [0, 0, 1, 1], [], []>} : vector<256x17xbf16>, vector<17x8xbf16>, vector<256x8xf32> -> vector<256x8xf32>
    %c0_44 = arith.constant 0 : index
    %c24 = arith.constant 24 : index
    %108 = vector.load %arg13[%c0_44, %c24] : memref<256x32xf32, #tpu.memory_space<vmem>>, vector<256x8xf32>
    tpu.vector_store %arg13[%c0_44, %c24], %107 {strides = array<i32>} : memref<256x32xf32, #tpu.memory_space<vmem>>, vector<256x8xf32>,
    %c0_45 = arith.constant 0 : index
    %c0_46 = arith.constant 0 : index
    %109 = vector.load %arg10[%c0_45, %c0_46] : memref<16x32xbf16, #tpu.memory_space<vmem>>, vector<16x32xbf16>
    %c0_47 = arith.constant 0 : index
    %c0_48 = arith.constant 0 : index
    %110 = vector.load %arg13[%c0_47, %c0_48] : memref<256x32xf32, #tpu.memory_space<vmem>>, vector<256x32xf32>
    %111 = arith.truncf %110 : vector<256x32xf32> to vector<256x32xbf16>
    %cst_49 = arith.constant dense<0.000000e+00> : vector<16x256xf32>
    %112 = tpu.matmul %109, %111, %cst_49 {dimension_numbers = #tpu.dot_dimension_numbers<[1], [1], [0], [0], [0, 0, 1, 0], [], []>} : vector<16x32xbf16>, vector<256x32xbf16>, vector<16x256xf32> -> vector<16x256xf32>
    %c0_50 = arith.constant 0 : index
    %c0_51 = arith.constant 0 : index
    %113 = vector.load %arg11[%c0_50, %c0_51] : memref<16x1xf32, #tpu.memory_space<vmem>>, vector<16x1xf32>
    %114 = vector.broadcast %113 : vector<16x1xf32> to vector<16x256xf32>
    %115 = arith.addf %112, %114 : vector<16x256xf32>
    %c0_52 = arith.constant 0 : index
    %c0_53 = arith.constant 0 : index
    %c0_54 = arith.constant 0 : index
    %116 = vector.load %arg12[%c0_52, %c0_53, %c0_54] : memref<1x16x256xf32, #tpu.memory_space<vmem>>, vector<1x16x256xf32>
    %117 = vector.shape_cast %116 : vector<1x16x256xf32> to vector<16x256xf32>
    %118 = vector.shape_cast %115 : vector<16x256xf32> to vector<1x16x256xf32>
    tpu.vector_store %arg12[%c0_52, %c0_53, %c0_54], %118 {strides = array<i32>} : memref<1x16x256xf32, #tpu.memory_space<vmem>>, vector<1x16x256xf32>,
    return
  }
  func.func @transform_0(%arg0: i32, %arg1: i32) -> (i32, i32, i32) {
    %c0_i32 = arith.constant 0 : i32
    %c0_i32_0 = arith.constant 0 : i32
    return %arg0, %arg1, %c0_i32 : i32, i32, i32
  }
  func.func @transform_1(%arg0: i32, %arg1: i32) -> (i32, i32, i32) {
    %c0_i32 = arith.constant 0 : i32
    %c0_i32_0 = arith.constant 0 : i32
    %c0_i32_1 = arith.constant 0 : i32
    return %arg0, %c0_i32, %c0_i32_0 : i32, i32, i32
  }
  func.func @transform_2(%arg0: i32, %arg1: i32) -> (i32, i32, i32) {
    %c0_i32 = arith.constant 0 : i32
    %c0_i32_0 = arith.constant 0 : i32
    return %arg0, %arg1, %c0_i32 : i32, i32, i32
  }
  func.func @transform_3(%arg0: i32, %arg1: i32) -> (i32, i32) {
    %c0_i32 = arith.constant 0 : i32
    %c0_i32_0 = arith.constant 0 : i32
    %c0_i32_1 = arith.constant 0 : i32
    return %c0_i32, %c0_i32_0 : i32, i32
  }
  func.func @transform_4(%arg0: i32, %arg1: i32) -> (i32, i32) {
    %c0_i32 = arith.constant 0 : i32
    %c0_i32_0 = arith.constant 0 : i32
    %c0_i32_1 = arith.constant 0 : i32
    return %c0_i32, %c0_i32_0 : i32, i32
  }
  func.func @transform_5(%arg0: i32, %arg1: i32) -> (i32, i32) {
    %c0_i32 = arith.constant 0 : i32
    %c0_i32_0 = arith.constant 0 : i32
    return %arg1, %c0_i32 : i32, i32
  }
  func.func @transform_6(%arg0: i32, %arg1: i32) -> (i32, i32) {
    %c0_i32 = arith.constant 0 : i32
    %c0_i32_0 = arith.constant 0 : i32
    %c0_i32_1 = arith.constant 0 : i32
    return %c0_i32, %c0_i32_0 : i32, i32
  }
  func.func @transform_7(%arg0: i32, %arg1: i32) -> (i32, i32) {
    %c0_i32 = arith.constant 0 : i32
    %c0_i32_0 = arith.constant 0 : i32
    %c0_i32_1 = arith.constant 0 : i32
    return %c0_i32, %c0_i32_0 : i32, i32
  }
  func.func @transform_8(%arg0: i32, %arg1: i32) -> (i32, i32) {
    %c0_i32 = arith.constant 0 : i32
    %c0_i32_0 = arith.constant 0 : i32
    %c0_i32_1 = arith.constant 0 : i32
    return %c0_i32, %c0_i32_0 : i32, i32
  }
  func.func @transform_9(%arg0: i32, %arg1: i32) -> (i32, i32) {
    %c0_i32 = arith.constant 0 : i32
    %c0_i32_0 = arith.constant 0 : i32
    %c0_i32_1 = arith.constant 0 : i32
    return %c0_i32, %c0_i32_0 : i32, i32
  }
  func.func @transform_10(%arg0: i32, %arg1: i32) -> (i32, i32, i32) {
    %c0_i32 = arith.constant 0 : i32
    %c0_i32_0 = arith.constant 0 : i32
    return %arg0, %c0_i32, %arg1 : i32, i32, i32
  }
}

</mosaic_0001>

<llo_original>
// kernel: tpu_custom_call.1
$region0: #{tpu_custom_call.1}
  #allocation0 [shape = 'u32[]', space=smem, size = 0x4, offset = 0x4, fixed_abs, tag = 'smem constant byte address 0x4 - core index']
  #allocation1 [shape = 'u32[72,128]{1,0:T(1,128)}', space=vmem, size = 0x9000, scoped, tag = 'internal scratch']
  #allocation2 [shape = 'f32[256,32]{1,0:T(8,128)}', space=vmem, size = 0x20000, scoped, tag = 'scratch operand']
  %s0 = inlined_call_operand.vmem [shape: bf16[2,512,48], index: 0, kind: input, shape index: {}]
  %s1 = inlined_call_operand.vmem [shape: bf16[2,17,32], index: 1, kind: input, shape index: {}]
  %s2 = inlined_call_operand.vmem [shape: f32[2,512,2], index: 2, kind: input, shape index: {}]
  %s3 = inlined_call_operand.vmem [shape: f32[3,17], index: 3, kind: input, shape index: {}]
  %s4 = inlined_call_operand.vmem [shape: bf16[48,32], index: 4, kind: input, shape index: {}]
  %s5 = inlined_call_operand.vmem [shape: f32[512,32], index: 5, kind: input, shape index: {}]
  %s6 = inlined_call_operand.vmem [shape: bf16[32,64], index: 6, kind: input, shape index: {}]
  %s7 = inlined_call_operand.vmem [shape: f32[17,64], index: 7, kind: input, shape index: {}]
  %s8 = inlined_call_operand.vmem [shape: bf16[16,32], index: 8, kind: input, shape index: {}]
  %s9 = inlined_call_operand.vmem [shape: f32[16,1], index: 9, kind: input, shape index: {}]
  %s10 = inlined_call_operand.hbm [shape: f32[2,16,512], index: 10, kind: output, shape index: {}]
  %s11 = sld [smem:[#allocation0]]
  $region73: #{tpu_custom_call.1} parent=0
    _
  %s13 = ssub.s32 1, %s11
  %s14 = scalar_select 0, %s13, %s11
  $region1: #{tpu_custom_call.1} parent=0
    #allocation3 [shape = 'u8[32768]{0}', space=vmem, size = 0x8000, scoped, tag = 'output window, operand 0']
    #allocation4 [shape = 's32[2]{0}', space=sflag, size = 0x8, scoped, tag = 'scoped memory for tpu_custom_call.1']
    %15 = vsyncpa [#allocation4], 0
    %s16 = scalar_lea.sflag [#allocation4], 1
    %17 = vsyncpa %s16, 0
    loop: start=0, step=1, limit=6
    $region2: #{tpu_custom_call.1} parent=1 // loop_pre_header
      _
    $region3: #{tpu_custom_call.1} parent=1 // loop_header
      %s19 = sphi 0, %s23
      %p20 = scmp.ge.s32.totalorder %s19, 6
      %s26 = sphi 0, %s38
      %s27 = sphi 0, %s34
      %s28 = sphi 0, %s26
      %s29 = sphi 0, %s27
      %s30 = sphi 0, %s28
      %s31 = sphi 0, %s29
      %s43 = sphi 0, %s45
      %s46 = sphi 0, %s43
      %s47 = sphi 0, %s46
      %s63 = sphi 0, %s47
      %s69 = sphi 0, %s71
      %s72 = sphi 0, %s69
      %s73 = sphi 0, %s72
      %s89 = sphi 0, %s73
      %s97 = sphi 0, %s99
      %s100 = sphi 0, %s97
      %s101 = sphi 0, %s100
      %s117 = sphi 0, %s101
      %s121 = sphi 0, %s121
      %s123 = sphi 0, %s121
      %s124 = sphi 0, %s123
      %s138 = sphi 0, %s124
      %s142 = sphi 0, %s142
      %s144 = sphi 0, %s142
      %s145 = sphi 0, %s144
      %s159 = sphi 0, %s145
      %s165 = sphi 0, %s167
      %s168 = sphi 0, %s165
      %s169 = sphi 0, %s168
      %s185 = sphi 0, %s169
      %s189 = sphi 0, %s189
      %s191 = sphi 0, %s189
      %s192 = sphi 0, %s191
      %s206 = sphi 0, %s192
      %s210 = sphi 0, %s210
      %s212 = sphi 0, %s210
      %s213 = sphi 0, %s212
      %s227 = sphi 0, %s213
      %s231 = sphi 0, %s231
      %s233 = sphi 0, %s231
      %s234 = sphi 0, %s233
      %s248 = sphi 0, %s234
      %s252 = sphi 0, %s252
      %s254 = sphi 0, %s252
      %s255 = sphi 0, %s254
      %s269 = sphi 0, %s255
      %s277 = sphi 0, %s279
      %s280 = sphi 0, %s277
      %s281 = sphi 0, %s280
      %s297 = sphi 0, %s281
    $region4: #{tpu_custom_call.1} parent=1 // loop_header_branch
      %22 = sbr.rel (%p20) target = $region8
    $region5: #{tpu_custom_call.1} parent=1 // loop_body
      %s24 = ssub.s32 %s19, 1
      %s25 = ssub.s32 %s19, 2
      %s32 = sadd.s32 1, %s27
      %p33 = scmp.ge.s32.totalorder %s32, 2
      %s34 = scalar_select %p33, 0, %s32
      %s35 = sadd.s32 1, %s26
      %s36 = scalar_select %p33, %s35, %s26
      %p37 = scmp.ge.s32.totalorder %s36, 2
      %s38 = scalar_select %p37, 0, %s36
      %s39 = ssub.s32 %s26, %s38
      %s40 = ssub.s32 %s27, %s34
      %s41 = sor.u32 %s39, %s40
      %p42 = scmp.eq.s32.totalorder %s41, 0
      %s44 = sadd.s32 %s43, 1
      %s45 = scalar_select %p42, %s43, %s44
      %p48 = pneg %p42
      %p49 = scmp.eq.s32.totalorder %s19, 3
      %p50 = por %p48, %p49
      %p51 = scmp.ne.s32.totalorder %s43, %s46
      %p52 = scmp.eq.s32.totalorder %s19, 0
      %p53 = por %p51, %p52
      %p54 = scmp.ne.s32.totalorder %s43, %s46
      %p55 = scmp.eq.s32.totalorder %s24, 3
      %p56 = por %p54, %p55
      %p57 = scmp.ne.s32.totalorder %s46, %s47
      %p58 = scmp.eq.s32.totalorder %s24, 0
      %p59 = por %p57, %p58
      %p60 = scmp.ne.s32.totalorder %s46, %s47
      %p61 = scmp.eq.s32.totalorder %s25, 3
      %p62 = por %p60, %p61
      %p64 = scmp.ne.s32.totalorder %s47, %s63
      %p65 = scmp.eq.s32.totalorder %s25, 0
      %p66 = por %p64, %p65
      %s67 = ssub.s32 %s26, %s38
      %p68 = scmp.eq.s32.totalorder %s67, 0
      %s70 = sadd.s32 %s69, 1
      %s71 = scalar_select %p68, %s69, %s70
      %p74 = pneg %p68
      %p75 = scmp.eq.s32.totalorder %s19, 3
      %p76 = por %p74, %p75
      %p77 = scmp.ne.s32.totalorder %s69, %s72
      %p78 = scmp.eq.s32.totalorder %s19, 0
      %p79 = por %p77, %p78
      %p80 = scmp.ne.s32.totalorder %s69, %s72
      %p81 = scmp.eq.s32.totalorder %s24, 3
      %p82 = por %p80, %p81
      %p83 = scmp.ne.s32.totalorder %s72, %s73
      %p84 = scmp.eq.s32.totalorder %s24, 0
      %p85 = por %p83, %p84
      %p86 = scmp.ne.s32.totalorder %s72, %s73
      %p87 = scmp.eq.s32.totalorder %s25, 3
      %p88 = por %p86, %p87
      %p90 = scmp.ne.s32.totalorder %s73, %s89
      %p91 = scmp.eq.s32.totalorder %s25, 0
      %p92 = por %p90, %p91
      %s93 = ssub.s32 %s26, %s38
      %s94 = ssub.s32 %s27, %s34
      %s95 = sor.u32 %s93, %s94
      %p96 = scmp.eq.s32.totalorder %s95, 0
      %s98 = sadd.s32 %s97, 1
      %s99 = scalar_select %p96, %s97, %s98
      %p102 = pneg %p96
      %p103 = scmp.eq.s32.totalorder %s19, 3
      %p104 = por %p102, %p103
      %p105 = scmp.ne.s32.totalorder %s97, %s100
      %p106 = scmp.eq.s32.totalorder %s19, 0
      %p107 = por %p105, %p106
      %p108 = scmp.ne.s32.totalorder %s97, %s100
      %p109 = scmp.eq.s32.totalorder %s24, 3
      %p110 = por %p108, %p109
      %p111 = scmp.ne.s32.totalorder %s100, %s101
      %p112 = scmp.eq.s32.totalorder %s24, 0
      %p113 = por %p111, %p112
      %p114 = scmp.ne.s32.totalorder %s100, %s101
      %p115 = scmp.eq.s32.totalorder %s25, 3
      %p116 = por %p114, %p115
      %p118 = scmp.ne.s32.totalorder %s101, %s117
      %p119 = scmp.eq.s32.totalorder %s25, 0
      %p120 = por %p118, %p119
      %s122 = sadd.s32 %s121, 1
      %p125 = scmp.eq.s32.totalorder %s19, 3
      %p126 = scmp.ne.s32.totalorder %s121, %s123
      %p127 = scmp.eq.s32.totalorder %s19, 0
      %p128 = por %p126, %p127
      %p129 = scmp.ne.s32.totalorder %s121, %s123
      %p130 = scmp.eq.s32.totalorder %s24, 3
      %p131 = por %p129, %p130
      %p132 = scmp.ne.s32.totalorder %s123, %s124
      %p133 = scmp.eq.s32.totalorder %s24, 0
      %p134 = por %p132, %p133
      %p135 = scmp.ne.s32.totalorder %s123, %s124
      %p136 = scmp.eq.s32.totalorder %s25, 3
      %p137 = por %p135, %p136
      %p139 = scmp.ne.s32.totalorder %s124, %s138
      %p140 = scmp.eq.s32.totalorder %s25, 0
      %p141 = por %p139, %p140
      %s143 = sadd.s32 %s142, 1
      %p146 = scmp.eq.s32.totalorder %s19, 3
      %p147 = scmp.ne.s32.totalorder %s142, %s144
      %p148 = scmp.eq.s32.totalorder %s19, 0
      %p149 = por %p147, %p148
      %p150 = scmp.ne.s32.totalorder %s142, %s144
      %p151 = scmp.eq.s32.totalorder %s24, 3
      %p152 = por %p150, %p151
      %p153 = scmp.ne.s32.totalorder %s144, %s145
      %p154 = scmp.eq.s32.totalorder %s24, 0
      %p155 = por %p153, %p154
      %p156 = scmp.ne.s32.totalorder %s144, %s145
      %p157 = scmp.eq.s32.totalorder %s25, 3
      %p158 = por %p156, %p157
      %p160 = scmp.ne.s32.totalorder %s145, %s159
      %p161 = scmp.eq.s32.totalorder %s25, 0
      %p162 = por %p160, %p161
      %s163 = ssub.s32 %s27, %s34
      %p164 = scmp.eq.s32.totalorder %s163, 0
      %s166 = sadd.s32 %s165, 1
      %s167 = scalar_select %p164, %s165, %s166
      %p170 = pneg %p164
      %p171 = scmp.eq.s32.totalorder %s19, 3
      %p172 = por %p170, %p171
      %p173 = scmp.ne.s32.totalorder %s165, %s168
      %p174 = scmp.eq.s32.totalorder %s19, 0
      %p175 = por %p173, %p174
      %p176 = scmp.ne.s32.totalorder %s165, %s168
      %p177 = scmp.eq.s32.totalorder %s24, 3
      %p178 = por %p176, %p177
      %p179 = scmp.ne.s32.totalorder %s168, %s169
      %p180 = scmp.eq.s32.totalorder %s24, 0
      %p181 = por %p179, %p180
      %p182 = scmp.ne.s32.totalorder %s168, %s169
      %p183 = scmp.eq.s32.totalorder %s25, 3
      %p184 = por %p182, %p183
      %p186 = scmp.ne.s32.totalorder %s169, %s185
      %p187 = scmp.eq.s32.totalorder %s25, 0
      %p188 = por %p186, %p187
      %s190 = sadd.s32 %s189, 1
      %p193 = scmp.eq.s32.totalorder %s19, 3
      %p194 = scmp.ne.s32.totalorder %s189, %s191
      %p195 = scmp.eq.s32.totalorder %s19, 0
      %p196 = por %p194, %p195
      %p197 = scmp.ne.s32.totalorder %s189, %s191
      %p198 = scmp.eq.s32.totalorder %s24, 3
      %p199 = por %p197, %p198
      %p200 = scmp.ne.s32.totalorder %s191, %s192
      %p201 = scmp.eq.s32.totalorder %s24, 0
      %p202 = por %p200, %p201
      %p203 = scmp.ne.s32.totalorder %s191, %s192
      %p204 = scmp.eq.s32.totalorder %s25, 3
      %p205 = por %p203, %p204
      %p207 = scmp.ne.s32.totalorder %s192, %s206
      %p208 = scmp.eq.s32.totalorder %s25, 0
      %p209 = por %p207, %p208
      %s211 = sadd.s32 %s210, 1
      %p214 = scmp.eq.s32.totalorder %s19, 3
      %p215 = scmp.ne.s32.totalorder %s210, %s212
      %p216 = scmp.eq.s32.totalorder %s19, 0
      %p217 = por %p215, %p216
      %p218 = scmp.ne.s32.totalorder %s210, %s212
      %p219 = scmp.eq.s32.totalorder %s24, 3
      %p220 = por %p218, %p219
      %p221 = scmp.ne.s32.totalorder %s212, %s213
      %p222 = scmp.eq.s32.totalorder %s24, 0
      %p223 = por %p221, %p222
      %p224 = scmp.ne.s32.totalorder %s212, %s213
      %p225 = scmp.eq.s32.totalorder %s25, 3
      %p226 = por %p224, %p225
      %p228 = scmp.ne.s32.totalorder %s213, %s227
      %p229 = scmp.eq.s32.totalorder %s25, 0
      %p230 = por %p228, %p229
      %s232 = sadd.s32 %s231, 1
      %p235 = scmp.eq.s32.totalorder %s19, 3
      %p236 = scmp.ne.s32.totalorder %s231, %s233
      %p237 = scmp.eq.s32.totalorder %s19, 0
      %p238 = por %p236, %p237
      %p239 = scmp.ne.s32.totalorder %s231, %s233
      %p240 = scmp.eq.s32.totalorder %s24, 3
      %p241 = por %p239, %p240
      %p242 = scmp.ne.s32.totalorder %s233, %s234
      %p243 = scmp.eq.s32.totalorder %s24, 0
      %p244 = por %p242, %p243
      %p245 = scmp.ne.s32.totalorder %s233, %s234
      %p246 = scmp.eq.s32.totalorder %s25, 3
      %p247 = por %p245, %p246
      %p249 = scmp.ne.s32.totalorder %s234, %s248
      %p250 = scmp.eq.s32.totalorder %s25, 0
      %p251 = por %p249, %p250
      %s253 = sadd.s32 %s252, 1
      %p256 = scmp.eq.s32.totalorder %s19, 3
      %p257 = scmp.ne.s32.totalorder %s252, %s254
      %p258 = scmp.eq.s32.totalorder %s19, 0
      %p259 = por %p257, %p258
      %p260 = scmp.ne.s32.totalorder %s252, %s254
      %p261 = scmp.eq.s32.totalorder %s24, 3
      %p262 = por %p260, %p261
      %p263 = scmp.ne.s32.totalorder %s254, %s255
      %p264 = scmp.eq.s32.totalorder %s24, 0
      %p265 = por %p263, %p264
      %p266 = scmp.ne.s32.totalorder %s254, %s255
      %p267 = scmp.eq.s32.totalorder %s25, 3
      %p268 = por %p266, %p267
      %p270 = scmp.ne.s32.totalorder %s255, %s269
      %p271 = scmp.eq.s32.totalorder %s25, 0
      %p272 = por %p270, %p271
      %s273 = ssub.s32 %s26, %s38
      %s274 = ssub.s32 %s27, %s34
      %s275 = sor.u32 %s273, %s274
      %p276 = scmp.eq.s32.totalorder %s275, 0
      %s278 = sadd.s32 %s277, 1
      %s279 = scalar_select %p276, %s277, %s278
      %p282 = pneg %p276
      %p283 = scmp.eq.s32.totalorder %s19, 3
      %p284 = por %p282, %p283
      %p285 = scmp.ne.s32.totalorder %s277, %s280
      %p286 = scmp.eq.s32.totalorder %s19, 0
      %p287 = por %p285, %p286
      %p288 = scmp.ne.s32.totalorder %s277, %s280
      %p289 = scmp.eq.s32.totalorder %s24, 3
      %p290 = por %p288, %p289
      %p291 = scmp.ne.s32.totalorder %s280, %s281
      %p292 = scmp.eq.s32.totalorder %s24, 0
      %p293 = por %p291, %p292
      %p294 = scmp.ne.s32.totalorder %s280, %s281
      %p295 = scmp.eq.s32.totalorder %s25, 3
      %p296 = por %p294, %p295
      %p298 = scmp.ne.s32.totalorder %s281, %s297
      %p299 = scmp.eq.s32.totalorder %s25, 0
      %p300 = por %p298, %p299
      %p301 = scmp.le.s32.totalorder 1, %s19
      %p302 = scmp.lt.s32.totalorder %s19, 5
      %p303 = pnand %p301, %p302
      %p304 = pneg %p303
      // Predicated region
      $region9: #{tpu_custom_call.1} parent=5 // pred_check
        _
      $region10: #{tpu_custom_call.1} parent=5 // pred_check_branch
        %306 = sbr.rel (%p303) target = $region12
      $region11: #{tpu_custom_call.1} parent=5 // pred_region
        %s307 = ssub.s32 %s19, 1
        // Predicated region
        $region13: #{tpu_custom_call.1} parent=11 // pred_check
          %p308 = pneg %p134
        $region14: #{tpu_custom_call.1} parent=11 // pred_check_branch
          %310 = sbr.rel (%p308) target = $region16
        $region15: #{tpu_custom_call.1} parent=11 // pred_region
          _
        $region16: #{tpu_custom_call.1} parent=11 // pred_fallthru
          _
        // Predicated region
        $region17: #{tpu_custom_call.1} parent=11 // pred_check
          %p311 = pneg %p155
        $region18: #{tpu_custom_call.1} parent=11 // pred_check_branch
          %313 = sbr.rel (%p311) target = $region20
        $region19: #{tpu_custom_call.1} parent=11 // pred_region
          _
        $region20: #{tpu_custom_call.1} parent=11 // pred_fallthru
          _
        // Predicated region
        $region21: #{tpu_custom_call.1} parent=11 // pred_check
          %p314 = pneg %p202
        $region22: #{tpu_custom_call.1} parent=11 // pred_check_branch
          %316 = sbr.rel (%p314) target = $region24
        $region23: #{tpu_custom_call.1} parent=11 // pred_region
          _
        $region24: #{tpu_custom_call.1} parent=11 // pred_fallthru
          _
        // Predicated region
        $region25: #{tpu_custom_call.1} parent=11 // pred_check
          %p317 = pneg %p223
        $region26: #{tpu_custom_call.1} parent=11 // pred_check_branch
          %319 = sbr.rel (%p317) target = $region28
        $region27: #{tpu_custom_call.1} parent=11 // pred_region
          _
        $region28: #{tpu_custom_call.1} parent=11 // pred_fallthru
          _
        // Predicated region
        $region29: #{tpu_custom_call.1} parent=11 // pred_check
          %p320 = pneg %p244
        $region30: #{tpu_custom_call.1} parent=11 // pred_check_branch
          %322 = sbr.rel (%p320) target = $region32
        $region31: #{tpu_custom_call.1} parent=11 // pred_region
          _
        $region32: #{tpu_custom_call.1} parent=11 // pred_fallthru
          _
        // Predicated region
        $region33: #{tpu_custom_call.1} parent=11 // pred_check
          %p323 = pneg %p265
        $region34: #{tpu_custom_call.1} parent=11 // pred_check_branch
          %325 = sbr.rel (%p323) target = $region36
        $region35: #{tpu_custom_call.1} parent=11 // pred_region
          _
        $region36: #{tpu_custom_call.1} parent=11 // pred_fallthru
          _
      $region12: #{tpu_custom_call.1} parent=5 // pred_fallthru
        _
      %p326 = scmp.lt.s32.totalorder %s19, 4
      // Predicated region
      $region37: #{tpu_custom_call.1} parent=5 // pred_check
        %p327 = pneg %p326
      $region38: #{tpu_custom_call.1} parent=5 // pred_check_branch
        %329 = sbr.rel (%p327) target = $region40
      $region39: #{tpu_custom_call.1} parent=5 // pred_region
        // Predicated region
        $region41: #{tpu_custom_call.1} parent=39 // pred_check
          %p330 = pneg %p53
        $region42: #{tpu_custom_call.1} parent=39 // pred_check_branch
          %332 = sbr.rel (%p330) target = $region44
        $region43: #{tpu_custom_call.1} parent=39 // pred_region
          %s333 = smul.u32 32, %s27
          %p334 = scmp.lt.s32.totalorder %s26, 1
          %s335 = scalar_select %p334, %s26, 1
          %p336 = scmp.lt.s32.totalorder %s333, 63
          %s337 = scalar_select %p336, %s333, 63
          %s338 = smul.addr %s335, 64
          %s339 = sadd.s32 %s337, %s338
          %s340 = smul.addr %s339, 4
          %s341 = scalar_lea.vmem %s0, %s340
          %s342 = smul.u32 32, %s27
        $region44: #{tpu_custom_call.1} parent=39 // pred_fallthru
          _
        // Predicated region
        $region45: #{tpu_custom_call.1} parent=39 // pred_check
          %p343 = pneg %p79
        $region46: #{tpu_custom_call.1} parent=39 // pred_check_branch
          %345 = sbr.rel (%p343) target = $region48
        $region47: #{tpu_custom_call.1} parent=39 // pred_region
          %p346 = scmp.lt.s32.totalorder %s26, 1
          %s347 = scalar_select %p346, %s26, 1
          %s348 = smul.addr %s347, 3
          %s349 = smul.addr %s348, 4
          %s350 = scalar_lea.vmem %s1, %s349
        $region48: #{tpu_custom_call.1} parent=39 // pred_fallthru
          _
        // Predicated region
        $region49: #{tpu_custom_call.1} parent=39 // pred_check
          %p351 = pneg %p107
        $region50: #{tpu_custom_call.1} parent=39 // pred_check_branch
          %353 = sbr.rel (%p351) target = $region52
        $region51: #{tpu_custom_call.1} parent=39 // pred_region
          %s354 = smul.u32 32, %s27
          %p355 = scmp.lt.s32.totalorder %s26, 1
          %s356 = scalar_select %p355, %s26, 1
          %p357 = scmp.lt.s32.totalorder %s354, 63
          %s358 = scalar_select %p357, %s354, 63
          %s359 = smul.addr %s356, 64
          %s360 = sadd.s32 %s358, %s359
          %s361 = smul.addr %s360, 8
          %s362 = scalar_lea.vmem %s2, %s361
          %s363 = smul.u32 32, %s27
        $region52: #{tpu_custom_call.1} parent=39 // pred_fallthru
          _
        // Predicated region
        $region53: #{tpu_custom_call.1} parent=39 // pred_check
          %p364 = pneg %p175
        $region54: #{tpu_custom_call.1} parent=39 // pred_check_branch
          %366 = sbr.rel (%p364) target = $region56
        $region55: #{tpu_custom_call.1} parent=39 // pred_region
          %s367 = smul.u32 32, %s27
          %p368 = scmp.lt.s32.totalorder %s367, 63
          %s369 = scalar_select %p368, %s367, 63
          %s370 = smul.addr %s369, 8
          %s371 = scalar_lea.vmem %s5, %s370
          %s372 = smul.u32 32, %s27
        $region56: #{tpu_custom_call.1} parent=39 // pred_fallthru
          _
      $region40: #{tpu_custom_call.1} parent=5 // pred_fallthru
        _
      %p373 = scmp.le.s32.totalorder 1, %s19
      %p374 = scmp.lt.s32.totalorder %s19, 5
      %p375 = pnand %p373, %p374
      %p376 = pneg %p375
      // Predicated region
      $region57: #{tpu_custom_call.1} parent=5 // pred_check
        _
      $region58: #{tpu_custom_call.1} parent=5 // pred_check_branch
        %378 = sbr.rel (%p375) target = $region60
      $region59: #{tpu_custom_call.1} parent=5 // pred_region
        %s379 = ssub.s32 %s19, 1
        %s380 = smul.u32 32, %s29
        %p381 = scmp.lt.s32.totalorder %s28, 1
        %s382 = scalar_select %p381, %s28, 1
        %p383 = scmp.lt.s32.totalorder %s380, 63
        %s384 = scalar_select %p383, %s380, 63
        %s385 = smul.addr %s382, 64
        %s386 = sadd.s32 %s384, %s385
        %s387 = smul.addr %s386, 4
        %s388 = scalar_lea.vmem %s0, %s387
        %p389 = pneg %p59
        %p390 = pneg %p56
        %p391 = scmp.lt.s32.totalorder %s28, 1
        %s392 = scalar_select %p391, %s28, 1
        %s393 = smul.addr %s392, 3
        %s394 = smul.addr %s393, 4
        %s395 = scalar_lea.vmem %s1, %s394
        %p396 = pneg %p85
        %p397 = pneg %p82
        %s398 = smul.u32 32, %s29
        %p399 = scmp.lt.s32.totalorder %s28, 1
        %s400 = scalar_select %p399, %s28, 1
        %p401 = scmp.lt.s32.totalorder %s398, 63
        %s402 = scalar_select %p401, %s398, 63
        %s403 = smul.addr %s400, 64
        %s404 = sadd.s32 %s402, %s403
        %s405 = smul.addr %s404, 8
        %s406 = scalar_lea.vmem %s2, %s405
        %p407 = pneg %p113
        %p408 = pneg %p110
        %p409 = pneg %p134
        %p410 = pneg %p131
        %p411 = pneg %p155
        %p412 = pneg %p152
        %s413 = smul.u32 32, %s29
        %p414 = scmp.lt.s32.totalorder %s413, 63
        %s415 = scalar_select %p414, %s413, 63
        %s416 = smul.addr %s415, 8
        %s417 = scalar_lea.vmem %s5, %s416
        %p418 = pneg %p181
        %p419 = pneg %p178
        %p420 = pneg %p202
        %p421 = pneg %p199
        %p422 = pneg %p223
        %p423 = pneg %p220
        %p424 = pneg %p244
        %p425 = pneg %p241
        %p426 = pneg %p265
        %p427 = pneg %p262
        %p428 = pneg %p293
        %p429 = pneg %p290
        %s430 = sand.u32 %s280, 1
        %s431 = scalar_lea.sflag [#allocation4], %s430
        %s432 = sand.u32 %s280, 1
        %s433 = smul.addr %s432, 32
        %s434 = scalar_lea.vmem [#allocation3], %s433
        %s435 = smul.u32 32, %s29
        %p436 = scmp.lt.s32.totalorder %s28, 1
        %s437 = scalar_select %p436, %s28, 1
        %p438 = scmp.lt.s32.totalorder %s435, 63
        %s439 = scalar_select %p438, %s435, 63
        %s440 = smul.addr %s437, 64
        %s441 = sadd.s32 %s439, %s440
        %s442 = smul.addr %s441, 4
        %s443 = scalar_lea.vmem %s0, %s442
        %s444 = smul.u32 32, %s29
        %p445 = scmp.lt.s32.totalorder %s28, 1
        %s446 = scalar_select %p445, %s28, 1
        %s447 = smul.addr %s446, 3
        %s448 = smul.addr %s447, 4
        %s449 = scalar_lea.vmem %s1, %s448
        %s450 = smul.u32 32, %s29
        %p451 = scmp.lt.s32.totalorder %s28, 1
        %s452 = scalar_select %p451, %s28, 1
        %p453 = scmp.lt.s32.totalorder %s450, 63
        %s454 = scalar_select %p453, %s450, 63
        %s455 = smul.addr %s452, 64
        %s456 = sadd.s32 %s454, %s455
        %s457 = smul.addr %s456, 8
        %s458 = scalar_lea.vmem %s2, %s457
        %s459 = smul.u32 32, %s29
        %s460 = smul.u32 32, %s29
        %p461 = scmp.lt.s32.totalorder %s460, 63
        %s462 = scalar_select %p461, %s460, 63
        %s463 = smul.addr %s462, 8
        %s464 = scalar_lea.vmem %s5, %s463
        %s465 = smul.u32 32, %s29
        %s466 = smul.u32 2, %s29
        %v468 = vld [vmem:[%s443] sm:$0xf]
        %v469 = vld [vmem:[%s443 + $0x4] sm:$0xf]
        %v470 = vld [vmem:[%s443 + $0x8] sm:$0xf]
        %v471 = vld [vmem:[%s443 + $0xc] sm:$0xf]
        %v472 = vld [vmem:[%s443 + $0x10] sm:$0xf]
        %v473 = vld [vmem:[%s443 + $0x14] sm:$0xf]
        %v474 = vld [vmem:[%s443 + $0x18] sm:$0xf]
        %v475 = vld [vmem:[%s443 + $0x1c] sm:$0xf]
        %v476 = vld [vmem:[%s443 + $0x20] sm:$0xf]
        %v477 = vld [vmem:[%s443 + $0x24] sm:$0xf]
        %v478 = vld [vmem:[%s443 + $0x28] sm:$0xf]
        %v479 = vld [vmem:[%s443 + $0x2c] sm:$0xf]
        %v480 = vld [vmem:[%s443 + $0x30] sm:$0xf]
        %v481 = vld [vmem:[%s443 + $0x34] sm:$0xf]
        %v482 = vld [vmem:[%s443 + $0x38] sm:$0xf]
        %v483 = vld [vmem:[%s443 + $0x3c] sm:$0xf]
        %v484 = vld [vmem:[%s443 + $0x40] sm:$0xf]
        %v485 = vld [vmem:[%s443 + $0x44] sm:$0xf]
        %v486 = vld [vmem:[%s443 + $0x48] sm:$0xf]
        %v487 = vld [vmem:[%s443 + $0x4c] sm:$0xf]
        %v488 = vld [vmem:[%s443 + $0x50] sm:$0xf]
        %v489 = vld [vmem:[%s443 + $0x54] sm:$0xf]
        %v490 = vld [vmem:[%s443 + $0x58] sm:$0xf]
        %v491 = vld [vmem:[%s443 + $0x5c] sm:$0xf]
        %v492 = vld [vmem:[%s443 + $0x60] sm:$0xf]
        %v493 = vld [vmem:[%s443 + $0x64] sm:$0xf]
        %v494 = vld [vmem:[%s443 + $0x68] sm:$0xf]
        %v495 = vld [vmem:[%s443 + $0x6c] sm:$0xf]
        %v496 = vld [vmem:[%s443 + $0x70] sm:$0xf]
        %v497 = vld [vmem:[%s443 + $0x74] sm:$0xf]
        %v498 = vld [vmem:[%s443 + $0x78] sm:$0xf]
        %v499 = vld [vmem:[%s443 + $0x7c] sm:$0xf]
        %v500 = vld [vmem:[%s4] sm:$0xf]
        %v501 = vld [vmem:[%s4 + $0x4] sm:$0xf]
        %v502 = vld [vmem:[%s4 + $0x8] sm:$0xf]
        %v503 = vld [vmem:[%s4 + $0xc] sm:$0xf]
        %v504 = vld [vmem:[%s4 + $0x10] sm:$0xf]
        %v505 = vld [vmem:[%s4 + $0x14] sm:$0xf]
        %v506 = vld [vmem:[%s464] sm:$0xff]
        %v507 = vld [vmem:[%s464 + $0x8] sm:$0xff]
        %v508 = vld [vmem:[%s464 + $0x10] sm:$0xff]
        %v509 = vld [vmem:[%s464 + $0x18] sm:$0xff]
        %v510 = vld [vmem:[%s464 + $0x20] sm:$0xff]
        %v511 = vld [vmem:[%s464 + $0x28] sm:$0xff]
        %v512 = vld [vmem:[%s464 + $0x30] sm:$0xff]
        %v513 = vld [vmem:[%s464 + $0x38] sm:$0xff]
        %v514 = vld [vmem:[%s464 + $0x40] sm:$0xff]
        %v515 = vld [vmem:[%s464 + $0x48] sm:$0xff]
        %v516 = vld [vmem:[%s464 + $0x50] sm:$0xff]
        %v517 = vld [vmem:[%s464 + $0x58] sm:$0xff]
        %v518 = vld [vmem:[%s464 + $0x60] sm:$0xff]
        %v519 = vld [vmem:[%s464 + $0x68] sm:$0xff]
        %v520 = vld [vmem:[%s464 + $0x70] sm:$0xff]
        %v521 = vld [vmem:[%s464 + $0x78] sm:$0xff]
        %v522 = vld [vmem:[%s464 + $0x80] sm:$0xff]
        %v523 = vld [vmem:[%s464 + $0x88] sm:$0xff]
        %v524 = vld [vmem:[%s464 + $0x90] sm:$0xff]
        %v525 = vld [vmem:[%s464 + $0x98] sm:$0xff]
        %v526 = vld [vmem:[%s464 + $0xa0] sm:$0xff]
        %v527 = vld [vmem:[%s464 + $0xa8] sm:$0xff]
        %v528 = vld [vmem:[%s464 + $0xb0] sm:$0xff]
        %v529 = vld [vmem:[%s464 + $0xb8] sm:$0xff]
        %v530 = vld [vmem:[%s464 + $0xc0] sm:$0xff]
        %v531 = vld [vmem:[%s464 + $0xc8] sm:$0xff]
        %v532 = vld [vmem:[%s464 + $0xd0] sm:$0xff]
        %v533 = vld [vmem:[%s464 + $0xd8] sm:$0xff]
        %v534 = vld [vmem:[%s464 + $0xe0] sm:$0xff]
        %v535 = vld [vmem:[%s464 + $0xe8] sm:$0xff]
        %v536 = vld [vmem:[%s464 + $0xf0] sm:$0xff]
        %v537 = vld [vmem:[%s464 + $0xf8] sm:$0xff]
        %v570 = vunpack.c.l.b16 %v468
        %v571 = vunpack.c.l.b16 %v469
        %v572 = vunpack.c.l.b16 %v470
        %v573 = vunpack.c.l.b16 %v471
        %v574 = vunpack.c.l.b16 %v472
        %v575 = vunpack.c.l.b16 %v473
        %v576 = vunpack.c.l.b16 %v474
        %v577 = vunpack.c.l.b16 %v475
        %v578 = vunpack.c.l.b16 %v476
        %v579 = vunpack.c.l.b16 %v477
        %v580 = vunpack.c.l.b16 %v478
        %v581 = vunpack.c.l.b16 %v479
        %v582 = vunpack.c.l.b16 %v480
        %v583 = vunpack.c.l.b16 %v481
        %v584 = vunpack.c.l.b16 %v482
        %v585 = vunpack.c.l.b16 %v483
        %v586 = vunpack.c.l.b16 %v484
        %v587 = vunpack.c.l.b16 %v485
        %v588 = vunpack.c.l.b16 %v486
        %v589 = vunpack.c.l.b16 %v487
        %v590 = vunpack.c.l.b16 %v488
        %v591 = vunpack.c.l.b16 %v489
        %v592 = vunpack.c.l.b16 %v490
        %v593 = vunpack.c.l.b16 %v491
        %v594 = vunpack.c.l.b16 %v492
        %v595 = vunpack.c.l.b16 %v493
        %v596 = vunpack.c.l.b16 %v494
        %v597 = vunpack.c.l.b16 %v495
        %v598 = vunpack.c.l.b16 %v496
        %v599 = vunpack.c.l.b16 %v497
        %v600 = vunpack.c.l.b16 %v498
        %v601 = vunpack.c.l.b16 %v499
        %v602 = vpack.c.b16 %v571, %v570
        %v603 = vpack.c.b16 %v573, %v572
        %v604 = vpack.c.b16 %v575, %v574
        %v605 = vpack.c.b16 %v577, %v576
        %v606 = vpack.c.b16 %v579, %v578
        %v607 = vpack.c.b16 %v581, %v580
        %v608 = vpack.c.b16 %v583, %v582
        %v609 = vpack.c.b16 %v585, %v584
        %v610 = vpack.c.b16 %v587, %v586
        %v611 = vpack.c.b16 %v589, %v588
        %v612 = vpack.c.b16 %v591, %v590
        %v613 = vpack.c.b16 %v593, %v592
        %v614 = vpack.c.b16 %v595, %v594
        %v615 = vpack.c.b16 %v597, %v596
        %v616 = vpack.c.b16 %v599, %v598
        %v617 = vpack.c.b16 %v601, %v600
        %v624 = vunpack.c.l.b16 %v500
        %v625 = vunpack.c.l.b16 %v501
        %v626 = vunpack.c.l.b16 %v502
        %v627 = vunpack.c.l.b16 %v503
        %v628 = vunpack.c.l.b16 %v504
        %v629 = vunpack.c.l.b16 %v505
        %v630 = vpack.c.b16 %v625, %v624
        %v631 = vpack.c.b16 %v627, %v626
        %v632 = vpack.c.b16 %v629, %v628
        %vm636 = vcmask 392192
        %v638 = vsel %vm636, %v602, 0
        %v641 = vsel %vm636, %v603, 0
        %v644 = vsel %vm636, %v604, 0
        %v647 = vsel %vm636, %v605, 0
        %v650 = vsel %vm636, %v606, 0
        %v653 = vsel %vm636, %v607, 0
        %v656 = vsel %vm636, %v608, 0
        %v659 = vsel %vm636, %v609, 0
        %v662 = vsel %vm636, %v610, 0
        %v665 = vsel %vm636, %v611, 0
        %v668 = vsel %vm636, %v612, 0
        %v671 = vsel %vm636, %v613, 0
        %v674 = vsel %vm636, %v614, 0
        %v677 = vsel %vm636, %v615, 0
        %v680 = vsel %vm636, %v616, 0
        %v683 = vsel %vm636, %v617, 0
        %685 = vmatpush.bf16.msra.mxu0 0
        %686 = vmatpush.bf16.msra.mxu0 0
        %687 = vmatpush.bf16.msra.mxu0 0
        %688 = vmatpush.bf16.msra.mxu0 0
        %689 = vmatpush.bf16.msra.mxu0 0
        %690 = vmatpush.bf16.msra.mxu0 %v632
        %691 = vmatpush.bf16.msra.mxu0 %v631
        %692 = vmatpush.bf16.msra.mxu0 %v630
        %693 = vmatmul.bf16.gmra.mxu0 %v638
        %v694 = vpop.f32.mrf.mxu0
        %v695 = vadd.f32 %v506, %v694
        %v696 = vpop.f32.mrf.mxu0
        %v697 = vadd.f32 %v507, %v696
        %698 = vmatmul.bf16.gmra.mxu0 %v641
        %v699 = vpop.f32.mrf.mxu0
        %v700 = vadd.f32 %v508, %v699
        %v701 = vpop.f32.mrf.mxu0
        %v702 = vadd.f32 %v509, %v701
        %703 = vmatmul.bf16.gmra.mxu0 %v644
        %v704 = vpop.f32.mrf.mxu0
        %v705 = vadd.f32 %v510, %v704
        %v706 = vpop.f32.mrf.mxu0
        %v707 = vadd.f32 %v511, %v706
        %708 = vmatmul.bf16.gmra.mxu0 %v647
        %v709 = vpop.f32.mrf.mxu0
        %v710 = vadd.f32 %v512, %v709
        %v711 = vpop.f32.mrf.mxu0
        %v712 = vadd.f32 %v513, %v711
        %713 = vmatmul.bf16.gmra.mxu0 %v650
        %v714 = vpop.f32.mrf.mxu0
        %v715 = vadd.f32 %v514, %v714
        %v716 = vpop.f32.mrf.mxu0
        %v717 = vadd.f32 %v515, %v716
        %718 = vmatmul.bf16.gmra.mxu0 %v653
        %v719 = vpop.f32.mrf.mxu0
        %v720 = vadd.f32 %v516, %v719
        %v721 = vpop.f32.mrf.mxu0
        %v722 = vadd.f32 %v517, %v721
        %723 = vmatmul.bf16.gmra.mxu0 %v656
        %v724 = vpop.f32.mrf.mxu0
        %v725 = vadd.f32 %v518, %v724
        %v726 = vpop.f32.mrf.mxu0
        %v727 = vadd.f32 %v519, %v726
        %728 = vmatmul.bf16.gmra.mxu0 %v659
        %v729 = vpop.f32.mrf.mxu0
        %v730 = vadd.f32 %v520, %v729
        %v731 = vpop.f32.mrf.mxu0
        %v732 = vadd.f32 %v521, %v731
        %733 = vmatmul.bf16.gmra.mxu0 %v662
        %v734 = vpop.f32.mrf.mxu0
        %v735 = vadd.f32 %v522, %v734
        %v736 = vpop.f32.mrf.mxu0
        %v737 = vadd.f32 %v523, %v736
        %738 = vmatmul.bf16.gmra.mxu0 %v665
        %v739 = vpop.f32.mrf.mxu0
        %v740 = vadd.f32 %v524, %v739
        %v741 = vpop.f32.mrf.mxu0
        %v742 = vadd.f32 %v525, %v741
        %743 = vmatmul.bf16.gmra.mxu0 %v668
        %v744 = vpop.f32.mrf.mxu0
        %v745 = vadd.f32 %v526, %v744
        %v746 = vpop.f32.mrf.mxu0
        %v747 = vadd.f32 %v527, %v746
        %748 = vmatmul.bf16.gmra.mxu0 %v671
        %v749 = vpop.f32.mrf.mxu0
        %v750 = vadd.f32 %v528, %v749
        %v751 = vpop.f32.mrf.mxu0
        %v752 = vadd.f32 %v529, %v751
        %753 = vmatmul.bf16.gmra.mxu0 %v674
        %v754 = vpop.f32.mrf.mxu0
        %v755 = vadd.f32 %v530, %v754
        %v756 = vpop.f32.mrf.mxu0
        %v757 = vadd.f32 %v531, %v756
        %758 = vmatmul.bf16.gmra.mxu0 %v677
        %v759 = vpop.f32.mrf.mxu0
        %v760 = vadd.f32 %v532, %v759
        %v761 = vpop.f32.mrf.mxu0
        %v762 = vadd.f32 %v533, %v761
        %763 = vmatmul.bf16.gmra.mxu0 %v680
        %v764 = vpop.f32.mrf.mxu0
        %v765 = vadd.f32 %v534, %v764
        %v766 = vpop.f32.mrf.mxu0
        %v767 = vadd.f32 %v535, %v766
        %768 = vmatmul.bf16.gmra.mxu0 %v683
        %v769 = vpop.f32.mrf.mxu0
        %v770 = vadd.f32 %v536, %v769
        %v771 = vpop.f32.mrf.mxu0
        %v772 = vadd.f32 %v537, %v771
        %773 = vdwg.mxu0
        %v774 = vld [vmem:[%s449] sm:$0xf]
        %v775 = vld [vmem:[%s449 + $0x4] sm:$0xf]
        %v776 = vld [vmem:[%s449 + $0x8] sm:$0x1]
        %v777 = vld [vmem:[%s6] sm:$0xf]
        %v778 = vld [vmem:[%s6 + $0x4] sm:$0xf]
        %v779 = vld [vmem:[%s6 + $0x8] sm:$0xf]
        %v780 = vld [vmem:[%s6 + $0xc] sm:$0xf]
        %v781 = vld [vmem:[%s7] sm:$0xff]
        %v782 = vld [vmem:[%s7 + $0x8] sm:$0xff]
        %v783 = vld [vmem:[%s7 + $0x10] sm:$0x1]
        %v787 = vunpack.c.l.b16 %v774
        %v788 = vunpack.c.l.b16 %v775
        %v789 = vunpack.c.l.b16 %v776
        %v790 = vpack.c.b16 %v788, %v787
        %v791 = vpack.c.b16 %v789, %v789
        %v796 = vunpack.c.l.b16 %v777
        %v797 = vunpack.c.l.b16 %v778
        %v798 = vunpack.c.l.b16 %v779
        %v799 = vunpack.c.l.b16 %v780
        %v800 = vpack.c.b16 %v797, %v796
        %v801 = vpack.c.b16 %v799, %v798
        %vm804 = vcmask 261120
        %v806 = vsel %vm804, %v790, 0
        %v809 = vsel %vm804, %v791, 0
        %811 = vmatpush.bf16.msra.mxu0 0
        %812 = vmatpush.bf16.msra.mxu0 0
        %813 = vmatpush.bf16.msra.mxu0 0
        %814 = vmatpush.bf16.msra.mxu0 0
        %815 = vmatpush.bf16.msra.mxu0 0
        %816 = vmatpush.bf16.msra.mxu0 0
        %817 = vmatpush.bf16.msra.mxu0 %v801
        %818 = vmatpush.bf16.msra.mxu0 %v800
        %819 = vmatmul.bf16.gmra.mxu0 %v806
        %v820 = vpop.f32.mrf.mxu0
        %v821 = vadd.f32 %v781, %v820
        %v822 = vpop.f32.mrf.mxu0
        %v823 = vadd.f32 %v782, %v822
        %824 = vmatmul.bf16.gmra.mxu0 %v809
        %v825 = vpop.f32.mrf.mxu0
        %v826 = vadd.f32 %v783, %v825
        %v827 = vpop.f32.mrf.mxu0
        %828 = vdwg.mxu0
        %v829 = vld [vmem:[%s458] sm:$0xff]
        %v830 = vld [vmem:[%s458 + $0x8] sm:$0xff]
        %v831 = vld [vmem:[%s458 + $0x10] sm:$0xff]
        %v832 = vld [vmem:[%s458 + $0x18] sm:$0xff]
        %v833 = vld [vmem:[%s458 + $0x20] sm:$0xff]
        %v834 = vld [vmem:[%s458 + $0x28] sm:$0xff]
        %v835 = vld [vmem:[%s458 + $0x30] sm:$0xff]
        %v836 = vld [vmem:[%s458 + $0x38] sm:$0xff]
        %v837 = vld [vmem:[%s458 + $0x40] sm:$0xff]
        %v838 = vld [vmem:[%s458 + $0x48] sm:$0xff]
        %v839 = vld [vmem:[%s458 + $0x50] sm:$0xff]
        %v840 = vld [vmem:[%s458 + $0x58] sm:$0xff]
        %v841 = vld [vmem:[%s458 + $0x60] sm:$0xff]
        %v842 = vld [vmem:[%s458 + $0x68] sm:$0xff]
        %v843 = vld [vmem:[%s458 + $0x70] sm:$0xff]
        %v844 = vld [vmem:[%s458 + $0x78] sm:$0xff]
        %v845 = vld [vmem:[%s458 + $0x80] sm:$0xff]
        %v846 = vld [vmem:[%s458 + $0x88] sm:$0xff]
        %v847 = vld [vmem:[%s458 + $0x90] sm:$0xff]
        %v848 = vld [vmem:[%s458 + $0x98] sm:$0xff]
        %v849 = vld [vmem:[%s458 + $0xa0] sm:$0xff]
        %v850 = vld [vmem:[%s458 + $0xa8] sm:$0xff]
        %v851 = vld [vmem:[%s458 + $0xb0] sm:$0xff]
        %v852 = vld [vmem:[%s458 + $0xb8] sm:$0xff]
        %v853 = vld [vmem:[%s458 + $0xc0] sm:$0xff]
        %v854 = vld [vmem:[%s458 + $0xc8] sm:$0xff]
        %v855 = vld [vmem:[%s458 + $0xd0] sm:$0xff]
        %v856 = vld [vmem:[%s458 + $0xd8] sm:$0xff]
        %v857 = vld [vmem:[%s458 + $0xe0] sm:$0xff]
        %v858 = vld [vmem:[%s458 + $0xe8] sm:$0xff]
        %v859 = vld [vmem:[%s458 + $0xf0] sm:$0xff]
        %v860 = vld [vmem:[%s458 + $0xf8] sm:$0xff]
        %v861 = vld [vmem:[%s3] sm:$0x1]
        %863 = vset.pattern.permute.xlu0 0
        %864 = vperm.xlu0 %863, %v829
        %v865 = vpop.permute.xlu0 %864
        %868 = vset.pattern.permute.xlu0 0
        %869 = vperm.xlu0 %868, %v830
        %v870 = vpop.permute.xlu0 %869
        %873 = vset.pattern.permute.xlu0 0
        %874 = vperm.xlu0 %873, %v831
        %v875 = vpop.permute.xlu0 %874
        %878 = vset.pattern.permute.xlu0 0
        %879 = vperm.xlu0 %878, %v832
        %v880 = vpop.permute.xlu0 %879
        %883 = vset.pattern.permute.xlu0 0
        %884 = vperm.xlu0 %883, %v833
        %v885 = vpop.permute.xlu0 %884
        %888 = vset.pattern.permute.xlu0 0
        %889 = vperm.xlu0 %888, %v834
        %v890 = vpop.permute.xlu0 %889
        %893 = vset.pattern.permute.xlu0 0
        %894 = vperm.xlu0 %893, %v835
        %v895 = vpop.permute.xlu0 %894
        %898 = vset.pattern.permute.xlu0 0
        %899 = vperm.xlu0 %898, %v836
        %v900 = vpop.permute.xlu0 %899
        %903 = vset.pattern.permute.xlu0 0
        %904 = vperm.xlu0 %903, %v837
        %v905 = vpop.permute.xlu0 %904
        %908 = vset.pattern.permute.xlu0 0
        %909 = vperm.xlu0 %908, %v838
        %v910 = vpop.permute.xlu0 %909
        %913 = vset.pattern.permute.xlu0 0
        %914 = vperm.xlu0 %913, %v839
        %v915 = vpop.permute.xlu0 %914
        %918 = vset.pattern.permute.xlu0 0
        %919 = vperm.xlu0 %918, %v840
        %v920 = vpop.permute.xlu0 %919
        %923 = vset.pattern.permute.xlu0 0
        %924 = vperm.xlu0 %923, %v841
        %v925 = vpop.permute.xlu0 %924
        %928 = vset.pattern.permute.xlu0 0
        %929 = vperm.xlu0 %928, %v842
        %v930 = vpop.permute.xlu0 %929
        %933 = vset.pattern.permute.xlu0 0
        %934 = vperm.xlu0 %933, %v843
        %v935 = vpop.permute.xlu0 %934
        %938 = vset.pattern.permute.xlu0 0
        %939 = vperm.xlu0 %938, %v844
        %v940 = vpop.permute.xlu0 %939
        %943 = vset.pattern.permute.xlu0 0
        %944 = vperm.xlu0 %943, %v845
        %v945 = vpop.permute.xlu0 %944
        %948 = vset.pattern.permute.xlu0 0
        %949 = vperm.xlu0 %948, %v846
        %v950 = vpop.permute.xlu0 %949
        %953 = vset.pattern.permute.xlu0 0
        %954 = vperm.xlu0 %953, %v847
        %v955 = vpop.permute.xlu0 %954
        %958 = vset.pattern.permute.xlu0 0
        %959 = vperm.xlu0 %958, %v848
        %v960 = vpop.permute.xlu0 %959
        %963 = vset.pattern.permute.xlu0 0
        %964 = vperm.xlu0 %963, %v849
        %v965 = vpop.permute.xlu0 %964
        %968 = vset.pattern.permute.xlu0 0
        %969 = vperm.xlu0 %968, %v850
        %v970 = vpop.permute.xlu0 %969
        %973 = vset.pattern.permute.xlu0 0
        %974 = vperm.xlu0 %973, %v851
        %v975 = vpop.permute.xlu0 %974
        %978 = vset.pattern.permute.xlu0 0
        %979 = vperm.xlu0 %978, %v852
        %v980 = vpop.permute.xlu0 %979
        %983 = vset.pattern.permute.xlu0 0
        %984 = vperm.xlu0 %983, %v853
        %v985 = vpop.permute.xlu0 %984
        %988 = vset.pattern.permute.xlu0 0
        %989 = vperm.xlu0 %988, %v854
        %v990 = vpop.permute.xlu0 %989
        %993 = vset.pattern.permute.xlu0 0
        %994 = vperm.xlu0 %993, %v855
        %v995 = vpop.permute.xlu0 %994
        %998 = vset.pattern.permute.xlu0 0
        %999 = vperm.xlu0 %998, %v856
        %v1000 = vpop.permute.xlu0 %999
        %1003 = vset.pattern.permute.xlu0 0
        %1004 = vperm.xlu0 %1003, %v857
        %v1005 = vpop.permute.xlu0 %1004
        %1008 = vset.pattern.permute.xlu0 0
        %1009 = vperm.xlu0 %1008, %v858
        %v1010 = vpop.permute.xlu0 %1009
        %1013 = vset.pattern.permute.xlu0 0
        %1014 = vperm.xlu0 %1013, %v859
        %v1015 = vpop.permute.xlu0 %1014
        %1018 = vset.pattern.permute.xlu0 0
        %1019 = vperm.xlu0 %1018, %v860
        %v1020 = vpop.permute.xlu0 %1019
        %v1022 = vperm.slane %v861, 0
        %v1023 = vsub.f32 %v865, %v1022
        %v1024 = vsub.f32 %v870, %v1022
        %v1025 = vsub.f32 %v875, %v1022
        %v1026 = vsub.f32 %v880, %v1022
        %v1027 = vsub.f32 %v885, %v1022
        %v1028 = vsub.f32 %v890, %v1022
        %v1029 = vsub.f32 %v895, %v1022
        %v1030 = vsub.f32 %v900, %v1022
        %v1031 = vsub.f32 %v905, %v1022
        %v1032 = vsub.f32 %v910, %v1022
        %v1033 = vsub.f32 %v915, %v1022
        %v1034 = vsub.f32 %v920, %v1022
        %v1035 = vsub.f32 %v925, %v1022
        %v1036 = vsub.f32 %v930, %v1022
        %v1037 = vsub.f32 %v935, %v1022
        %v1038 = vsub.f32 %v940, %v1022
        %v1039 = vsub.f32 %v945, %v1022
        %v1040 = vsub.f32 %v950, %v1022
        %v1041 = vsub.f32 %v955, %v1022
        %v1042 = vsub.f32 %v960, %v1022
        %v1043 = vsub.f32 %v965, %v1022
        %v1044 = vsub.f32 %v970, %v1022
        %v1045 = vsub.f32 %v975, %v1022
        %v1046 = vsub.f32 %v980, %v1022
        %v1047 = vsub.f32 %v985, %v1022
        %v1048 = vsub.f32 %v990, %v1022
        %v1049 = vsub.f32 %v995, %v1022
        %v1050 = vsub.f32 %v1000, %v1022
        %v1051 = vsub.f32 %v1005, %v1022
        %v1052 = vsub.f32 %v1010, %v1022
        %v1053 = vsub.f32 %v1015, %v1022
        %v1054 = vsub.f32 %v1020, %v1022
        %v1055 = vld [vmem:[%s3 + $0x1] sm:$0x1]
        %1056 = vset.pattern.permute.xlu0 1
        %1057 = vperm.xlu0 %1056, %v829
        %v1058 = vpop.permute.xlu0 %1057
        %1060 = vset.pattern.permute.xlu0 1
        %1061 = vperm.xlu0 %1060, %v830
        %v1062 = vpop.permute.xlu0 %1061
        %1064 = vset.pattern.permute.xlu0 1
        %1065 = vperm.xlu0 %1064, %v831
        %v1066 = vpop.permute.xlu0 %1065
        %1068 = vset.pattern.permute.xlu0 1
        %1069 = vperm.xlu0 %1068, %v832
        %v1070 = vpop.permute.xlu0 %1069
        %1072 = vset.pattern.permute.xlu0 1
        %1073 = vperm.xlu0 %1072, %v833
        %v1074 = vpop.permute.xlu0 %1073
        %1076 = vset.pattern.permute.xlu0 1
        %1077 = vperm.xlu0 %1076, %v834
        %v1078 = vpop.permute.xlu0 %1077
        %1080 = vset.pattern.permute.xlu0 1
        %1081 = vperm.xlu0 %1080, %v835
        %v1082 = vpop.permute.xlu0 %1081
        %1084 = vset.pattern.permute.xlu0 1
        %1085 = vperm.xlu0 %1084, %v836
        %v1086 = vpop.permute.xlu0 %1085
        %1088 = vset.pattern.permute.xlu0 1
        %1089 = vperm.xlu0 %1088, %v837
        %v1090 = vpop.permute.xlu0 %1089
        %1092 = vset.pattern.permute.xlu0 1
        %1093 = vperm.xlu0 %1092, %v838
        %v1094 = vpop.permute.xlu0 %1093
        %1096 = vset.pattern.permute.xlu0 1
        %1097 = vperm.xlu0 %1096, %v839
        %v1098 = vpop.permute.xlu0 %1097
        %1100 = vset.pattern.permute.xlu0 1
        %1101 = vperm.xlu0 %1100, %v840
        %v1102 = vpop.permute.xlu0 %1101
        %1104 = vset.pattern.permute.xlu0 1
        %1105 = vperm.xlu0 %1104, %v841
        %v1106 = vpop.permute.xlu0 %1105
        %1108 = vset.pattern.permute.xlu0 1
        %1109 = vperm.xlu0 %1108, %v842
        %v1110 = vpop.permute.xlu0 %1109
        %1112 = vset.pattern.permute.xlu0 1
        %1113 = vperm.xlu0 %1112, %v843
        %v1114 = vpop.permute.xlu0 %1113
        %1116 = vset.pattern.permute.xlu0 1
        %1117 = vperm.xlu0 %1116, %v844
        %v1118 = vpop.permute.xlu0 %1117
        %1120 = vset.pattern.permute.xlu0 1
        %1121 = vperm.xlu0 %1120, %v845
        %v1122 = vpop.permute.xlu0 %1121
        %1124 = vset.pattern.permute.xlu0 1
        %1125 = vperm.xlu0 %1124, %v846
        %v1126 = vpop.permute.xlu0 %1125
        %1128 = vset.pattern.permute.xlu0 1
        %1129 = vperm.xlu0 %1128, %v847
        %v1130 = vpop.permute.xlu0 %1129
        %1132 = vset.pattern.permute.xlu0 1
        %1133 = vperm.xlu0 %1132, %v848
        %v1134 = vpop.permute.xlu0 %1133
        %1136 = vset.pattern.permute.xlu0 1
        %1137 = vperm.xlu0 %1136, %v849
        %v1138 = vpop.permute.xlu0 %1137
        %1140 = vset.pattern.permute.xlu0 1
        %1141 = vperm.xlu0 %1140, %v850
        %v1142 = vpop.permute.xlu0 %1141
        %1144 = vset.pattern.permute.xlu0 1
        %1145 = vperm.xlu0 %1144, %v851
        %v1146 = vpop.permute.xlu0 %1145
        %1148 = vset.pattern.permute.xlu0 1
        %1149 = vperm.xlu0 %1148, %v852
        %v1150 = vpop.permute.xlu0 %1149
        %1152 = vset.pattern.permute.xlu0 1
        %1153 = vperm.xlu0 %1152, %v853
        %v1154 = vpop.permute.xlu0 %1153
        %1156 = vset.pattern.permute.xlu0 1
        %1157 = vperm.xlu0 %1156, %v854
        %v1158 = vpop.permute.xlu0 %1157
        %1160 = vset.pattern.permute.xlu0 1
        %1161 = vperm.xlu0 %1160, %v855
        %v1162 = vpop.permute.xlu0 %1161
        %1164 = vset.pattern.permute.xlu0 1
        %1165 = vperm.xlu0 %1164, %v856
        %v1166 = vpop.permute.xlu0 %1165
        %1168 = vset.pattern.permute.xlu0 1
        %1169 = vperm.xlu0 %1168, %v857
        %v1170 = vpop.permute.xlu0 %1169
        %1172 = vset.pattern.permute.xlu0 1
        %1173 = vperm.xlu0 %1172, %v858
        %v1174 = vpop.permute.xlu0 %1173
        %1176 = vset.pattern.permute.xlu0 1
        %1177 = vperm.xlu0 %1176, %v859
        %v1178 = vpop.permute.xlu0 %1177
        %1180 = vset.pattern.permute.xlu0 1
        %1181 = vperm.xlu0 %1180, %v860
        %v1182 = vpop.permute.xlu0 %1181
        %v1184 = vperm.slane %v1055, 0
        %v1185 = vsub.f32 %v1058, %v1184
        %v1186 = vsub.f32 %v1062, %v1184
        %v1187 = vsub.f32 %v1066, %v1184
        %v1188 = vsub.f32 %v1070, %v1184
        %v1189 = vsub.f32 %v1074, %v1184
        %v1190 = vsub.f32 %v1078, %v1184
        %v1191 = vsub.f32 %v1082, %v1184
        %v1192 = vsub.f32 %v1086, %v1184
        %v1193 = vsub.f32 %v1090, %v1184
        %v1194 = vsub.f32 %v1094, %v1184
        %v1195 = vsub.f32 %v1098, %v1184
        %v1196 = vsub.f32 %v1102, %v1184
        %v1197 = vsub.f32 %v1106, %v1184
        %v1198 = vsub.f32 %v1110, %v1184
        %v1199 = vsub.f32 %v1114, %v1184
        %v1200 = vsub.f32 %v1118, %v1184
        %v1201 = vsub.f32 %v1122, %v1184
        %v1202 = vsub.f32 %v1126, %v1184
        %v1203 = vsub.f32 %v1130, %v1184
        %v1204 = vsub.f32 %v1134, %v1184
        %v1205 = vsub.f32 %v1138, %v1184
        %v1206 = vsub.f32 %v1142, %v1184
        %v1207 = vsub.f32 %v1146, %v1184
        %v1208 = vsub.f32 %v1150, %v1184
        %v1209 = vsub.f32 %v1154, %v1184
        %v1210 = vsub.f32 %v1158, %v1184
        %v1211 = vsub.f32 %v1162, %v1184
        %v1212 = vsub.f32 %v1166, %v1184
        %v1213 = vsub.f32 %v1170, %v1184
        %v1214 = vsub.f32 %v1174, %v1184
        %v1215 = vsub.f32 %v1178, %v1184
        %v1216 = vsub.f32 %v1182, %v1184
        %v1217 = vmul.f32 %v1023, %v1023
        %v1218 = vmul.f32 %v1024, %v1024
        %v1219 = vmul.f32 %v1025, %v1025
        %v1220 = vmul.f32 %v1026, %v1026
        %v1221 = vmul.f32 %v1027, %v1027
        %v1222 = vmul.f32 %v1028, %v1028
        %v1223 = vmul.f32 %v1029, %v1029
        %v1224 = vmul.f32 %v1030, %v1030
        %v1225 = vmul.f32 %v1031, %v1031
        %v1226 = vmul.f32 %v1032, %v1032
        %v1227 = vmul.f32 %v1033, %v1033
        %v1228 = vmul.f32 %v1034, %v1034
        %v1229 = vmul.f32 %v1035, %v1035
        %v1230 = vmul.f32 %v1036, %v1036
        %v1231 = vmul.f32 %v1037, %v1037
        %v1232 = vmul.f32 %v1038, %v1038
        %v1233 = vmul.f32 %v1039, %v1039
        %v1234 = vmul.f32 %v1040, %v1040
        %v1235 = vmul.f32 %v1041, %v1041
        %v1236 = vmul.f32 %v1042, %v1042
        %v1237 = vmul.f32 %v1043, %v1043
        %v1238 = vmul.f32 %v1044, %v1044
        %v1239 = vmul.f32 %v1045, %v1045
        %v1240 = vmul.f32 %v1046, %v1046
        %v1241 = vmul.f32 %v1047, %v1047
        %v1242 = vmul.f32 %v1048, %v1048
        %v1243 = vmul.f32 %v1049, %v1049
        %v1244 = vmul.f32 %v1050, %v1050
        %v1245 = vmul.f32 %v1051, %v1051
        %v1246 = vmul.f32 %v1052, %v1052
        %v1247 = vmul.f32 %v1053, %v1053
        %v1248 = vmul.f32 %v1054, %v1054
        %v1249 = vmul.f32 %v1185, %v1185
        %v1250 = vmul.f32 %v1186, %v1186
        %v1251 = vmul.f32 %v1187, %v1187
        %v1252 = vmul.f32 %v1188, %v1188
        %v1253 = vmul.f32 %v1189, %v1189
        %v1254 = vmul.f32 %v1190, %v1190
        %v1255 = vmul.f32 %v1191, %v1191
        %v1256 = vmul.f32 %v1192, %v1192
        %v1257 = vmul.f32 %v1193, %v1193
        %v1258 = vmul.f32 %v1194, %v1194
        %v1259 = vmul.f32 %v1195, %v1195
        %v1260 = vmul.f32 %v1196, %v1196
        %v1261 = vmul.f32 %v1197, %v1197
        %v1262 = vmul.f32 %v1198, %v1198
        %v1263 = vmul.f32 %v1199, %v1199
        %v1264 = vmul.f32 %v1200, %v1200
        %v1265 = vmul.f32 %v1201, %v1201
        %v1266 = vmul.f32 %v1202, %v1202
        %v1267 = vmul.f32 %v1203, %v1203
        %v1268 = vmul.f32 %v1204, %v1204
        %v1269 = vmul.f32 %v1205, %v1205
        %v1270 = vmul.f32 %v1206, %v1206
        %v1271 = vmul.f32 %v1207, %v1207
        %v1272 = vmul.f32 %v1208, %v1208
        %v1273 = vmul.f32 %v1209, %v1209
        %v1274 = vmul.f32 %v1210, %v1210
        %v1275 = vmul.f32 %v1211, %v1211
        %v1276 = vmul.f32 %v1212, %v1212
        %v1277 = vmul.f32 %v1213, %v1213
        %v1278 = vmul.f32 %v1214, %v1214
        %v1279 = vmul.f32 %v1215, %v1215
        %v1280 = vmul.f32 %v1216, %v1216
        %v1281 = vadd.f32 %v1217, %v1249
        %v1282 = vadd.f32 %v1218, %v1250
        %v1283 = vadd.f32 %v1219, %v1251
        %v1284 = vadd.f32 %v1220, %v1252
        %v1285 = vadd.f32 %v1221, %v1253
        %v1286 = vadd.f32 %v1222, %v1254
        %v1287 = vadd.f32 %v1223, %v1255
        %v1288 = vadd.f32 %v1224, %v1256
        %v1289 = vadd.f32 %v1225, %v1257
        %v1290 = vadd.f32 %v1226, %v1258
        %v1291 = vadd.f32 %v1227, %v1259
        %v1292 = vadd.f32 %v1228, %v1260
        %v1293 = vadd.f32 %v1229, %v1261
        %v1294 = vadd.f32 %v1230, %v1262
        %v1295 = vadd.f32 %v1231, %v1263
        %v1296 = vadd.f32 %v1232, %v1264
        %v1297 = vadd.f32 %v1233, %v1265
        %v1298 = vadd.f32 %v1234, %v1266
        %v1299 = vadd.f32 %v1235, %v1267
        %v1300 = vadd.f32 %v1236, %v1268
        %v1301 = vadd.f32 %v1237, %v1269
        %v1302 = vadd.f32 %v1238, %v1270
        %v1303 = vadd.f32 %v1239, %v1271
        %v1304 = vadd.f32 %v1240, %v1272
        %v1305 = vadd.f32 %v1241, %v1273
        %v1306 = vadd.f32 %v1242, %v1274
        %v1307 = vadd.f32 %v1243, %v1275
        %v1308 = vadd.f32 %v1244, %v1276
        %v1309 = vadd.f32 %v1245, %v1277
        %v1310 = vadd.f32 %v1246, %v1278
        %v1311 = vadd.f32 %v1247, %v1279
        %v1312 = vadd.f32 %v1248, %v1280
        %vm1313 = vcmp.gt.f32.partialorder %v1281, 0.25
        %vm1314 = vcmp.gt.f32.partialorder %v1282, 0.25
        %vm1315 = vcmp.gt.f32.partialorder %v1283, 0.25
        %vm1316 = vcmp.gt.f32.partialorder %v1284, 0.25
        %vm1317 = vcmp.gt.f32.partialorder %v1285, 0.25
        %vm1318 = vcmp.gt.f32.partialorder %v1286, 0.25
        %vm1319 = vcmp.gt.f32.partialorder %v1287, 0.25
        %vm1320 = vcmp.gt.f32.partialorder %v1288, 0.25
        %vm1321 = vcmp.gt.f32.partialorder %v1289, 0.25
        %vm1322 = vcmp.gt.f32.partialorder %v1290, 0.25
        %vm1323 = vcmp.gt.f32.partialorder %v1291, 0.25
        %vm1324 = vcmp.gt.f32.partialorder %v1292, 0.25
        %vm1325 = vcmp.gt.f32.partialorder %v1293, 0.25
        %vm1326 = vcmp.gt.f32.partialorder %v1294, 0.25
        %vm1327 = vcmp.gt.f32.partialorder %v1295, 0.25
        %vm1328 = vcmp.gt.f32.partialorder %v1296, 0.25
        %vm1329 = vcmp.gt.f32.partialorder %v1297, 0.25
        %vm1330 = vcmp.gt.f32.partialorder %v1298, 0.25
        %vm1331 = vcmp.gt.f32.partialorder %v1299, 0.25
        %vm1332 = vcmp.gt.f32.partialorder %v1300, 0.25
        %vm1333 = vcmp.gt.f32.partialorder %v1301, 0.25
        %vm1334 = vcmp.gt.f32.partialorder %v1302, 0.25
        %vm1335 = vcmp.gt.f32.partialorder %v1303, 0.25
        %vm1336 = vcmp.gt.f32.partialorder %v1304, 0.25
        %vm1337 = vcmp.gt.f32.partialorder %v1305, 0.25
        %vm1338 = vcmp.gt.f32.partialorder %v1306, 0.25
        %vm1339 = vcmp.gt.f32.partialorder %v1307, 0.25
        %vm1340 = vcmp.gt.f32.partialorder %v1308, 0.25
        %vm1341 = vcmp.gt.f32.partialorder %v1309, 0.25
        %vm1342 = vcmp.gt.f32.partialorder %v1310, 0.25
        %vm1343 = vcmp.gt.f32.partialorder %v1311, 0.25
        %vm1344 = vcmp.gt.f32.partialorder %v1312, 0.25
        %v1345 = vsel %vm1313, -1e+30, 0.0
        %v1346 = vsel %vm1314, -1e+30, 0.0
        %v1347 = vsel %vm1315, -1e+30, 0.0
        %v1348 = vsel %vm1316, -1e+30, 0.0
        %v1349 = vsel %vm1317, -1e+30, 0.0
        %v1350 = vsel %vm1318, -1e+30, 0.0
        %v1351 = vsel %vm1319, -1e+30, 0.0
        %v1352 = vsel %vm1320, -1e+30, 0.0
        %v1353 = vsel %vm1321, -1e+30, 0.0
        %v1354 = vsel %vm1322, -1e+30, 0.0
        %v1355 = vsel %vm1323, -1e+30, 0.0
        %v1356 = vsel %vm1324, -1e+30, 0.0
        %v1357 = vsel %vm1325, -1e+30, 0.0
        %v1358 = vsel %vm1326, -1e+30, 0.0
        %v1359 = vsel %vm1327, -1e+30, 0.0
        %v1360 = vsel %vm1328, -1e+30, 0.0
        %v1361 = vsel %vm1329, -1e+30, 0.0
        %v1362 = vsel %vm1330, -1e+30, 0.0
        %v1363 = vsel %vm1331, -1e+30, 0.0
        %v1364 = vsel %vm1332, -1e+30, 0.0
        %v1365 = vsel %vm1333, -1e+30, 0.0
        %v1366 = vsel %vm1334, -1e+30, 0.0
        %v1367 = vsel %vm1335, -1e+30, 0.0
        %v1368 = vsel %vm1336, -1e+30, 0.0
        %v1369 = vsel %vm1337, -1e+30, 0.0
        %v1370 = vsel %vm1338, -1e+30, 0.0
        %v1371 = vsel %vm1339, -1e+30, 0.0
        %v1372 = vsel %vm1340, -1e+30, 0.0
        %v1373 = vsel %vm1341, -1e+30, 0.0
        %v1374 = vsel %vm1342, -1e+30, 0.0
        %v1375 = vsel %vm1343, -1e+30, 0.0
        %v1376 = vsel %vm1344, -1e+30, 0.0
        %v1377 = vld [vmem:[%s3 + $0x2] sm:$0x1]
        %v1378 = vperm.slane %v1377, 0
        %v1379 = vmul.f32 %v1345, %v1378
        %v1380 = vmul.f32 %v1346, %v1378
        %v1381 = vmul.f32 %v1347, %v1378
        %v1382 = vmul.f32 %v1348, %v1378
        %v1383 = vmul.f32 %v1349, %v1378
        %v1384 = vmul.f32 %v1350, %v1378
        %v1385 = vmul.f32 %v1351, %v1378
        %v1386 = vmul.f32 %v1352, %v1378
        %v1387 = vmul.f32 %v1353, %v1378
        %v1388 = vmul.f32 %v1354, %v1378
        %v1389 = vmul.f32 %v1355, %v1378
        %v1390 = vmul.f32 %v1356, %v1378
        %v1391 = vmul.f32 %v1357, %v1378
        %v1392 = vmul.f32 %v1358, %v1378
        %v1393 = vmul.f32 %v1359, %v1378
        %v1394 = vmul.f32 %v1360, %v1378
        %v1395 = vmul.f32 %v1361, %v1378
        %v1396 = vmul.f32 %v1362, %v1378
        %v1397 = vmul.f32 %v1363, %v1378
        %v1398 = vmul.f32 %v1364, %v1378
        %v1399 = vmul.f32 %v1365, %v1378
        %v1400 = vmul.f32 %v1366, %v1378
        %v1401 = vmul.f32 %v1367, %v1378
        %v1402 = vmul.f32 %v1368, %v1378
        %v1403 = vmul.f32 %v1369, %v1378
        %v1404 = vmul.f32 %v1370, %v1378
        %v1405 = vmul.f32 %v1371, %v1378
        %v1406 = vmul.f32 %v1372, %v1378
        %v1407 = vmul.f32 %v1373, %v1378
        %v1408 = vmul.f32 %v1374, %v1378
        %v1409 = vmul.f32 %v1375, %v1378
        %v1410 = vmul.f32 %v1376, %v1378
        %v1411 = vpack.c.bf16 %v695, %v695
        %v1412 = vpack.c.bf16 %v697, %v697
        %v1413 = vpack.c.bf16 %v700, %v700
        %v1414 = vpack.c.bf16 %v702, %v702
        %v1415 = vpack.c.bf16 %v705, %v705
        %v1416 = vpack.c.bf16 %v707, %v707
        %v1417 = vpack.c.bf16 %v710, %v710
        %v1418 = vpack.c.bf16 %v712, %v712
        %v1419 = vpack.c.bf16 %v715, %v715
        %v1420 = vpack.c.bf16 %v717, %v717
        %v1421 = vpack.c.bf16 %v720, %v720
        %v1422 = vpack.c.bf16 %v722, %v722
        %v1423 = vpack.c.bf16 %v725, %v725
        %v1424 = vpack.c.bf16 %v727, %v727
        %v1425 = vpack.c.bf16 %v730, %v730
        %v1426 = vpack.c.bf16 %v732, %v732
        %v1427 = vpack.c.bf16 %v735, %v735
        %v1428 = vpack.c.bf16 %v737, %v737
        %v1429 = vpack.c.bf16 %v740, %v740
        %v1430 = vpack.c.bf16 %v742, %v742
        %v1431 = vpack.c.bf16 %v745, %v745
        %v1432 = vpack.c.bf16 %v747, %v747
        %v1433 = vpack.c.bf16 %v750, %v750
        %v1434 = vpack.c.bf16 %v752, %v752
        %v1435 = vpack.c.bf16 %v755, %v755
        %v1436 = vpack.c.bf16 %v757, %v757
        %v1437 = vpack.c.bf16 %v760, %v760
        %v1438 = vpack.c.bf16 %v762, %v762
        %v1439 = vpack.c.bf16 %v765, %v765
        %v1440 = vpack.c.bf16 %v767, %v767
        %v1441 = vpack.c.bf16 %v770, %v770
        %v1442 = vpack.c.bf16 %v772, %v772
        %v1443 = vpack.c.bf16 %v821, %v821
        %v1444 = vpack.c.bf16 %v823, %v823
        %v1445 = vpack.c.bf16 %v826, %v826
        %v1478 = vunpack.c.l.b16 %v1411
        %v1479 = vunpack.c.l.b16 %v1412
        %v1480 = vunpack.c.l.b16 %v1413
        %v1481 = vunpack.c.l.b16 %v1414
        %v1482 = vunpack.c.l.b16 %v1415
        %v1483 = vunpack.c.l.b16 %v1416
        %v1484 = vunpack.c.l.b16 %v1417
        %v1485 = vunpack.c.l.b16 %v1418
        %v1486 = vunpack.c.l.b16 %v1419
        %v1487 = vunpack.c.l.b16 %v1420
        %v1488 = vunpack.c.l.b16 %v1421
        %v1489 = vunpack.c.l.b16 %v1422
        %v1490 = vunpack.c.l.b16 %v1423
        %v1491 = vunpack.c.l.b16 %v1424
        %v1492 = vunpack.c.l.b16 %v1425
        %v1493 = vunpack.c.l.b16 %v1426
        %v1494 = vunpack.c.l.b16 %v1427
        %v1495 = vunpack.c.l.b16 %v1428
        %v1496 = vunpack.c.l.b16 %v1429
        %v1497 = vunpack.c.l.b16 %v1430
        %v1498 = vunpack.c.l.b16 %v1431
        %v1499 = vunpack.c.l.b16 %v1432
        %v1500 = vunpack.c.l.b16 %v1433
        %v1501 = vunpack.c.l.b16 %v1434
        %v1502 = vunpack.c.l.b16 %v1435
        %v1503 = vunpack.c.l.b16 %v1436
        %v1504 = vunpack.c.l.b16 %v1437
        %v1505 = vunpack.c.l.b16 %v1438
        %v1506 = vunpack.c.l.b16 %v1439
        %v1507 = vunpack.c.l.b16 %v1440
        %v1508 = vunpack.c.l.b16 %v1441
        %v1509 = vunpack.c.l.b16 %v1442
        %v1510 = vpack.c.b16 %v1479, %v1478
        %v1511 = vpack.c.b16 %v1481, %v1480
        %v1512 = vpack.c.b16 %v1483, %v1482
        %v1513 = vpack.c.b16 %v1485, %v1484
        %v1514 = vpack.c.b16 %v1487, %v1486
        %v1515 = vpack.c.b16 %v1489, %v1488
        %v1516 = vpack.c.b16 %v1491, %v1490
        %v1517 = vpack.c.b16 %v1493, %v1492
        %v1518 = vpack.c.b16 %v1495, %v1494
        %v1519 = vpack.c.b16 %v1497, %v1496
        %v1520 = vpack.c.b16 %v1499, %v1498
        %v1521 = vpack.c.b16 %v1501, %v1500
        %v1522 = vpack.c.b16 %v1503, %v1502
        %v1523 = vpack.c.b16 %v1505, %v1504
        %v1524 = vpack.c.b16 %v1507, %v1506
        %v1525 = vpack.c.b16 %v1509, %v1508
        %v1529 = vunpack.c.l.b16 %v1443
        %v1530 = vunpack.c.l.b16 %v1444
        %v1531 = vunpack.c.l.b16 %v1445
        %v1532 = vpack.c.b16 %v1530, %v1529
        %v1533 = vpack.c.b16 %v1531, %v1531
        %vm1534 = vcmask 64512
        %v1536 = vsel %vm1534, %v1510, 0
        %v1539 = vsel %vm1534, %v1511, 0
        %v1542 = vsel %vm1534, %v1512, 0
        %v1545 = vsel %vm1534, %v1513, 0
        %v1548 = vsel %vm1534, %v1514, 0
        %v1551 = vsel %vm1534, %v1515, 0
        %v1554 = vsel %vm1534, %v1516, 0
        %v1557 = vsel %vm1534, %v1517, 0
        %v1560 = vsel %vm1534, %v1518, 0
        %v1563 = vsel %vm1534, %v1519, 0
        %v1566 = vsel %vm1534, %v1520, 0
        %v1569 = vsel %vm1534, %v1521, 0
        %v1572 = vsel %vm1534, %v1522, 0
        %v1575 = vsel %vm1534, %v1523, 0
        %v1578 = vsel %vm1534, %v1524, 0
        %v1581 = vsel %vm1534, %v1525, 0
        %v1584 = vsel %vm1534, %v1532, 0
        %v1587 = vsel %vm1534, %v1533, 0
        %1589 = vmatpush.bf16.xpose.msra.mxu0 0
        %1590 = vmatpush.bf16.xpose.msra.mxu0 0
        %1591 = vmatpush.bf16.xpose.msra.mxu0 0
        %1592 = vmatpush.bf16.xpose.msra.mxu0 0
        %1593 = vmatpush.bf16.xpose.msra.mxu0 0
        %1594 = vmatpush.bf16.xpose.msra.mxu0 0
        %1595 = vmatpush.bf16.xpose.msra.mxu0 %v1587
        %1596 = vmatpush.bf16.xpose.msra.mxu0 %v1584
        %1597 = vmatmul.bf16.gmra.mxu0 %v1536
        %v1598 = vpop.f32.mrf.mxu0
        %v1599 = vadd.f32 %v1379, %v1598
        %v1600 = vpop.f32.mrf.mxu0
        %v1601 = vadd.f32 %v1380, %v1600
        %1602 = vmatmul.bf16.gmra.mxu0 %v1539
        %v1603 = vpop.f32.mrf.mxu0
        %v1604 = vadd.f32 %v1381, %v1603
        %v1605 = vpop.f32.mrf.mxu0
        %v1606 = vadd.f32 %v1382, %v1605
        %1607 = vmatmul.bf16.gmra.mxu0 %v1542
        %v1608 = vpop.f32.mrf.mxu0
        %v1609 = vadd.f32 %v1383, %v1608
        %v1610 = vpop.f32.mrf.mxu0
        %v1611 = vadd.f32 %v1384, %v1610
        %1612 = vmatmul.bf16.gmra.mxu0 %v1545
        %v1613 = vpop.f32.mrf.mxu0
        %v1614 = vadd.f32 %v1385, %v1613
        %v1615 = vpop.f32.mrf.mxu0
        %v1616 = vadd.f32 %v1386, %v1615
        %1617 = vmatmul.bf16.gmra.mxu0 %v1548
        %v1618 = vpop.f32.mrf.mxu0
        %v1619 = vadd.f32 %v1387, %v1618
        %v1620 = vpop.f32.mrf.mxu0
        %v1621 = vadd.f32 %v1388, %v1620
        %1622 = vmatmul.bf16.gmra.mxu0 %v1551
        %v1623 = vpop.f32.mrf.mxu0
        %v1624 = vadd.f32 %v1389, %v1623
        %v1625 = vpop.f32.mrf.mxu0
        %v1626 = vadd.f32 %v1390, %v1625
        %1627 = vmatmul.bf16.gmra.mxu0 %v1554
        %v1628 = vpop.f32.mrf.mxu0
        %v1629 = vadd.f32 %v1391, %v1628
        %v1630 = vpop.f32.mrf.mxu0
        %v1631 = vadd.f32 %v1392, %v1630
        %1632 = vmatmul.bf16.gmra.mxu0 %v1557
        %v1633 = vpop.f32.mrf.mxu0
        %v1634 = vadd.f32 %v1393, %v1633
        %v1635 = vpop.f32.mrf.mxu0
        %v1636 = vadd.f32 %v1394, %v1635
        %1637 = vmatmul.bf16.gmra.mxu0 %v1560
        %v1638 = vpop.f32.mrf.mxu0
        %v1639 = vadd.f32 %v1395, %v1638
        %v1640 = vpop.f32.mrf.mxu0
        %v1641 = vadd.f32 %v1396, %v1640
        %1642 = vmatmul.bf16.gmra.mxu0 %v1563
        %v1643 = vpop.f32.mrf.mxu0
        %v1644 = vadd.f32 %v1397, %v1643
        %v1645 = vpop.f32.mrf.mxu0
        %v1646 = vadd.f32 %v1398, %v1645
        %1647 = vmatmul.bf16.gmra.mxu0 %v1566
        %v1648 = vpop.f32.mrf.mxu0
        %v1649 = vadd.f32 %v1399, %v1648
        %v1650 = vpop.f32.mrf.mxu0
        %v1651 = vadd.f32 %v1400, %v1650
        %1652 = vmatmul.bf16.gmra.mxu0 %v1569
        %v1653 = vpop.f32.mrf.mxu0
        %v1654 = vadd.f32 %v1401, %v1653
        %v1655 = vpop.f32.mrf.mxu0
        %v1656 = vadd.f32 %v1402, %v1655
        %1657 = vmatmul.bf16.gmra.mxu0 %v1572
        %v1658 = vpop.f32.mrf.mxu0
        %v1659 = vadd.f32 %v1403, %v1658
        %v1660 = vpop.f32.mrf.mxu0
        %v1661 = vadd.f32 %v1404, %v1660
        %1662 = vmatmul.bf16.gmra.mxu0 %v1575
        %v1663 = vpop.f32.mrf.mxu0
        %v1664 = vadd.f32 %v1405, %v1663
        %v1665 = vpop.f32.mrf.mxu0
        %v1666 = vadd.f32 %v1406, %v1665
        %1667 = vmatmul.bf16.gmra.mxu0 %v1578
        %v1668 = vpop.f32.mrf.mxu0
        %v1669 = vadd.f32 %v1407, %v1668
        %v1670 = vpop.f32.mrf.mxu0
        %v1671 = vadd.f32 %v1408, %v1670
        %1672 = vmatmul.bf16.gmra.mxu0 %v1581
        %v1673 = vpop.f32.mrf.mxu0
        %v1674 = vadd.f32 %v1409, %v1673
        %v1675 = vpop.f32.mrf.mxu0
        %v1676 = vadd.f32 %v1410, %v1675
        %1677 = vdwg.mxu0
        %vm1678 = vcmask 138240
        %v1679 = vsel %vm1678, %v1599, -inf
        %1680 = vmax.xlane.f32.xlu0 %v1679
        %v1681 = vpop.xlane.xlu0 %1680
        %v1682 = vsel %vm1678, %v1601, -inf
        %1683 = vmax.xlane.f32.xlu0 %v1682
        %v1684 = vpop.xlane.xlu0 %1683
        %v1685 = vsel %vm1678, %v1604, -inf
        %1686 = vmax.xlane.f32.xlu0 %v1685
        %v1687 = vpop.xlane.xlu0 %1686
        %v1688 = vsel %vm1678, %v1606, -inf
        %1689 = vmax.xlane.f32.xlu0 %v1688
        %v1690 = vpop.xlane.xlu0 %1689
        %v1691 = vsel %vm1678, %v1609, -inf
        %1692 = vmax.xlane.f32.xlu0 %v1691
        %v1693 = vpop.xlane.xlu0 %1692
        %v1694 = vsel %vm1678, %v1611, -inf
        %1695 = vmax.xlane.f32.xlu0 %v1694
        %v1696 = vpop.xlane.xlu0 %1695
        %v1697 = vsel %vm1678, %v1614, -inf
        %1698 = vmax.xlane.f32.xlu0 %v1697
        %v1699 = vpop.xlane.xlu0 %1698
        %v1700 = vsel %vm1678, %v1616, -inf
        %1701 = vmax.xlane.f32.xlu0 %v1700
        %v1702 = vpop.xlane.xlu0 %1701
        %v1703 = vsel %vm1678, %v1619, -inf
        %1704 = vmax.xlane.f32.xlu0 %v1703
        %v1705 = vpop.xlane.xlu0 %1704
        %v1706 = vsel %vm1678, %v1621, -inf
        %1707 = vmax.xlane.f32.xlu0 %v1706
        %v1708 = vpop.xlane.xlu0 %1707
        %v1709 = vsel %vm1678, %v1624, -inf
        %1710 = vmax.xlane.f32.xlu0 %v1709
        %v1711 = vpop.xlane.xlu0 %1710
        %v1712 = vsel %vm1678, %v1626, -inf
        %1713 = vmax.xlane.f32.xlu0 %v1712
        %v1714 = vpop.xlane.xlu0 %1713
        %v1715 = vsel %vm1678, %v1629, -inf
        %1716 = vmax.xlane.f32.xlu0 %v1715
        %v1717 = vpop.xlane.xlu0 %1716
        %v1718 = vsel %vm1678, %v1631, -inf
        %1719 = vmax.xlane.f32.xlu0 %v1718
        %v1720 = vpop.xlane.xlu0 %1719
        %v1721 = vsel %vm1678, %v1634, -inf
        %1722 = vmax.xlane.f32.xlu0 %v1721
        %v1723 = vpop.xlane.xlu0 %1722
        %v1724 = vsel %vm1678, %v1636, -inf
        %1725 = vmax.xlane.f32.xlu0 %v1724
        %v1726 = vpop.xlane.xlu0 %1725
        %v1727 = vsel %vm1678, %v1639, -inf
        %1728 = vmax.xlane.f32.xlu0 %v1727
        %v1729 = vpop.xlane.xlu0 %1728
        %v1730 = vsel %vm1678, %v1641, -inf
        %1731 = vmax.xlane.f32.xlu0 %v1730
        %v1732 = vpop.xlane.xlu0 %1731
        %v1733 = vsel %vm1678, %v1644, -inf
        %1734 = vmax.xlane.f32.xlu0 %v1733
        %v1735 = vpop.xlane.xlu0 %1734
        %v1736 = vsel %vm1678, %v1646, -inf
        %1737 = vmax.xlane.f32.xlu0 %v1736
        %v1738 = vpop.xlane.xlu0 %1737
        %v1739 = vsel %vm1678, %v1649, -inf
        %1740 = vmax.xlane.f32.xlu0 %v1739
        %v1741 = vpop.xlane.xlu0 %1740
        %v1742 = vsel %vm1678, %v1651, -inf
        %1743 = vmax.xlane.f32.xlu0 %v1742
        %v1744 = vpop.xlane.xlu0 %1743
        %v1745 = vsel %vm1678, %v1654, -inf
        %1746 = vmax.xlane.f32.xlu0 %v1745
        %v1747 = vpop.xlane.xlu0 %1746
        %v1748 = vsel %vm1678, %v1656, -inf
        %1749 = vmax.xlane.f32.xlu0 %v1748
        %v1750 = vpop.xlane.xlu0 %1749
        %v1751 = vsel %vm1678, %v1659, -inf
        %1752 = vmax.xlane.f32.xlu0 %v1751
        %v1753 = vpop.xlane.xlu0 %1752
        %v1754 = vsel %vm1678, %v1661, -inf
        %1755 = vmax.xlane.f32.xlu0 %v1754
        %v1756 = vpop.xlane.xlu0 %1755
        %v1757 = vsel %vm1678, %v1664, -inf
        %1758 = vmax.xlane.f32.xlu0 %v1757
        %v1759 = vpop.xlane.xlu0 %1758
        %v1760 = vsel %vm1678, %v1666, -inf
        %1761 = vmax.xlane.f32.xlu0 %v1760
        %v1762 = vpop.xlane.xlu0 %1761
        %v1763 = vsel %vm1678, %v1669, -inf
        %1764 = vmax.xlane.f32.xlu0 %v1763
        %v1765 = vpop.xlane.xlu0 %1764
        %v1766 = vsel %vm1678, %v1671, -inf
        %1767 = vmax.xlane.f32.xlu0 %v1766
        %v1768 = vpop.xlane.xlu0 %1767
        %v1769 = vsel %vm1678, %v1674, -inf
        %1770 = vmax.xlane.f32.xlu0 %v1769
        %v1771 = vpop.xlane.xlu0 %1770
        %v1772 = vsel %vm1678, %v1676, -inf
        %1773 = vmax.xlane.f32.xlu0 %v1772
        %v1774 = vpop.xlane.xlu0 %1773
        %v1775 = vsub.f32 %v1599, %v1681
        %v1776 = vsub.f32 %v1601, %v1684
        %v1777 = vsub.f32 %v1604, %v1687
        %v1778 = vsub.f32 %v1606, %v1690
        %v1779 = vsub.f32 %v1609, %v1693
        %v1780 = vsub.f32 %v1611, %v1696
        %v1781 = vsub.f32 %v1614, %v1699
        %v1782 = vsub.f32 %v1616, %v1702
        %v1783 = vsub.f32 %v1619, %v1705
        %v1784 = vsub.f32 %v1621, %v1708
        %v1785 = vsub.f32 %v1624, %v1711
        %v1786 = vsub.f32 %v1626, %v1714
        %v1787 = vsub.f32 %v1629, %v1717
        %v1788 = vsub.f32 %v1631, %v1720
        %v1789 = vsub.f32 %v1634, %v1723
        %v1790 = vsub.f32 %v1636, %v1726
        %v1791 = vsub.f32 %v1639, %v1729
        %v1792 = vsub.f32 %v1641, %v1732
        %v1793 = vsub.f32 %v1644, %v1735
        %v1794 = vsub.f32 %v1646, %v1738
        %v1795 = vsub.f32 %v1649, %v1741
        %v1796 = vsub.f32 %v1651, %v1744
        %v1797 = vsub.f32 %v1654, %v1747
        %v1798 = vsub.f32 %v1656, %v1750
        %v1799 = vsub.f32 %v1659, %v1753
        %v1800 = vsub.f32 %v1661, %v1756
        %v1801 = vsub.f32 %v1664, %v1759
        %v1802 = vsub.f32 %v1666, %v1762
        %v1803 = vsub.f32 %v1669, %v1765
        %v1804 = vsub.f32 %v1671, %v1768
        %v1805 = vsub.f32 %v1674, %v1771
        %v1806 = vsub.f32 %v1676, %v1774
        %v1807 = vmul.f32 %v1775, 1.442695
        %v1808 = vpow.pop %v1807
        %v1809 = vmul.f32 %v1776, 1.442695
        %v1810 = vpow.pop %v1809
        %v1811 = vmul.f32 %v1777, 1.442695
        %v1812 = vpow.pop %v1811
        %v1813 = vmul.f32 %v1778, 1.442695
        %v1814 = vpow.pop %v1813
        %v1815 = vmul.f32 %v1779, 1.442695
        %v1816 = vpow.pop %v1815
        %v1817 = vmul.f32 %v1780, 1.442695
        %v1818 = vpow.pop %v1817
        %v1819 = vmul.f32 %v1781, 1.442695
        %v1820 = vpow.pop %v1819
        %v1821 = vmul.f32 %v1782, 1.442695
        %v1822 = vpow.pop %v1821
        %v1823 = vmul.f32 %v1783, 1.442695
        %v1824 = vpow.pop %v1823
        %v1825 = vmul.f32 %v1784, 1.442695
        %v1826 = vpow.pop %v1825
        %v1827 = vmul.f32 %v1785, 1.442695
        %v1828 = vpow.pop %v1827
        %v1829 = vmul.f32 %v1786, 1.442695
        %v1830 = vpow.pop %v1829
        %v1831 = vmul.f32 %v1787, 1.442695
        %v1832 = vpow.pop %v1831
        %v1833 = vmul.f32 %v1788, 1.442695
        %v1834 = vpow.pop %v1833
        %v1835 = vmul.f32 %v1789, 1.442695
        %v1836 = vpow.pop %v1835
        %v1837 = vmul.f32 %v1790, 1.442695
        %v1838 = vpow.pop %v1837
        %v1839 = vmul.f32 %v1791, 1.442695
        %v1840 = vpow.pop %v1839
        %v1841 = vmul.f32 %v1792, 1.442695
        %v1842 = vpow.pop %v1841
        %v1843 = vmul.f32 %v1793, 1.442695
        %v1844 = vpow.pop %v1843
        %v1845 = vmul.f32 %v1794, 1.442695
        %v1846 = vpow.pop %v1845
        %v1847 = vmul.f32 %v1795, 1.442695
        %v1848 = vpow.pop %v1847
        %v1849 = vmul.f32 %v1796, 1.442695
        %v1850 = vpow.pop %v1849
        %v1851 = vmul.f32 %v1797, 1.442695
        %v1852 = vpow.pop %v1851
        %v1853 = vmul.f32 %v1798, 1.442695
        %v1854 = vpow.pop %v1853
        %v1855 = vmul.f32 %v1799, 1.442695
        %v1856 = vpow.pop %v1855
        %v1857 = vmul.f32 %v1800, 1.442695
        %v1858 = vpow.pop %v1857
        %v1859 = vmul.f32 %v1801, 1.442695
        %v1860 = vpow.pop %v1859
        %v1861 = vmul.f32 %v1802, 1.442695
        %v1862 = vpow.pop %v1861
        %v1863 = vmul.f32 %v1803, 1.442695
        %v1864 = vpow.pop %v1863
        %v1865 = vmul.f32 %v1804, 1.442695
        %v1866 = vpow.pop %v1865
        %v1867 = vmul.f32 %v1805, 1.442695
        %v1868 = vpow.pop %v1867
        %v1869 = vmul.f32 %v1806, 1.442695
        %v1870 = vpow.pop %v1869
        %v1871 = vsel %vm1678, %v1808, 0.0
        %1872 = vadd.xlane.f32.xlu0 %v1871
        %v1873 = vpop.xlane.xlu0 %1872
        %v1874 = vsel %vm1678, %v1810, 0.0
        %1875 = vadd.xlane.f32.xlu0 %v1874
        %v1876 = vpop.xlane.xlu0 %1875
        %v1877 = vsel %vm1678, %v1812, 0.0
        %1878 = vadd.xlane.f32.xlu0 %v1877
        %v1879 = vpop.xlane.xlu0 %1878
        %v1880 = vsel %vm1678, %v1814, 0.0
        %1881 = vadd.xlane.f32.xlu0 %v1880
        %v1882 = vpop.xlane.xlu0 %1881
        %v1883 = vsel %vm1678, %v1816, 0.0
        %1884 = vadd.xlane.f32.xlu0 %v1883
        %v1885 = vpop.xlane.xlu0 %1884
        %v1886 = vsel %vm1678, %v1818, 0.0
        %1887 = vadd.xlane.f32.xlu0 %v1886
        %v1888 = vpop.xlane.xlu0 %1887
        %v1889 = vsel %vm1678, %v1820, 0.0
        %1890 = vadd.xlane.f32.xlu0 %v1889
        %v1891 = vpop.xlane.xlu0 %1890
        %v1892 = vsel %vm1678, %v1822, 0.0
        %1893 = vadd.xlane.f32.xlu0 %v1892
        %v1894 = vpop.xlane.xlu0 %1893
        %v1895 = vsel %vm1678, %v1824, 0.0
        %1896 = vadd.xlane.f32.xlu0 %v1895
        %v1897 = vpop.xlane.xlu0 %1896
        %v1898 = vsel %vm1678, %v1826, 0.0
        %1899 = vadd.xlane.f32.xlu0 %v1898
        %v1900 = vpop.xlane.xlu0 %1899
        %v1901 = vsel %vm1678, %v1828, 0.0
        %1902 = vadd.xlane.f32.xlu0 %v1901
        %v1903 = vpop.xlane.xlu0 %1902
        %v1904 = vsel %vm1678, %v1830, 0.0
        %1905 = vadd.xlane.f32.xlu0 %v1904
        %v1906 = vpop.xlane.xlu0 %1905
        %v1907 = vsel %vm1678, %v1832, 0.0
        %1908 = vadd.xlane.f32.xlu0 %v1907
        %v1909 = vpop.xlane.xlu0 %1908
        %v1910 = vsel %vm1678, %v1834, 0.0
        %1911 = vadd.xlane.f32.xlu0 %v1910
        %v1912 = vpop.xlane.xlu0 %1911
        %v1913 = vsel %vm1678, %v1836, 0.0
        %1914 = vadd.xlane.f32.xlu0 %v1913
        %v1915 = vpop.xlane.xlu0 %1914
        %v1916 = vsel %vm1678, %v1838, 0.0
        %1917 = vadd.xlane.f32.xlu0 %v1916
        %v1918 = vpop.xlane.xlu0 %1917
        %v1919 = vsel %vm1678, %v1840, 0.0
        %1920 = vadd.xlane.f32.xlu0 %v1919
        %v1921 = vpop.xlane.xlu0 %1920
        %v1922 = vsel %vm1678, %v1842, 0.0
        %1923 = vadd.xlane.f32.xlu0 %v1922
        %v1924 = vpop.xlane.xlu0 %1923
        %v1925 = vsel %vm1678, %v1844, 0.0
        %1926 = vadd.xlane.f32.xlu0 %v1925
        %v1927 = vpop.xlane.xlu0 %1926
        %v1928 = vsel %vm1678, %v1846, 0.0
        %1929 = vadd.xlane.f32.xlu0 %v1928
        %v1930 = vpop.xlane.xlu0 %1929
        %v1931 = vsel %vm1678, %v1848, 0.0
        %1932 = vadd.xlane.f32.xlu0 %v1931
        %v1933 = vpop.xlane.xlu0 %1932
        %v1934 = vsel %vm1678, %v1850, 0.0
        %1935 = vadd.xlane.f32.xlu0 %v1934
        %v1936 = vpop.xlane.xlu0 %1935
        %v1937 = vsel %vm1678, %v1852, 0.0
        %1938 = vadd.xlane.f32.xlu0 %v1937
        %v1939 = vpop.xlane.xlu0 %1938
        %v1940 = vsel %vm1678, %v1854, 0.0
        %1941 = vadd.xlane.f32.xlu0 %v1940
        %v1942 = vpop.xlane.xlu0 %1941
        %v1943 = vsel %vm1678, %v1856, 0.0
        %1944 = vadd.xlane.f32.xlu0 %v1943
        %v1945 = vpop.xlane.xlu0 %1944
        %v1946 = vsel %vm1678, %v1858, 0.0
        %1947 = vadd.xlane.f32.xlu0 %v1946
        %v1948 = vpop.xlane.xlu0 %1947
        %v1949 = vsel %vm1678, %v1860, 0.0
        %1950 = vadd.xlane.f32.xlu0 %v1949
        %v1951 = vpop.xlane.xlu0 %1950
        %v1952 = vsel %vm1678, %v1862, 0.0
        %1953 = vadd.xlane.f32.xlu0 %v1952
        %v1954 = vpop.xlane.xlu0 %1953
        %v1955 = vsel %vm1678, %v1864, 0.0
        %1956 = vadd.xlane.f32.xlu0 %v1955
        %v1957 = vpop.xlane.xlu0 %1956
        %v1958 = vsel %vm1678, %v1866, 0.0
        %1959 = vadd.xlane.f32.xlu0 %v1958
        %v1960 = vpop.xlane.xlu0 %1959
        %v1961 = vsel %vm1678, %v1868, 0.0
        %1962 = vadd.xlane.f32.xlu0 %v1961
        %v1963 = vpop.xlane.xlu0 %1962
        %v1964 = vsel %vm1678, %v1870, 0.0
        %1965 = vadd.xlane.f32.xlu0 %v1964
        %v1966 = vpop.xlane.xlu0 %1965
        %v1967 = vrcp.pop %v1873
        %v1968 = vrcp.pop %v1876
        %v1969 = vrcp.pop %v1879
        %v1970 = vrcp.pop %v1882
        %v1971 = vrcp.pop %v1885
        %v1972 = vrcp.pop %v1888
        %v1973 = vrcp.pop %v1891
        %v1974 = vrcp.pop %v1894
        %v1975 = vrcp.pop %v1897
        %v1976 = vrcp.pop %v1900
        %v1977 = vrcp.pop %v1903
        %v1978 = vrcp.pop %v1906
        %v1979 = vrcp.pop %v1909
        %v1980 = vrcp.pop %v1912
        %v1981 = vrcp.pop %v1915
        %v1982 = vrcp.pop %v1918
        %v1983 = vrcp.pop %v1921
        %v1984 = vrcp.pop %v1924
        %v1985 = vrcp.pop %v1927
        %v1986 = vrcp.pop %v1930
        %v1987 = vrcp.pop %v1933
        %v1988 = vrcp.pop %v1936
        %v1989 = vrcp.pop %v1939
        %v1990 = vrcp.pop %v1942
        %v1991 = vrcp.pop %v1945
        %v1992 = vrcp.pop %v1948
        %v1993 = vrcp.pop %v1951
        %v1994 = vrcp.pop %v1954
        %v1995 = vrcp.pop %v1957
        %v1996 = vrcp.pop %v1960
        %v1997 = vrcp.pop %v1963
        %v1998 = vrcp.pop %v1966
        %v1999 = vmul.f32 %v1808, %v1967
        %v2000 = vmul.f32 %v1810, %v1968
        %v2001 = vmul.f32 %v1812, %v1969
        %v2002 = vmul.f32 %v1814, %v1970
        %v2003 = vmul.f32 %v1816, %v1971
        %v2004 = vmul.f32 %v1818, %v1972
        %v2005 = vmul.f32 %v1820, %v1973
        %v2006 = vmul.f32 %v1822, %v1974
        %v2007 = vmul.f32 %v1824, %v1975
        %v2008 = vmul.f32 %v1826, %v1976
        %v2009 = vmul.f32 %v1828, %v1977
        %v2010 = vmul.f32 %v1830, %v1978
        %v2011 = vmul.f32 %v1832, %v1979
        %v2012 = vmul.f32 %v1834, %v1980
        %v2013 = vmul.f32 %v1836, %v1981
        %v2014 = vmul.f32 %v1838, %v1982
        %v2015 = vmul.f32 %v1840, %v1983
        %v2016 = vmul.f32 %v1842, %v1984
        %v2017 = vmul.f32 %v1844, %v1985
        %v2018 = vmul.f32 %v1846, %v1986
        %v2019 = vmul.f32 %v1848, %v1987
        %v2020 = vmul.f32 %v1850, %v1988
        %v2021 = vmul.f32 %v1852, %v1989
        %v2022 = vmul.f32 %v1854, %v1990
        %v2023 = vmul.f32 %v1856, %v1991
        %v2024 = vmul.f32 %v1858, %v1992
        %v2025 = vmul.f32 %v1860, %v1993
        %v2026 = vmul.f32 %v1862, %v1994
        %v2027 = vmul.f32 %v1864, %v1995
        %v2028 = vmul.f32 %v1866, %v1996
        %v2029 = vmul.f32 %v1868, %v1997
        %v2030 = vmul.f32 %v1870, %v1998
        %v2031 = vpack.c.bf16 %v2000, %v1999
        %v2032 = vpack.c.bf16 %v2002, %v2001
        %v2033 = vpack.c.bf16 %v2004, %v2003
        %v2034 = vpack.c.bf16 %v2006, %v2005
        %v2035 = vpack.c.bf16 %v2008, %v2007
        %v2036 = vpack.c.bf16 %v2010, %v2009
        %v2037 = vpack.c.bf16 %v2012, %v2011
        %v2038 = vpack.c.bf16 %v2014, %v2013
        %v2039 = vpack.c.bf16 %v2016, %v2015
        %v2040 = vpack.c.bf16 %v2018, %v2017
        %v2041 = vpack.c.bf16 %v2020, %v2019
        %v2042 = vpack.c.bf16 %v2022, %v2021
        %v2043 = vpack.c.bf16 %v2024, %v2023
        %v2044 = vpack.c.bf16 %v2026, %v2025
        %v2045 = vpack.c.bf16 %v2028, %v2027
        %v2046 = vpack.c.bf16 %v2030, %v2029
        %2047 = vrot.lane.b32.xlu0 %v1532, 96
        %v2048 = vpop.permute.xlu0 %2047
        %2049 = vrot.lane.b32.xlu0 %v1533, 96
        %v2050 = vpop.permute.xlu0 %2049
        %v2053 = vsel %vm1678, %v2031, 0
        %v2056 = vsel %vm1678, %v2032, 0
        %v2059 = vsel %vm1678, %v2033, 0
        %v2062 = vsel %vm1678, %v2034, 0
        %v2065 = vsel %vm1678, %v2035, 0
        %v2068 = vsel %vm1678, %v2036, 0
        %v2071 = vsel %vm1678, %v2037, 0
        %v2074 = vsel %vm1678, %v2038, 0
        %v2077 = vsel %vm1678, %v2039, 0
        %v2080 = vsel %vm1678, %v2040, 0
        %v2083 = vsel %vm1678, %v2041, 0
        %v2086 = vsel %vm1678, %v2042, 0
        %v2089 = vsel %vm1678, %v2043, 0
        %v2092 = vsel %vm1678, %v2044, 0
        %v2095 = vsel %vm1678, %v2045, 0
        %v2098 = vsel %vm1678, %v2046, 0
        %vm2100 = vcmask 1040384
        %v2101 = vsel 0, 4294967295, 65535
        %v2102 = vsel %vm2100, %v2101, 0
        %v2104 = vand.u32 %v2050, %v2102
        %2106 = vmatpush.bf16.msra.mxu0 0
        %2107 = vmatpush.bf16.msra.mxu0 0
        %2108 = vmatpush.bf16.msra.mxu0 0
        %2109 = vmatpush.bf16.msra.mxu0 0
        %2110 = vmatpush.bf16.msra.mxu0 0
        %2111 = vmatpush.bf16.msra.mxu0 0
        %2112 = vmatpush.bf16.msra.mxu0 %v2104
        %2113 = vmatpush.bf16.msra.mxu0 %v2048
        %2114 = vmatmul.bf16.gmra.mxu0 %v2053
        %v2115 = vpop.f32.mrf.mxu0
        %v2116 = vadd.f32 0.0, %v2115
        %v2117 = vpop.f32.mrf.mxu0
        %v2118 = vadd.f32 0.0, %v2117
        %2119 = vmatmul.bf16.gmra.mxu0 %v2056
        %v2120 = vpop.f32.mrf.mxu0
        %v2121 = vadd.f32 0.0, %v2120
        %v2122 = vpop.f32.mrf.mxu0
        %v2123 = vadd.f32 0.0, %v2122
        %2124 = vmatmul.bf16.gmra.mxu0 %v2059
        %v2125 = vpop.f32.mrf.mxu0
        %v2126 = vadd.f32 0.0, %v2125
        %v2127 = vpop.f32.mrf.mxu0
        %v2128 = vadd.f32 0.0, %v2127
        %2129 = vmatmul.bf16.gmra.mxu0 %v2062
        %v2130 = vpop.f32.mrf.mxu0
        %v2131 = vadd.f32 0.0, %v2130
        %v2132 = vpop.f32.mrf.mxu0
        %v2133 = vadd.f32 0.0, %v2132
        %2134 = vmatmul.bf16.gmra.mxu0 %v2065
        %v2135 = vpop.f32.mrf.mxu0
        %v2136 = vadd.f32 0.0, %v2135
        %v2137 = vpop.f32.mrf.mxu0
        %v2138 = vadd.f32 0.0, %v2137
        %2139 = vmatmul.bf16.gmra.mxu0 %v2068
        %v2140 = vpop.f32.mrf.mxu0
        %v2141 = vadd.f32 0.0, %v2140
        %v2142 = vpop.f32.mrf.mxu0
        %v2143 = vadd.f32 0.0, %v2142
        %2144 = vmatmul.bf16.gmra.mxu0 %v2071
        %v2145 = vpop.f32.mrf.mxu0
        %v2146 = vadd.f32 0.0, %v2145
        %v2147 = vpop.f32.mrf.mxu0
        %v2148 = vadd.f32 0.0, %v2147
        %2149 = vmatmul.bf16.gmra.mxu0 %v2074
        %v2150 = vpop.f32.mrf.mxu0
        %v2151 = vadd.f32 0.0, %v2150
        %v2152 = vpop.f32.mrf.mxu0
        %v2153 = vadd.f32 0.0, %v2152
        %2154 = vmatmul.bf16.gmra.mxu0 %v2077
        %v2155 = vpop.f32.mrf.mxu0
        %v2156 = vadd.f32 0.0, %v2155
        %v2157 = vpop.f32.mrf.mxu0
        %v2158 = vadd.f32 0.0, %v2157
        %2159 = vmatmul.bf16.gmra.mxu0 %v2080
        %v2160 = vpop.f32.mrf.mxu0
        %v2161 = vadd.f32 0.0, %v2160
        %v2162 = vpop.f32.mrf.mxu0
        %v2163 = vadd.f32 0.0, %v2162
        %2164 = vmatmul.bf16.gmra.mxu0 %v2083
        %v2165 = vpop.f32.mrf.mxu0
        %v2166 = vadd.f32 0.0, %v2165
        %v2167 = vpop.f32.mrf.mxu0
        %v2168 = vadd.f32 0.0, %v2167
        %2169 = vmatmul.bf16.gmra.mxu0 %v2086
        %v2170 = vpop.f32.mrf.mxu0
        %v2171 = vadd.f32 0.0, %v2170
        %v2172 = vpop.f32.mrf.mxu0
        %v2173 = vadd.f32 0.0, %v2172
        %2174 = vmatmul.bf16.gmra.mxu0 %v2089
        %v2175 = vpop.f32.mrf.mxu0
        %v2176 = vadd.f32 0.0, %v2175
        %v2177 = vpop.f32.mrf.mxu0
        %v2178 = vadd.f32 0.0, %v2177
        %2179 = vmatmul.bf16.gmra.mxu0 %v2092
        %v2180 = vpop.f32.mrf.mxu0
        %v2181 = vadd.f32 0.0, %v2180
        %v2182 = vpop.f32.mrf.mxu0
        %v2183 = vadd.f32 0.0, %v2182
        %2184 = vmatmul.bf16.gmra.mxu0 %v2095
        %v2185 = vpop.f32.mrf.mxu0
        %v2186 = vadd.f32 0.0, %v2185
        %v2187 = vpop.f32.mrf.mxu0
        %v2188 = vadd.f32 0.0, %v2187
        %2189 = vmatmul.bf16.gmra.mxu0 %v2098
        %v2190 = vpop.f32.mrf.mxu0
        %v2191 = vadd.f32 0.0, %v2190
        %v2192 = vpop.f32.mrf.mxu0
        %v2193 = vadd.f32 0.0, %v2192
        %2194 = vdwg.mxu0
        %2195 = vst.msk [vmem:[#allocation2] sm:$0xff] %vm1534, %v2116
        %2196 = vst.msk [vmem:[#allocation2 + $0x8] sm:$0xff] %vm1534, %v2118
        %2197 = vst.msk [vmem:[#allocation2 + $0x10] sm:$0xff] %vm1534, %v2121
        %2198 = vst.msk [vmem:[#allocation2 + $0x18] sm:$0xff] %vm1534, %v2123
        %2199 = vst.msk [vmem:[#allocation2 + $0x20] sm:$0xff] %vm1534, %v2126
        %2200 = vst.msk [vmem:[#allocation2 + $0x28] sm:$0xff] %vm1534, %v2128
        %2201 = vst.msk [vmem:[#allocation2 + $0x30] sm:$0xff] %vm1534, %v2131
        %2202 = vst.msk [vmem:[#allocation2 + $0x38] sm:$0xff] %vm1534, %v2133
        %2203 = vst.msk [vmem:[#allocation2 + $0x40] sm:$0xff] %vm1534, %v2136
        %2204 = vst.msk [vmem:[#allocation2 + $0x48] sm:$0xff] %vm1534, %v2138
        %2205 = vst.msk [vmem:[#allocation2 + $0x50] sm:$0xff] %vm1534, %v2141
        %2206 = vst.msk [vmem:[#allocation2 + $0x58] sm:$0xff] %vm1534, %v2143
        %2207 = vst.msk [vmem:[#allocation2 + $0x60] sm:$0xff] %vm1534, %v2146
        %2208 = vst.msk [vmem:[#allocation2 + $0x68] sm:$0xff] %vm1534, %v2148
        %2209 = vst.msk [vmem:[#allocation2 + $0x70] sm:$0xff] %vm1534, %v2151
        %2210 = vst.msk [vmem:[#allocation2 + $0x78] sm:$0xff] %vm1534, %v2153
        %2211 = vst.msk [vmem:[#allocation2 + $0x80] sm:$0xff] %vm1534, %v2156
        %2212 = vst.msk [vmem:[#allocation2 + $0x88] sm:$0xff] %vm1534, %v2158
        %2213 = vst.msk [vmem:[#allocation2 + $0x90] sm:$0xff] %vm1534, %v2161
        %2214 = vst.msk [vmem:[#allocation2 + $0x98] sm:$0xff] %vm1534, %v2163
        %2215 = vst.msk [vmem:[#allocation2 + $0xa0] sm:$0xff] %vm1534, %v2166
        %2216 = vst.msk [vmem:[#allocation2 + $0xa8] sm:$0xff] %vm1534, %v2168
        %2217 = vst.msk [vmem:[#allocation2 + $0xb0] sm:$0xff] %vm1534, %v2171
        %2218 = vst.msk [vmem:[#allocation2 + $0xb8] sm:$0xff] %vm1534, %v2173
        %2219 = vst.msk [vmem:[#allocation2 + $0xc0] sm:$0xff] %vm1534, %v2176
        %2220 = vst.msk [vmem:[#allocation2 + $0xc8] sm:$0xff] %vm1534, %v2178
        %2221 = vst.msk [vmem:[#allocation2 + $0xd0] sm:$0xff] %vm1534, %v2181
        %2222 = vst.msk [vmem:[#allocation2 + $0xd8] sm:$0xff] %vm1534, %v2183
        %2223 = vst.msk [vmem:[#allocation2 + $0xe0] sm:$0xff] %vm1534, %v2186
        %2224 = vst.msk [vmem:[#allocation2 + $0xe8] sm:$0xff] %vm1534, %v2188
        %2225 = vst.msk [vmem:[#allocation2 + $0xf0] sm:$0xff] %vm1534, %v2191
        %2226 = vst.msk [vmem:[#allocation2 + $0xf8] sm:$0xff] %vm1534, %v2193
        %2227 = vrot.lane.b32.xlu0 %v1510, 120
        %v2228 = vpop.permute.xlu0 %2227
        %2229 = vrot.lane.b32.xlu0 %v1511, 120
        %v2230 = vpop.permute.xlu0 %2229
        %2231 = vrot.lane.b32.xlu0 %v1512, 120
        %v2232 = vpop.permute.xlu0 %2231
        %2233 = vrot.lane.b32.xlu0 %v1513, 120
        %v2234 = vpop.permute.xlu0 %2233
        %2235 = vrot.lane.b32.xlu0 %v1514, 120
        %v2236 = vpop.permute.xlu0 %2235
        %2237 = vrot.lane.b32.xlu0 %v1515, 120
        %v2238 = vpop.permute.xlu0 %2237
        %2239 = vrot.lane.b32.xlu0 %v1516, 120
        %v2240 = vpop.permute.xlu0 %2239
        %2241 = vrot.lane.b32.xlu0 %v1517, 120
        %v2242 = vpop.permute.xlu0 %2241
        %2243 = vrot.lane.b32.xlu0 %v1518, 120
        %v2244 = vpop.permute.xlu0 %2243
        %2245 = vrot.lane.b32.xlu0 %v1519, 120
        %v2246 = vpop.permute.xlu0 %2245
        %2247 = vrot.lane.b32.xlu0 %v1520, 120
        %v2248 = vpop.permute.xlu0 %2247
        %2249 = vrot.lane.b32.xlu0 %v1521, 120
        %v2250 = vpop.permute.xlu0 %2249
        %2251 = vrot.lane.b32.xlu0 %v1522, 120
        %v2252 = vpop.permute.xlu0 %2251
        %2253 = vrot.lane.b32.xlu0 %v1523, 120
        %v2254 = vpop.permute.xlu0 %2253
        %2255 = vrot.lane.b32.xlu0 %v1524, 120
        %v2256 = vpop.permute.xlu0 %2255
        %2257 = vrot.lane.b32.xlu0 %v1525, 120
        %v2258 = vpop.permute.xlu0 %2257
        %2259 = vrot.lane.b32.xlu0 %v1532, 120
        %v2260 = vpop.permute.xlu0 %2259
        %2261 = vrot.lane.b32.xlu0 %v1533, 120
        %v2262 = vpop.permute.xlu0 %2261
        %v2264 = vsel %vm1534, %v2228, 0
        %v2267 = vsel %vm1534, %v2230, 0
        %v2270 = vsel %vm1534, %v2232, 0
        %v2273 = vsel %vm1534, %v2234, 0
        %v2276 = vsel %vm1534, %v2236, 0
        %v2279 = vsel %vm1534, %v2238, 0
        %v2282 = vsel %vm1534, %v2240, 0
        %v2285 = vsel %vm1534, %v2242, 0
        %v2288 = vsel %vm1534, %v2244, 0
        %v2291 = vsel %vm1534, %v2246, 0
        %v2294 = vsel %vm1534, %v2248, 0
        %v2297 = vsel %vm1534, %v2250, 0
        %v2300 = vsel %vm1534, %v2252, 0
        %v2303 = vsel %vm1534, %v2254, 0
        %v2306 = vsel %vm1534, %v2256, 0
        %v2309 = vsel %vm1534, %v2258, 0
        %v2312 = vsel %vm1534, %v2260, 0
        %v2315 = vsel %vm1534, %v2262, 0
        %2317 = vmatpush.bf16.xpose.msra.mxu0 0
        %2318 = vmatpush.bf16.xpose.msra.mxu0 0
        %2319 = vmatpush.bf16.xpose.msra.mxu0 0
        %2320 = vmatpush.bf16.xpose.msra.mxu0 0
        %2321 = vmatpush.bf16.xpose.msra.mxu0 0
        %2322 = vmatpush.bf16.xpose.msra.mxu0 0
        %2323 = vmatpush.bf16.xpose.msra.mxu0 %v2315
        %2324 = vmatpush.bf16.xpose.msra.mxu0 %v2312
        %2325 = vmatmul.bf16.gmra.mxu0 %v2264
        %v2326 = vpop.f32.mrf.mxu0
        %v2327 = vadd.f32 %v1379, %v2326
        %v2328 = vpop.f32.mrf.mxu0
        %v2329 = vadd.f32 %v1380, %v2328
        %2330 = vmatmul.bf16.gmra.mxu0 %v2267
        %v2331 = vpop.f32.mrf.mxu0
        %v2332 = vadd.f32 %v1381, %v2331
        %v2333 = vpop.f32.mrf.mxu0
        %v2334 = vadd.f32 %v1382, %v2333
        %2335 = vmatmul.bf16.gmra.mxu0 %v2270
        %v2336 = vpop.f32.mrf.mxu0
        %v2337 = vadd.f32 %v1383, %v2336
        %v2338 = vpop.f32.mrf.mxu0
        %v2339 = vadd.f32 %v1384, %v2338
        %2340 = vmatmul.bf16.gmra.mxu0 %v2273
        %v2341 = vpop.f32.mrf.mxu0
        %v2342 = vadd.f32 %v1385, %v2341
        %v2343 = vpop.f32.mrf.mxu0
        %v2344 = vadd.f32 %v1386, %v2343
        %2345 = vmatmul.bf16.gmra.mxu0 %v2276
        %v2346 = vpop.f32.mrf.mxu0
        %v2347 = vadd.f32 %v1387, %v2346
        %v2348 = vpop.f32.mrf.mxu0
        %v2349 = vadd.f32 %v1388, %v2348
        %2350 = vmatmul.bf16.gmra.mxu0 %v2279
        %v2351 = vpop.f32.mrf.mxu0
        %v2352 = vadd.f32 %v1389, %v2351
        %v2353 = vpop.f32.mrf.mxu0
        %v2354 = vadd.f32 %v1390, %v2353
        %2355 = vmatmul.bf16.gmra.mxu0 %v2282
        %v2356 = vpop.f32.mrf.mxu0
        %v2357 = vadd.f32 %v1391, %v2356
        %v2358 = vpop.f32.mrf.mxu0
        %v2359 = vadd.f32 %v1392, %v2358
        %2360 = vmatmul.bf16.gmra.mxu0 %v2285
        %v2361 = vpop.f32.mrf.mxu0
        %v2362 = vadd.f32 %v1393, %v2361
        %v2363 = vpop.f32.mrf.mxu0
        %v2364 = vadd.f32 %v1394, %v2363
        %2365 = vmatmul.bf16.gmra.mxu0 %v2288
        %v2366 = vpop.f32.mrf.mxu0
        %v2367 = vadd.f32 %v1395, %v2366
        %v2368 = vpop.f32.mrf.mxu0
        %v2369 = vadd.f32 %v1396, %v2368
        %2370 = vmatmul.bf16.gmra.mxu0 %v2291
        %v2371 = vpop.f32.mrf.mxu0
        %v2372 = vadd.f32 %v1397, %v2371
        %v2373 = vpop.f32.mrf.mxu0
        %v2374 = vadd.f32 %v1398, %v2373
        %2375 = vmatmul.bf16.gmra.mxu0 %v2294
        %v2376 = vpop.f32.mrf.mxu0
        %v2377 = vadd.f32 %v1399, %v2376
        %v2378 = vpop.f32.mrf.mxu0
        %v2379 = vadd.f32 %v1400, %v2378
        %2380 = vmatmul.bf16.gmra.mxu0 %v2297
        %v2381 = vpop.f32.mrf.mxu0
        %v2382 = vadd.f32 %v1401, %v2381
        %v2383 = vpop.f32.mrf.mxu0
        %v2384 = vadd.f32 %v1402, %v2383
        %2385 = vmatmul.bf16.gmra.mxu0 %v2300
        %v2386 = vpop.f32.mrf.mxu0
        %v2387 = vadd.f32 %v1403, %v2386
        %v2388 = vpop.f32.mrf.mxu0
        %v2389 = vadd.f32 %v1404, %v2388
        %2390 = vmatmul.bf16.gmra.mxu0 %v2303
        %v2391 = vpop.f32.mrf.mxu0
        %v2392 = vadd.f32 %v1405, %v2391
        %v2393 = vpop.f32.mrf.mxu0
        %v2394 = vadd.f32 %v1406, %v2393
        %2395 = vmatmul.bf16.gmra.mxu0 %v2306
        %v2396 = vpop.f32.mrf.mxu0
        %v2397 = vadd.f32 %v1407, %v2396
        %v2398 = vpop.f32.mrf.mxu0
        %v2399 = vadd.f32 %v1408, %v2398
        %2400 = vmatmul.bf16.gmra.mxu0 %v2309
        %v2401 = vpop.f32.mrf.mxu0
        %v2402 = vadd.f32 %v1409, %v2401
        %v2403 = vpop.f32.mrf.mxu0
        %v2404 = vadd.f32 %v1410, %v2403
        %2405 = vdwg.mxu0
        %v2406 = vsel %vm1678, %v2327, -inf
        %2407 = vmax.xlane.f32.xlu0 %v2406
        %v2408 = vpop.xlane.xlu0 %2407
        %v2409 = vsel %vm1678, %v2329, -inf
        %2410 = vmax.xlane.f32.xlu0 %v2409
        %v2411 = vpop.xlane.xlu0 %2410
        %v2412 = vsel %vm1678, %v2332, -inf
        %2413 = vmax.xlane.f32.xlu0 %v2412
        %v2414 = vpop.xlane.xlu0 %2413
        %v2415 = vsel %vm1678, %v2334, -inf
        %2416 = vmax.xlane.f32.xlu0 %v2415
        %v2417 = vpop.xlane.xlu0 %2416
        %v2418 = vsel %vm1678, %v2337, -inf
        %2419 = vmax.xlane.f32.xlu0 %v2418
        %v2420 = vpop.xlane.xlu0 %2419
        %v2421 = vsel %vm1678, %v2339, -inf
        %2422 = vmax.xlane.f32.xlu0 %v2421
        %v2423 = vpop.xlane.xlu0 %2422
        %v2424 = vsel %vm1678, %v2342, -inf
        %2425 = vmax.xlane.f32.xlu0 %v2424
        %v2426 = vpop.xlane.xlu0 %2425
        %v2427 = vsel %vm1678, %v2344, -inf
        %2428 = vmax.xlane.f32.xlu0 %v2427
        %v2429 = vpop.xlane.xlu0 %2428
        %v2430 = vsel %vm1678, %v2347, -inf
        %2431 = vmax.xlane.f32.xlu0 %v2430
        %v2432 = vpop.xlane.xlu0 %2431
        %v2433 = vsel %vm1678, %v2349, -inf
        %2434 = vmax.xlane.f32.xlu0 %v2433
        %v2435 = vpop.xlane.xlu0 %2434
        %v2436 = vsel %vm1678, %v2352, -inf
        %2437 = vmax.xlane.f32.xlu0 %v2436
        %v2438 = vpop.xlane.xlu0 %2437
        %v2439 = vsel %vm1678, %v2354, -inf
        %2440 = vmax.xlane.f32.xlu0 %v2439
        %v2441 = vpop.xlane.xlu0 %2440
        %v2442 = vsel %vm1678, %v2357, -inf
        %2443 = vmax.xlane.f32.xlu0 %v2442
        %v2444 = vpop.xlane.xlu0 %2443
        %v2445 = vsel %vm1678, %v2359, -inf
        %2446 = vmax.xlane.f32.xlu0 %v2445
        %v2447 = vpop.xlane.xlu0 %2446
        %v2448 = vsel %vm1678, %v2362, -inf
        %2449 = vmax.xlane.f32.xlu0 %v2448
        %v2450 = vpop.xlane.xlu0 %2449
        %v2451 = vsel %vm1678, %v2364, -inf
        %2452 = vmax.xlane.f32.xlu0 %v2451
        %v2453 = vpop.xlane.xlu0 %2452
        %v2454 = vsel %vm1678, %v2367, -inf
        %2455 = vmax.xlane.f32.xlu0 %v2454
        %v2456 = vpop.xlane.xlu0 %2455
        %v2457 = vsel %vm1678, %v2369, -inf
        %2458 = vmax.xlane.f32.xlu0 %v2457
        %v2459 = vpop.xlane.xlu0 %2458
        %v2460 = vsel %vm1678, %v2372, -inf
        %2461 = vmax.xlane.f32.xlu0 %v2460
        %v2462 = vpop.xlane.xlu0 %2461
        %v2463 = vsel %vm1678, %v2374, -inf
        %2464 = vmax.xlane.f32.xlu0 %v2463
        %v2465 = vpop.xlane.xlu0 %2464
        %v2466 = vsel %vm1678, %v2377, -inf
        %2467 = vmax.xlane.f32.xlu0 %v2466
        %v2468 = vpop.xlane.xlu0 %2467
        %v2469 = vsel %vm1678, %v2379, -inf
        %2470 = vmax.xlane.f32.xlu0 %v2469
        %v2471 = vpop.xlane.xlu0 %2470
        %v2472 = vsel %vm1678, %v2382, -inf
        %2473 = vmax.xlane.f32.xlu0 %v2472
        %v2474 = vpop.xlane.xlu0 %2473
        %v2475 = vsel %vm1678, %v2384, -inf
        %2476 = vmax.xlane.f32.xlu0 %v2475
        %v2477 = vpop.xlane.xlu0 %2476
        %v2478 = vsel %vm1678, %v2387, -inf
        %2479 = vmax.xlane.f32.xlu0 %v2478
        %v2480 = vpop.xlane.xlu0 %2479
        %v2481 = vsel %vm1678, %v2389, -inf
        %2482 = vmax.xlane.f32.xlu0 %v2481
        %v2483 = vpop.xlane.xlu0 %2482
        %v2484 = vsel %vm1678, %v2392, -inf
        %2485 = vmax.xlane.f32.xlu0 %v2484
        %v2486 = vpop.xlane.xlu0 %2485
        %v2487 = vsel %vm1678, %v2394, -inf
        %2488 = vmax.xlane.f32.xlu0 %v2487
        %v2489 = vpop.xlane.xlu0 %2488
        %v2490 = vsel %vm1678, %v2397, -inf
        %2491 = vmax.xlane.f32.xlu0 %v2490
        %v2492 = vpop.xlane.xlu0 %2491
        %v2493 = vsel %vm1678, %v2399, -inf
        %2494 = vmax.xlane.f32.xlu0 %v2493
        %v2495 = vpop.xlane.xlu0 %2494
        %v2496 = vsel %vm1678, %v2402, -inf
        %2497 = vmax.xlane.f32.xlu0 %v2496
        %v2498 = vpop.xlane.xlu0 %2497
        %v2499 = vsel %vm1678, %v2404, -inf
        %2500 = vmax.xlane.f32.xlu0 %v2499
        %v2501 = vpop.xlane.xlu0 %2500
        %v2502 = vsub.f32 %v2327, %v2408
        %v2503 = vsub.f32 %v2329, %v2411
        %v2504 = vsub.f32 %v2332, %v2414
        %v2505 = vsub.f32 %v2334, %v2417
        %v2506 = vsub.f32 %v2337, %v2420
        %v2507 = vsub.f32 %v2339, %v2423
        %v2508 = vsub.f32 %v2342, %v2426
        %v2509 = vsub.f32 %v2344, %v2429
        %v2510 = vsub.f32 %v2347, %v2432
        %v2511 = vsub.f32 %v2349, %v2435
        %v2512 = vsub.f32 %v2352, %v2438
        %v2513 = vsub.f32 %v2354, %v2441
        %v2514 = vsub.f32 %v2357, %v2444
        %v2515 = vsub.f32 %v2359, %v2447
        %v2516 = vsub.f32 %v2362, %v2450
        %v2517 = vsub.f32 %v2364, %v2453
        %v2518 = vsub.f32 %v2367, %v2456
        %v2519 = vsub.f32 %v2369, %v2459
        %v2520 = vsub.f32 %v2372, %v2462
        %v2521 = vsub.f32 %v2374, %v2465
        %v2522 = vsub.f32 %v2377, %v2468
        %v2523 = vsub.f32 %v2379, %v2471
        %v2524 = vsub.f32 %v2382, %v2474
        %v2525 = vsub.f32 %v2384, %v2477
        %v2526 = vsub.f32 %v2387, %v2480
        %v2527 = vsub.f32 %v2389, %v2483
        %v2528 = vsub.f32 %v2392, %v2486
        %v2529 = vsub.f32 %v2394, %v2489
        %v2530 = vsub.f32 %v2397, %v2492
        %v2531 = vsub.f32 %v2399, %v2495
        %v2532 = vsub.f32 %v2402, %v2498
        %v2533 = vsub.f32 %v2404, %v2501
        %v2534 = vmul.f32 %v2502, 1.442695
        %v2535 = vpow.pop %v2534
        %v2536 = vmul.f32 %v2503, 1.442695
        %v2537 = vpow.pop %v2536
        %v2538 = vmul.f32 %v2504, 1.442695
        %v2539 = vpow.pop %v2538
        %v2540 = vmul.f32 %v2505, 1.442695
        %v2541 = vpow.pop %v2540
        %v2542 = vmul.f32 %v2506, 1.442695
        %v2543 = vpow.pop %v2542
        %v2544 = vmul.f32 %v2507, 1.442695
        %v2545 = vpow.pop %v2544
        %v2546 = vmul.f32 %v2508, 1.442695
        %v2547 = vpow.pop %v2546
        %v2548 = vmul.f32 %v2509, 1.442695
        %v2549 = vpow.pop %v2548
        %v2550 = vmul.f32 %v2510, 1.442695
        %v2551 = vpow.pop %v2550
        %v2552 = vmul.f32 %v2511, 1.442695
        %v2553 = vpow.pop %v2552
        %v2554 = vmul.f32 %v2512, 1.442695
        %v2555 = vpow.pop %v2554
        %v2556 = vmul.f32 %v2513, 1.442695
        %v2557 = vpow.pop %v2556
        %v2558 = vmul.f32 %v2514, 1.442695
        %v2559 = vpow.pop %v2558
        %v2560 = vmul.f32 %v2515, 1.442695
        %v2561 = vpow.pop %v2560
        %v2562 = vmul.f32 %v2516, 1.442695
        %v2563 = vpow.pop %v2562
        %v2564 = vmul.f32 %v2517, 1.442695
        %v2565 = vpow.pop %v2564
        %v2566 = vmul.f32 %v2518, 1.442695
        %v2567 = vpow.pop %v2566
        %v2568 = vmul.f32 %v2519, 1.442695
        %v2569 = vpow.pop %v2568
        %v2570 = vmul.f32 %v2520, 1.442695
        %v2571 = vpow.pop %v2570
        %v2572 = vmul.f32 %v2521, 1.442695
        %v2573 = vpow.pop %v2572
        %v2574 = vmul.f32 %v2522, 1.442695
        %v2575 = vpow.pop %v2574
        %v2576 = vmul.f32 %v2523, 1.442695
        %v2577 = vpow.pop %v2576
        %v2578 = vmul.f32 %v2524, 1.442695
        %v2579 = vpow.pop %v2578
        %v2580 = vmul.f32 %v2525, 1.442695
        %v2581 = vpow.pop %v2580
        %v2582 = vmul.f32 %v2526, 1.442695
        %v2583 = vpow.pop %v2582
        %v2584 = vmul.f32 %v2527, 1.442695
        %v2585 = vpow.pop %v2584
        %v2586 = vmul.f32 %v2528, 1.442695
        %v2587 = vpow.pop %v2586
        %v2588 = vmul.f32 %v2529, 1.442695
        %v2589 = vpow.pop %v2588
        %v2590 = vmul.f32 %v2530, 1.442695
        %v2591 = vpow.pop %v2590
        %v2592 = vmul.f32 %v2531, 1.442695
        %v2593 = vpow.pop %v2592
        %v2594 = vmul.f32 %v2532, 1.442695
        %v2595 = vpow.pop %v2594
        %v2596 = vmul.f32 %v2533, 1.442695
        %v2597 = vpow.pop %v2596
        %v2598 = vsel %vm1678, %v2535, 0.0
        %2599 = vadd.xlane.f32.xlu0 %v2598
        %v2600 = vpop.xlane.xlu0 %2599
        %v2601 = vsel %vm1678, %v2537, 0.0
        %2602 = vadd.xlane.f32.xlu0 %v2601
        %v2603 = vpop.xlane.xlu0 %2602
        %v2604 = vsel %vm1678, %v2539, 0.0
        %2605 = vadd.xlane.f32.xlu0 %v2604
        %v2606 = vpop.xlane.xlu0 %2605
        %v2607 = vsel %vm1678, %v2541, 0.0
        %2608 = vadd.xlane.f32.xlu0 %v2607
        %v2609 = vpop.xlane.xlu0 %2608
        %v2610 = vsel %vm1678, %v2543, 0.0
        %2611 = vadd.xlane.f32.xlu0 %v2610
        %v2612 = vpop.xlane.xlu0 %2611
        %v2613 = vsel %vm1678, %v2545, 0.0
        %2614 = vadd.xlane.f32.xlu0 %v2613
        %v2615 = vpop.xlane.xlu0 %2614
        %v2616 = vsel %vm1678, %v2547, 0.0
        %2617 = vadd.xlane.f32.xlu0 %v2616
        %v2618 = vpop.xlane.xlu0 %2617
        %v2619 = vsel %vm1678, %v2549, 0.0
        %2620 = vadd.xlane.f32.xlu0 %v2619
        %v2621 = vpop.xlane.xlu0 %2620
        %v2622 = vsel %vm1678, %v2551, 0.0
        %2623 = vadd.xlane.f32.xlu0 %v2622
        %v2624 = vpop.xlane.xlu0 %2623
        %v2625 = vsel %vm1678, %v2553, 0.0
        %2626 = vadd.xlane.f32.xlu0 %v2625
        %v2627 = vpop.xlane.xlu0 %2626
        %v2628 = vsel %vm1678, %v2555, 0.0
        %2629 = vadd.xlane.f32.xlu0 %v2628
        %v2630 = vpop.xlane.xlu0 %2629
        %v2631 = vsel %vm1678, %v2557, 0.0
        %2632 = vadd.xlane.f32.xlu0 %v2631
        %v2633 = vpop.xlane.xlu0 %2632
        %v2634 = vsel %vm1678, %v2559, 0.0
        %2635 = vadd.xlane.f32.xlu0 %v2634
        %v2636 = vpop.xlane.xlu0 %2635
        %v2637 = vsel %vm1678, %v2561, 0.0
        %2638 = vadd.xlane.f32.xlu0 %v2637
        %v2639 = vpop.xlane.xlu0 %2638
        %v2640 = vsel %vm1678, %v2563, 0.0
        %2641 = vadd.xlane.f32.xlu0 %v2640
        %v2642 = vpop.xlane.xlu0 %2641
        %v2643 = vsel %vm1678, %v2565, 0.0
        %2644 = vadd.xlane.f32.xlu0 %v2643
        %v2645 = vpop.xlane.xlu0 %2644
        %v2646 = vsel %vm1678, %v2567, 0.0
        %2647 = vadd.xlane.f32.xlu0 %v2646
        %v2648 = vpop.xlane.xlu0 %2647
        %v2649 = vsel %vm1678, %v2569, 0.0
        %2650 = vadd.xlane.f32.xlu0 %v2649
        %v2651 = vpop.xlane.xlu0 %2650
        %v2652 = vsel %vm1678, %v2571, 0.0
        %2653 = vadd.xlane.f32.xlu0 %v2652
        %v2654 = vpop.xlane.xlu0 %2653
        %v2655 = vsel %vm1678, %v2573, 0.0
        %2656 = vadd.xlane.f32.xlu0 %v2655
        %v2657 = vpop.xlane.xlu0 %2656
        %v2658 = vsel %vm1678, %v2575, 0.0
        %2659 = vadd.xlane.f32.xlu0 %v2658
        %v2660 = vpop.xlane.xlu0 %2659
        %v2661 = vsel %vm1678, %v2577, 0.0
        %2662 = vadd.xlane.f32.xlu0 %v2661
        %v2663 = vpop.xlane.xlu0 %2662
        %v2664 = vsel %vm1678, %v2579, 0.0
        %2665 = vadd.xlane.f32.xlu0 %v2664
        %v2666 = vpop.xlane.xlu0 %2665
        %v2667 = vsel %vm1678, %v2581, 0.0
        %2668 = vadd.xlane.f32.xlu0 %v2667
        %v2669 = vpop.xlane.xlu0 %2668
        %v2670 = vsel %vm1678, %v2583, 0.0
        %2671 = vadd.xlane.f32.xlu0 %v2670
        %v2672 = vpop.xlane.xlu0 %2671
        %v2673 = vsel %vm1678, %v2585, 0.0
        %2674 = vadd.xlane.f32.xlu0 %v2673
        %v2675 = vpop.xlane.xlu0 %2674
        %v2676 = vsel %vm1678, %v2587, 0.0
        %2677 = vadd.xlane.f32.xlu0 %v2676
        %v2678 = vpop.xlane.xlu0 %2677
        %v2679 = vsel %vm1678, %v2589, 0.0
        %2680 = vadd.xlane.f32.xlu0 %v2679
        %v2681 = vpop.xlane.xlu0 %2680
        %v2682 = vsel %vm1678, %v2591, 0.0
        %2683 = vadd.xlane.f32.xlu0 %v2682
        %v2684 = vpop.xlane.xlu0 %2683
        %v2685 = vsel %vm1678, %v2593, 0.0
        %2686 = vadd.xlane.f32.xlu0 %v2685
        %v2687 = vpop.xlane.xlu0 %2686
        %v2688 = vsel %vm1678, %v2595, 0.0
        %2689 = vadd.xlane.f32.xlu0 %v2688
        %v2690 = vpop.xlane.xlu0 %2689
        %v2691 = vsel %vm1678, %v2597, 0.0
        %2692 = vadd.xlane.f32.xlu0 %v2691
        %v2693 = vpop.xlane.xlu0 %2692
        %v2694 = vrcp.pop %v2600
        %v2695 = vrcp.pop %v2603
        %v2696 = vrcp.pop %v2606
        %v2697 = vrcp.pop %v2609
        %v2698 = vrcp.pop %v2612
        %v2699 = vrcp.pop %v2615
        %v2700 = vrcp.pop %v2618
        %v2701 = vrcp.pop %v2621
        %v2702 = vrcp.pop %v2624
        %v2703 = vrcp.pop %v2627
        %v2704 = vrcp.pop %v2630
        %v2705 = vrcp.pop %v2633
        %v2706 = vrcp.pop %v2636
        %v2707 = vrcp.pop %v2639
        %v2708 = vrcp.pop %v2642
        %v2709 = vrcp.pop %v2645
        %v2710 = vrcp.pop %v2648
        %v2711 = vrcp.pop %v2651
        %v2712 = vrcp.pop %v2654
        %v2713 = vrcp.pop %v2657
        %v2714 = vrcp.pop %v2660
        %v2715 = vrcp.pop %v2663
        %v2716 = vrcp.pop %v2666
        %v2717 = vrcp.pop %v2669
        %v2718 = vrcp.pop %v2672
        %v2719 = vrcp.pop %v2675
        %v2720 = vrcp.pop %v2678
        %v2721 = vrcp.pop %v2681
        %v2722 = vrcp.pop %v2684
        %v2723 = vrcp.pop %v2687
        %v2724 = vrcp.pop %v2690
        %v2725 = vrcp.pop %v2693
        %v2726 = vmul.f32 %v2535, %v2694
        %v2727 = vmul.f32 %v2537, %v2695
        %v2728 = vmul.f32 %v2539, %v2696
        %v2729 = vmul.f32 %v2541, %v2697
        %v2730 = vmul.f32 %v2543, %v2698
        %v2731 = vmul.f32 %v2545, %v2699
        %v2732 = vmul.f32 %v2547, %v2700
        %v2733 = vmul.f32 %v2549, %v2701
        %v2734 = vmul.f32 %v2551, %v2702
        %v2735 = vmul.f32 %v2553, %v2703
        %v2736 = vmul.f32 %v2555, %v2704
        %v2737 = vmul.f32 %v2557, %v2705
        %v2738 = vmul.f32 %v2559, %v2706
        %v2739 = vmul.f32 %v2561, %v2707
        %v2740 = vmul.f32 %v2563, %v2708
        %v2741 = vmul.f32 %v2565, %v2709
        %v2742 = vmul.f32 %v2567, %v2710
        %v2743 = vmul.f32 %v2569, %v2711
        %v2744 = vmul.f32 %v2571, %v2712
        %v2745 = vmul.f32 %v2573, %v2713
        %v2746 = vmul.f32 %v2575, %v2714
        %v2747 = vmul.f32 %v2577, %v2715
        %v2748 = vmul.f32 %v2579, %v2716
        %v2749 = vmul.f32 %v2581, %v2717
        %v2750 = vmul.f32 %v2583, %v2718
        %v2751 = vmul.f32 %v2585, %v2719
        %v2752 = vmul.f32 %v2587, %v2720
        %v2753 = vmul.f32 %v2589, %v2721
        %v2754 = vmul.f32 %v2591, %v2722
        %v2755 = vmul.f32 %v2593, %v2723
        %v2756 = vmul.f32 %v2595, %v2724
        %v2757 = vmul.f32 %v2597, %v2725
        %v2758 = vpack.c.bf16 %v2727, %v2726
        %v2759 = vpack.c.bf16 %v2729, %v2728
        %v2760 = vpack.c.bf16 %v2731, %v2730
        %v2761 = vpack.c.bf16 %v2733, %v2732
        %v2762 = vpack.c.bf16 %v2735, %v2734
        %v2763 = vpack.c.bf16 %v2737, %v2736
        %v2764 = vpack.c.bf16 %v2739, %v2738
        %v2765 = vpack.c.bf16 %v2741, %v2740
        %v2766 = vpack.c.bf16 %v2743, %v2742
        %v2767 = vpack.c.bf16 %v2745, %v2744
        %v2768 = vpack.c.bf16 %v2747, %v2746
        %v2769 = vpack.c.bf16 %v2749, %v2748
        %v2770 = vpack.c.bf16 %v2751, %v2750
        %v2771 = vpack.c.bf16 %v2753, %v2752
        %v2772 = vpack.c.bf16 %v2755, %v2754
        %v2773 = vpack.c.bf16 %v2757, %v2756
        %2774 = vrot.lane.b32.xlu0 %v1532, 88
        %v2775 = vpop.permute.xlu0 %2774
        %2776 = vrot.lane.b32.xlu0 %v1533, 88
        %v2777 = vpop.permute.xlu0 %2776
        %v2780 = vsel %vm1678, %v2758, 0
        %v2783 = vsel %vm1678, %v2759, 0
        %v2786 = vsel %vm1678, %v2760, 0
        %v2789 = vsel %vm1678, %v2761, 0
        %v2792 = vsel %vm1678, %v2762, 0
        %v2795 = vsel %vm1678, %v2763, 0
        %v2798 = vsel %vm1678, %v2764, 0
        %v2801 = vsel %vm1678, %v2765, 0
        %v2804 = vsel %vm1678, %v2766, 0
        %v2807 = vsel %vm1678, %v2767, 0
        %v2810 = vsel %vm1678, %v2768, 0
        %v2813 = vsel %vm1678, %v2769, 0
        %v2816 = vsel %vm1678, %v2770, 0
        %v2819 = vsel %vm1678, %v2771, 0
        %v2822 = vsel %vm1678, %v2772, 0
        %v2825 = vsel %vm1678, %v2773, 0
        %v2828 = vand.u32 %v2777, %v2102
        %2830 = vmatpush.bf16.msra.mxu0 0
        %2831 = vmatpush.bf16.msra.mxu0 0
        %2832 = vmatpush.bf16.msra.mxu0 0
        %2833 = vmatpush.bf16.msra.mxu0 0
        %2834 = vmatpush.bf16.msra.mxu0 0
        %2835 = vmatpush.bf16.msra.mxu0 0
        %2836 = vmatpush.bf16.msra.mxu0 %v2828
        %2837 = vmatpush.bf16.msra.mxu0 %v2775
        %2838 = vmatmul.bf16.gmra.mxu0 %v2780
        %v2839 = vpop.f32.mrf.mxu0
        %v2840 = vadd.f32 0.0, %v2839
        %v2841 = vpop.f32.mrf.mxu0
        %v2842 = vadd.f32 0.0, %v2841
        %2843 = vmatmul.bf16.gmra.mxu0 %v2783
        %v2844 = vpop.f32.mrf.mxu0
        %v2845 = vadd.f32 0.0, %v2844
        %v2846 = vpop.f32.mrf.mxu0
        %v2847 = vadd.f32 0.0, %v2846
        %2848 = vmatmul.bf16.gmra.mxu0 %v2786
        %v2849 = vpop.f32.mrf.mxu0
        %v2850 = vadd.f32 0.0, %v2849
        %v2851 = vpop.f32.mrf.mxu0
        %v2852 = vadd.f32 0.0, %v2851
        %2853 = vmatmul.bf16.gmra.mxu0 %v2789
        %v2854 = vpop.f32.mrf.mxu0
        %v2855 = vadd.f32 0.0, %v2854
        %v2856 = vpop.f32.mrf.mxu0
        %v2857 = vadd.f32 0.0, %v2856
        %2858 = vmatmul.bf16.gmra.mxu0 %v2792
        %v2859 = vpop.f32.mrf.mxu0
        %v2860 = vadd.f32 0.0, %v2859
        %v2861 = vpop.f32.mrf.mxu0
        %v2862 = vadd.f32 0.0, %v2861
        %2863 = vmatmul.bf16.gmra.mxu0 %v2795
        %v2864 = vpop.f32.mrf.mxu0
        %v2865 = vadd.f32 0.0, %v2864
        %v2866 = vpop.f32.mrf.mxu0
        %v2867 = vadd.f32 0.0, %v2866
        %2868 = vmatmul.bf16.gmra.mxu0 %v2798
        %v2869 = vpop.f32.mrf.mxu0
        %v2870 = vadd.f32 0.0, %v2869
        %v2871 = vpop.f32.mrf.mxu0
        %v2872 = vadd.f32 0.0, %v2871
        %2873 = vmatmul.bf16.gmra.mxu0 %v2801
        %v2874 = vpop.f32.mrf.mxu0
        %v2875 = vadd.f32 0.0, %v2874
        %v2876 = vpop.f32.mrf.mxu0
        %v2877 = vadd.f32 0.0, %v2876
        %2878 = vmatmul.bf16.gmra.mxu0 %v2804
        %v2879 = vpop.f32.mrf.mxu0
        %v2880 = vadd.f32 0.0, %v2879
        %v2881 = vpop.f32.mrf.mxu0
        %v2882 = vadd.f32 0.0, %v2881
        %2883 = vmatmul.bf16.gmra.mxu0 %v2807
        %v2884 = vpop.f32.mrf.mxu0
        %v2885 = vadd.f32 0.0, %v2884
        %v2886 = vpop.f32.mrf.mxu0
        %v2887 = vadd.f32 0.0, %v2886
        %2888 = vmatmul.bf16.gmra.mxu0 %v2810
        %v2889 = vpop.f32.mrf.mxu0
        %v2890 = vadd.f32 0.0, %v2889
        %v2891 = vpop.f32.mrf.mxu0
        %v2892 = vadd.f32 0.0, %v2891
        %2893 = vmatmul.bf16.gmra.mxu0 %v2813
        %v2894 = vpop.f32.mrf.mxu0
        %v2895 = vadd.f32 0.0, %v2894
        %v2896 = vpop.f32.mrf.mxu0
        %v2897 = vadd.f32 0.0, %v2896
        %2898 = vmatmul.bf16.gmra.mxu0 %v2816
        %v2899 = vpop.f32.mrf.mxu0
        %v2900 = vadd.f32 0.0, %v2899
        %v2901 = vpop.f32.mrf.mxu0
        %v2902 = vadd.f32 0.0, %v2901
        %2903 = vmatmul.bf16.gmra.mxu0 %v2819
        %v2904 = vpop.f32.mrf.mxu0
        %v2905 = vadd.f32 0.0, %v2904
        %v2906 = vpop.f32.mrf.mxu0
        %v2907 = vadd.f32 0.0, %v2906
        %2908 = vmatmul.bf16.gmra.mxu0 %v2822
        %v2909 = vpop.f32.mrf.mxu0
        %v2910 = vadd.f32 0.0, %v2909
        %v2911 = vpop.f32.mrf.mxu0
        %v2912 = vadd.f32 0.0, %v2911
        %2913 = vmatmul.bf16.gmra.mxu0 %v2825
        %v2914 = vpop.f32.mrf.mxu0
        %v2915 = vadd.f32 0.0, %v2914
        %v2916 = vpop.f32.mrf.mxu0
        %v2917 = vadd.f32 0.0, %v2916
        %2918 = vdwg.mxu0
        %2951 = vrot.lane.b32.xlu0 %v2840, 8
        %v2952 = vpop.permute.xlu0 %2951
        %2953 = vrot.lane.b32.xlu0 %v2842, 8
        %v2954 = vpop.permute.xlu0 %2953
        %2955 = vrot.lane.b32.xlu0 %v2845, 8
        %v2956 = vpop.permute.xlu0 %2955
        %2957 = vrot.lane.b32.xlu0 %v2847, 8
        %v2958 = vpop.permute.xlu0 %2957
        %2959 = vrot.lane.b32.xlu0 %v2850, 8
        %v2960 = vpop.permute.xlu0 %2959
        %2961 = vrot.lane.b32.xlu0 %v2852, 8
        %v2962 = vpop.permute.xlu0 %2961
        %2963 = vrot.lane.b32.xlu0 %v2855, 8
        %v2964 = vpop.permute.xlu0 %2963
        %2965 = vrot.lane.b32.xlu0 %v2857, 8
        %v2966 = vpop.permute.xlu0 %2965
        %2967 = vrot.lane.b32.xlu0 %v2860, 8
        %v2968 = vpop.permute.xlu0 %2967
        %2969 = vrot.lane.b32.xlu0 %v2862, 8
        %v2970 = vpop.permute.xlu0 %2969
        %2971 = vrot.lane.b32.xlu0 %v2865, 8
        %v2972 = vpop.permute.xlu0 %2971
        %2973 = vrot.lane.b32.xlu0 %v2867, 8
        %v2974 = vpop.permute.xlu0 %2973
        %2975 = vrot.lane.b32.xlu0 %v2870, 8
        %v2976 = vpop.permute.xlu0 %2975
        %2977 = vrot.lane.b32.xlu0 %v2872, 8
        %v2978 = vpop.permute.xlu0 %2977
        %2979 = vrot.lane.b32.xlu0 %v2875, 8
        %v2980 = vpop.permute.xlu0 %2979
        %2981 = vrot.lane.b32.xlu0 %v2877, 8
        %v2982 = vpop.permute.xlu0 %2981
        %2983 = vrot.lane.b32.xlu0 %v2880, 8
        %v2984 = vpop.permute.xlu0 %2983
        %2985 = vrot.lane.b32.xlu0 %v2882, 8
        %v2986 = vpop.permute.xlu0 %2985
        %2987 = vrot.lane.b32.xlu0 %v2885, 8
        %v2988 = vpop.permute.xlu0 %2987
        %2989 = vrot.lane.b32.xlu0 %v2887, 8
        %v2990 = vpop.permute.xlu0 %2989
        %2991 = vrot.lane.b32.xlu0 %v2890, 8
        %v2992 = vpop.permute.xlu0 %2991
        %2993 = vrot.lane.b32.xlu0 %v2892, 8
        %v2994 = vpop.permute.xlu0 %2993
        %2995 = vrot.lane.b32.xlu0 %v2895, 8
        %v2996 = vpop.permute.xlu0 %2995
        %2997 = vrot.lane.b32.xlu0 %v2897, 8
        %v2998 = vpop.permute.xlu0 %2997
        %2999 = vrot.lane.b32.xlu0 %v2900, 8
        %v3000 = vpop.permute.xlu0 %2999
        %3001 = vrot.lane.b32.xlu0 %v2902, 8
        %v3002 = vpop.permute.xlu0 %3001
        %3003 = vrot.lane.b32.xlu0 %v2905, 8
        %v3004 = vpop.permute.xlu0 %3003
        %3005 = vrot.lane.b32.xlu0 %v2907, 8
        %v3006 = vpop.permute.xlu0 %3005
        %3007 = vrot.lane.b32.xlu0 %v2910, 8
        %v3008 = vpop.permute.xlu0 %3007
        %3009 = vrot.lane.b32.xlu0 %v2912, 8
        %v3010 = vpop.permute.xlu0 %3009
        %3011 = vrot.lane.b32.xlu0 %v2915, 8
        %v3012 = vpop.permute.xlu0 %3011
        %3013 = vrot.lane.b32.xlu0 %v2917, 8
        %v3014 = vpop.permute.xlu0 %3013
        %vm3047 = vcmask 130112
        %3048 = vst.msk [vmem:[#allocation2] sm:$0xff] %vm3047, %v2952
        %3049 = vst.msk [vmem:[#allocation2 + $0x8] sm:$0xff] %vm3047, %v2954
        %3050 = vst.msk [vmem:[#allocation2 + $0x10] sm:$0xff] %vm3047, %v2956
        %3051 = vst.msk [vmem:[#allocation2 + $0x18] sm:$0xff] %vm3047, %v2958
        %3052 = vst.msk [vmem:[#allocation2 + $0x20] sm:$0xff] %vm3047, %v2960
        %3053 = vst.msk [vmem:[#allocation2 + $0x28] sm:$0xff] %vm3047, %v2962
        %3054 = vst.msk [vmem:[#allocation2 + $0x30] sm:$0xff] %vm3047, %v2964
        %3055 = vst.msk [vmem:[#allocation2 + $0x38] sm:$0xff] %vm3047, %v2966
        %3056 = vst.msk [vmem:[#allocation2 + $0x40] sm:$0xff] %vm3047, %v2968
        %3057 = vst.msk [vmem:[#allocation2 + $0x48] sm:$0xff] %vm3047, %v2970
        %3058 = vst.msk [vmem:[#allocation2 + $0x50] sm:$0xff] %vm3047, %v2972
        %3059 = vst.msk [vmem:[#allocation2 + $0x58] sm:$0xff] %vm3047, %v2974
        %3060 = vst.msk [vmem:[#allocation2 + $0x60] sm:$0xff] %vm3047, %v2976
        %3061 = vst.msk [vmem:[#allocation2 + $0x68] sm:$0xff] %vm3047, %v2978
        %3062 = vst.msk [vmem:[#allocation2 + $0x70] sm:$0xff] %vm3047, %v2980
        %3063 = vst.msk [vmem:[#allocation2 + $0x78] sm:$0xff] %vm3047, %v2982
        %3064 = vst.msk [vmem:[#allocation2 + $0x80] sm:$0xff] %vm3047, %v2984
        %3065 = vst.msk [vmem:[#allocation2 + $0x88] sm:$0xff] %vm3047, %v2986
        %3066 = vst.msk [vmem:[#allocation2 + $0x90] sm:$0xff] %vm3047, %v2988
        %3067 = vst.msk [vmem:[#allocation2 + $0x98] sm:$0xff] %vm3047, %v2990
        %3068 = vst.msk [vmem:[#allocation2 + $0xa0] sm:$0xff] %vm3047, %v2992
        %3069 = vst.msk [vmem:[#allocation2 + $0xa8] sm:$0xff] %vm3047, %v2994
        %3070 = vst.msk [vmem:[#allocation2 + $0xb0] sm:$0xff] %vm3047, %v2996
        %3071 = vst.msk [vmem:[#allocation2 + $0xb8] sm:$0xff] %vm3047, %v2998
        %3072 = vst.msk [vmem:[#allocation2 + $0xc0] sm:$0xff] %vm3047, %v3000
        %3073 = vst.msk [vmem:[#allocation2 + $0xc8] sm:$0xff] %vm3047, %v3002
        %3074 = vst.msk [vmem:[#allocation2 + $0xd0] sm:$0xff] %vm3047, %v3004
        %3075 = vst.msk [vmem:[#allocation2 + $0xd8] sm:$0xff] %vm3047, %v3006
        %3076 = vst.msk [vmem:[#allocation2 + $0xe0] sm:$0xff] %vm3047, %v3008
        %3077 = vst.msk [vmem:[#allocation2 + $0xe8] sm:$0xff] %vm3047, %v3010
        %3078 = vst.msk [vmem:[#allocation2 + $0xf0] sm:$0xff] %vm3047, %v3012
        %3079 = vst.msk [vmem:[#allocation2 + $0xf8] sm:$0xff] %vm3047, %v3014
        %3080 = vrot.lane.b32.xlu0 %v1510, 112
        %v3081 = vpop.permute.xlu0 %3080
        %3082 = vrot.lane.b32.xlu0 %v1511, 112
        %v3083 = vpop.permute.xlu0 %3082
        %3084 = vrot.lane.b32.xlu0 %v1512, 112
        %v3085 = vpop.permute.xlu0 %3084
        %3086 = vrot.lane.b32.xlu0 %v1513, 112
        %v3087 = vpop.permute.xlu0 %3086
        %3088 = vrot.lane.b32.xlu0 %v1514, 112
        %v3089 = vpop.permute.xlu0 %3088
        %3090 = vrot.lane.b32.xlu0 %v1515, 112
        %v3091 = vpop.permute.xlu0 %3090
        %3092 = vrot.lane.b32.xlu0 %v1516, 112
        %v3093 = vpop.permute.xlu0 %3092
        %3094 = vrot.lane.b32.xlu0 %v1517, 112
        %v3095 = vpop.permute.xlu0 %3094
        %3096 = vrot.lane.b32.xlu0 %v1518, 112
        %v3097 = vpop.permute.xlu0 %3096
        %3098 = vrot.lane.b32.xlu0 %v1519, 112
        %v3099 = vpop.permute.xlu0 %3098
        %3100 = vrot.lane.b32.xlu0 %v1520, 112
        %v3101 = vpop.permute.xlu0 %3100
        %3102 = vrot.lane.b32.xlu0 %v1521, 112
        %v3103 = vpop.permute.xlu0 %3102
        %3104 = vrot.lane.b32.xlu0 %v1522, 112
        %v3105 = vpop.permute.xlu0 %3104
        %3106 = vrot.lane.b32.xlu0 %v1523, 112
        %v3107 = vpop.permute.xlu0 %3106
        %3108 = vrot.lane.b32.xlu0 %v1524, 112
        %v3109 = vpop.permute.xlu0 %3108
        %3110 = vrot.lane.b32.xlu0 %v1525, 112
        %v3111 = vpop.permute.xlu0 %3110
        %3112 = vrot.lane.b32.xlu0 %v1532, 112
        %v3113 = vpop.permute.xlu0 %3112
        %3114 = vrot.lane.b32.xlu0 %v1533, 112
        %v3115 = vpop.permute.xlu0 %3114
        %v3117 = vsel %vm1534, %v3081, 0
        %v3120 = vsel %vm1534, %v3083, 0
        %v3123 = vsel %vm1534, %v3085, 0
        %v3126 = vsel %vm1534, %v3087, 0
        %v3129 = vsel %vm1534, %v3089, 0
        %v3132 = vsel %vm1534, %v3091, 0
        %v3135 = vsel %vm1534, %v3093, 0
        %v3138 = vsel %vm1534, %v3095, 0
        %v3141 = vsel %vm1534, %v3097, 0
        %v3144 = vsel %vm1534, %v3099, 0
        %v3147 = vsel %vm1534, %v3101, 0
        %v3150 = vsel %vm1534, %v3103, 0
        %v3153 = vsel %vm1534, %v3105, 0
        %v3156 = vsel %vm1534, %v3107, 0
        %v3159 = vsel %vm1534, %v3109, 0
        %v3162 = vsel %vm1534, %v3111, 0
        %v3165 = vsel %vm1534, %v3113, 0
        %v3168 = vsel %vm1534, %v3115, 0
        %3170 = vmatpush.bf16.xpose.msra.mxu0 0
        %3171 = vmatpush.bf16.xpose.msra.mxu0 0
        %3172 = vmatpush.bf16.xpose.msra.mxu0 0
        %3173 = vmatpush.bf16.xpose.msra.mxu0 0
        %3174 = vmatpush.bf16.xpose.msra.mxu0 0
        %3175 = vmatpush.bf16.xpose.msra.mxu0 0
        %3176 = vmatpush.bf16.xpose.msra.mxu0 %v3168
        %3177 = vmatpush.bf16.xpose.msra.mxu0 %v3165
        %3178 = vmatmul.bf16.gmra.mxu0 %v3117
        %v3179 = vpop.f32.mrf.mxu0
        %v3180 = vadd.f32 %v1379, %v3179
        %v3181 = vpop.f32.mrf.mxu0
        %v3182 = vadd.f32 %v1380, %v3181
        %3183 = vmatmul.bf16.gmra.mxu0 %v3120
        %v3184 = vpop.f32.mrf.mxu0
        %v3185 = vadd.f32 %v1381, %v3184
        %v3186 = vpop.f32.mrf.mxu0
        %v3187 = vadd.f32 %v1382, %v3186
        %3188 = vmatmul.bf16.gmra.mxu0 %v3123
        %v3189 = vpop.f32.mrf.mxu0
        %v3190 = vadd.f32 %v1383, %v3189
        %v3191 = vpop.f32.mrf.mxu0
        %v3192 = vadd.f32 %v1384, %v3191
        %3193 = vmatmul.bf16.gmra.mxu0 %v3126
        %v3194 = vpop.f32.mrf.mxu0
        %v3195 = vadd.f32 %v1385, %v3194
        %v3196 = vpop.f32.mrf.mxu0
        %v3197 = vadd.f32 %v1386, %v3196
        %3198 = vmatmul.bf16.gmra.mxu0 %v3129
        %v3199 = vpop.f32.mrf.mxu0
        %v3200 = vadd.f32 %v1387, %v3199
        %v3201 = vpop.f32.mrf.mxu0
        %v3202 = vadd.f32 %v1388, %v3201
        %3203 = vmatmul.bf16.gmra.mxu0 %v3132
        %v3204 = vpop.f32.mrf.mxu0
        %v3205 = vadd.f32 %v1389, %v3204
        %v3206 = vpop.f32.mrf.mxu0
        %v3207 = vadd.f32 %v1390, %v3206
        %3208 = vmatmul.bf16.gmra.mxu0 %v3135
        %v3209 = vpop.f32.mrf.mxu0
        %v3210 = vadd.f32 %v1391, %v3209
        %v3211 = vpop.f32.mrf.mxu0
        %v3212 = vadd.f32 %v1392, %v3211
        %3213 = vmatmul.bf16.gmra.mxu0 %v3138
        %v3214 = vpop.f32.mrf.mxu0
        %v3215 = vadd.f32 %v1393, %v3214
        %v3216 = vpop.f32.mrf.mxu0
        %v3217 = vadd.f32 %v1394, %v3216
        %3218 = vmatmul.bf16.gmra.mxu0 %v3141
        %v3219 = vpop.f32.mrf.mxu0
        %v3220 = vadd.f32 %v1395, %v3219
        %v3221 = vpop.f32.mrf.mxu0
        %v3222 = vadd.f32 %v1396, %v3221
        %3223 = vmatmul.bf16.gmra.mxu0 %v3144
        %v3224 = vpop.f32.mrf.mxu0
        %v3225 = vadd.f32 %v1397, %v3224
        %v3226 = vpop.f32.mrf.mxu0
        %v3227 = vadd.f32 %v1398, %v3226
        %3228 = vmatmul.bf16.gmra.mxu0 %v3147
        %v3229 = vpop.f32.mrf.mxu0
        %v3230 = vadd.f32 %v1399, %v3229
        %v3231 = vpop.f32.mrf.mxu0
        %v3232 = vadd.f32 %v1400, %v3231
        %3233 = vmatmul.bf16.gmra.mxu0 %v3150
        %v3234 = vpop.f32.mrf.mxu0
        %v3235 = vadd.f32 %v1401, %v3234
        %v3236 = vpop.f32.mrf.mxu0
        %v3237 = vadd.f32 %v1402, %v3236
        %3238 = vmatmul.bf16.gmra.mxu0 %v3153
        %v3239 = vpop.f32.mrf.mxu0
        %v3240 = vadd.f32 %v1403, %v3239
        %v3241 = vpop.f32.mrf.mxu0
        %v3242 = vadd.f32 %v1404, %v3241
        %3243 = vmatmul.bf16.gmra.mxu0 %v3156
        %v3244 = vpop.f32.mrf.mxu0
        %v3245 = vadd.f32 %v1405, %v3244
        %v3246 = vpop.f32.mrf.mxu0
        %v3247 = vadd.f32 %v1406, %v3246
        %3248 = vmatmul.bf16.gmra.mxu0 %v3159
        %v3249 = vpop.f32.mrf.mxu0
        %v3250 = vadd.f32 %v1407, %v3249
        %v3251 = vpop.f32.mrf.mxu0
        %v3252 = vadd.f32 %v1408, %v3251
        %3253 = vmatmul.bf16.gmra.mxu0 %v3162
        %v3254 = vpop.f32.mrf.mxu0
        %v3255 = vadd.f32 %v1409, %v3254
        %v3256 = vpop.f32.mrf.mxu0
        %v3257 = vadd.f32 %v1410, %v3256
        %3258 = vdwg.mxu0
        %v3259 = vsel %vm1678, %v3180, -inf
        %3260 = vmax.xlane.f32.xlu0 %v3259
        %v3261 = vpop.xlane.xlu0 %3260
        %v3262 = vsel %vm1678, %v3182, -inf
        %3263 = vmax.xlane.f32.xlu0 %v3262
        %v3264 = vpop.xlane.xlu0 %3263
        %v3265 = vsel %vm1678, %v3185, -inf
        %3266 = vmax.xlane.f32.xlu0 %v3265
        %v3267 = vpop.xlane.xlu0 %3266
        %v3268 = vsel %vm1678, %v3187, -inf
        %3269 = vmax.xlane.f32.xlu0 %v3268
        %v3270 = vpop.xlane.xlu0 %3269
        %v3271 = vsel %vm1678, %v3190, -inf
        %3272 = vmax.xlane.f32.xlu0 %v3271
        %v3273 = vpop.xlane.xlu0 %3272
        %v3274 = vsel %vm1678, %v3192, -inf
        %3275 = vmax.xlane.f32.xlu0 %v3274
        %v3276 = vpop.xlane.xlu0 %3275
        %v3277 = vsel %vm1678, %v3195, -inf
        %3278 = vmax.xlane.f32.xlu0 %v3277
        %v3279 = vpop.xlane.xlu0 %3278
        %v3280 = vsel %vm1678, %v3197, -inf
        %3281 = vmax.xlane.f32.xlu0 %v3280
        %v3282 = vpop.xlane.xlu0 %3281
        %v3283 = vsel %vm1678, %v3200, -inf
        %3284 = vmax.xlane.f32.xlu0 %v3283
        %v3285 = vpop.xlane.xlu0 %3284
        %v3286 = vsel %vm1678, %v3202, -inf
        %3287 = vmax.xlane.f32.xlu0 %v3286
        %v3288 = vpop.xlane.xlu0 %3287
        %v3289 = vsel %vm1678, %v3205, -inf
        %3290 = vmax.xlane.f32.xlu0 %v3289
        %v3291 = vpop.xlane.xlu0 %3290
        %v3292 = vsel %vm1678, %v3207, -inf
        %3293 = vmax.xlane.f32.xlu0 %v3292
        %v3294 = vpop.xlane.xlu0 %3293
        %v3295 = vsel %vm1678, %v3210, -inf
        %3296 = vmax.xlane.f32.xlu0 %v3295
        %v3297 = vpop.xlane.xlu0 %3296
        %v3298 = vsel %vm1678, %v3212, -inf
        %3299 = vmax.xlane.f32.xlu0 %v3298
        %v3300 = vpop.xlane.xlu0 %3299
        %v3301 = vsel %vm1678, %v3215, -inf
        %3302 = vmax.xlane.f32.xlu0 %v3301
        %v3303 = vpop.xlane.xlu0 %3302
        %v3304 = vsel %vm1678, %v3217, -inf
        %3305 = vmax.xlane.f32.xlu0 %v3304
        %v3306 = vpop.xlane.xlu0 %3305
        %v3307 = vsel %vm1678, %v3220, -inf
        %3308 = vmax.xlane.f32.xlu0 %v3307
        %v3309 = vpop.xlane.xlu0 %3308
        %v3310 = vsel %vm1678, %v3222, -inf
        %3311 = vmax.xlane.f32.xlu0 %v3310
        %v3312 = vpop.xlane.xlu0 %3311
        %v3313 = vsel %vm1678, %v3225, -inf
        %3314 = vmax.xlane.f32.xlu0 %v3313
        %v3315 = vpop.xlane.xlu0 %3314
        %v3316 = vsel %vm1678, %v3227, -inf
        %3317 = vmax.xlane.f32.xlu0 %v3316
        %v3318 = vpop.xlane.xlu0 %3317
        %v3319 = vsel %vm1678, %v3230, -inf
        %3320 = vmax.xlane.f32.xlu0 %v3319
        %v3321 = vpop.xlane.xlu0 %3320
        %v3322 = vsel %vm1678, %v3232, -inf
        %3323 = vmax.xlane.f32.xlu0 %v3322
        %v3324 = vpop.xlane.xlu0 %3323
        %v3325 = vsel %vm1678, %v3235, -inf
        %3326 = vmax.xlane.f32.xlu0 %v3325
        %v3327 = vpop.xlane.xlu0 %3326
        %v3328 = vsel %vm1678, %v3237, -inf
        %3329 = vmax.xlane.f32.xlu0 %v3328
        %v3330 = vpop.xlane.xlu0 %3329
        %v3331 = vsel %vm1678, %v3240, -inf
        %3332 = vmax.xlane.f32.xlu0 %v3331
        %v3333 = vpop.xlane.xlu0 %3332
        %v3334 = vsel %vm1678, %v3242, -inf
        %3335 = vmax.xlane.f32.xlu0 %v3334
        %v3336 = vpop.xlane.xlu0 %3335
        %v3337 = vsel %vm1678, %v3245, -inf
        %3338 = vmax.xlane.f32.xlu0 %v3337
        %v3339 = vpop.xlane.xlu0 %3338
        %v3340 = vsel %vm1678, %v3247, -inf
        %3341 = vmax.xlane.f32.xlu0 %v3340
        %v3342 = vpop.xlane.xlu0 %3341
        %v3343 = vsel %vm1678, %v3250, -inf
        %3344 = vmax.xlane.f32.xlu0 %v3343
        %v3345 = vpop.xlane.xlu0 %3344
        %v3346 = vsel %vm1678, %v3252, -inf
        %3347 = vmax.xlane.f32.xlu0 %v3346
        %v3348 = vpop.xlane.xlu0 %3347
        %v3349 = vsel %vm1678, %v3255, -inf
        %3350 = vmax.xlane.f32.xlu0 %v3349
        %v3351 = vpop.xlane.xlu0 %3350
        %v3352 = vsel %vm1678, %v3257, -inf
        %3353 = vmax.xlane.f32.xlu0 %v3352
        %v3354 = vpop.xlane.xlu0 %3353
        %v3355 = vsub.f32 %v3180, %v3261
        %v3356 = vsub.f32 %v3182, %v3264
        %v3357 = vsub.f32 %v3185, %v3267
        %v3358 = vsub.f32 %v3187, %v3270
        %v3359 = vsub.f32 %v3190, %v3273
        %v3360 = vsub.f32 %v3192, %v3276
        %v3361 = vsub.f32 %v3195, %v3279
        %v3362 = vsub.f32 %v3197, %v3282
        %v3363 = vsub.f32 %v3200, %v3285
        %v3364 = vsub.f32 %v3202, %v3288
        %v3365 = vsub.f32 %v3205, %v3291
        %v3366 = vsub.f32 %v3207, %v3294
        %v3367 = vsub.f32 %v3210, %v3297
        %v3368 = vsub.f32 %v3212, %v3300
        %v3369 = vsub.f32 %v3215, %v3303
        %v3370 = vsub.f32 %v3217, %v3306
        %v3371 = vsub.f32 %v3220, %v3309
        %v3372 = vsub.f32 %v3222, %v3312
        %v3373 = vsub.f32 %v3225, %v3315
        %v3374 = vsub.f32 %v3227, %v3318
        %v3375 = vsub.f32 %v3230, %v3321
        %v3376 = vsub.f32 %v3232, %v3324
        %v3377 = vsub.f32 %v3235, %v3327
        %v3378 = vsub.f32 %v3237, %v3330
        %v3379 = vsub.f32 %v3240, %v3333
        %v3380 = vsub.f32 %v3242, %v3336
        %v3381 = vsub.f32 %v3245, %v3339
        %v3382 = vsub.f32 %v3247, %v3342
        %v3383 = vsub.f32 %v3250, %v3345
        %v3384 = vsub.f32 %v3252, %v3348
        %v3385 = vsub.f32 %v3255, %v3351
        %v3386 = vsub.f32 %v3257, %v3354
        %v3387 = vmul.f32 %v3355, 1.442695
        %v3388 = vpow.pop %v3387
        %v3389 = vmul.f32 %v3356, 1.442695
        %v3390 = vpow.pop %v3389
        %v3391 = vmul.f32 %v3357, 1.442695
        %v3392 = vpow.pop %v3391
        %v3393 = vmul.f32 %v3358, 1.442695
        %v3394 = vpow.pop %v3393
        %v3395 = vmul.f32 %v3359, 1.442695
        %v3396 = vpow.pop %v3395
        %v3397 = vmul.f32 %v3360, 1.442695
        %v3398 = vpow.pop %v3397
        %v3399 = vmul.f32 %v3361, 1.442695
        %v3400 = vpow.pop %v3399
        %v3401 = vmul.f32 %v3362, 1.442695
        %v3402 = vpow.pop %v3401
        %v3403 = vmul.f32 %v3363, 1.442695
        %v3404 = vpow.pop %v3403
        %v3405 = vmul.f32 %v3364, 1.442695
        %v3406 = vpow.pop %v3405
        %v3407 = vmul.f32 %v3365, 1.442695
        %v3408 = vpow.pop %v3407
        %v3409 = vmul.f32 %v3366, 1.442695
        %v3410 = vpow.pop %v3409
        %v3411 = vmul.f32 %v3367, 1.442695
        %v3412 = vpow.pop %v3411
        %v3413 = vmul.f32 %v3368, 1.442695
        %v3414 = vpow.pop %v3413
        %v3415 = vmul.f32 %v3369, 1.442695
        %v3416 = vpow.pop %v3415
        %v3417 = vmul.f32 %v3370, 1.442695
        %v3418 = vpow.pop %v3417
        %v3419 = vmul.f32 %v3371, 1.442695
        %v3420 = vpow.pop %v3419
        %v3421 = vmul.f32 %v3372, 1.442695
        %v3422 = vpow.pop %v3421
        %v3423 = vmul.f32 %v3373, 1.442695
        %v3424 = vpow.pop %v3423
        %v3425 = vmul.f32 %v3374, 1.442695
        %v3426 = vpow.pop %v3425
        %v3427 = vmul.f32 %v3375, 1.442695
        %v3428 = vpow.pop %v3427
        %v3429 = vmul.f32 %v3376, 1.442695
        %v3430 = vpow.pop %v3429
        %v3431 = vmul.f32 %v3377, 1.442695
        %v3432 = vpow.pop %v3431
        %v3433 = vmul.f32 %v3378, 1.442695
        %v3434 = vpow.pop %v3433
        %v3435 = vmul.f32 %v3379, 1.442695
        %v3436 = vpow.pop %v3435
        %v3437 = vmul.f32 %v3380, 1.442695
        %v3438 = vpow.pop %v3437
        %v3439 = vmul.f32 %v3381, 1.442695
        %v3440 = vpow.pop %v3439
        %v3441 = vmul.f32 %v3382, 1.442695
        %v3442 = vpow.pop %v3441
        %v3443 = vmul.f32 %v3383, 1.442695
        %v3444 = vpow.pop %v3443
        %v3445 = vmul.f32 %v3384, 1.442695
        %v3446 = vpow.pop %v3445
        %v3447 = vmul.f32 %v3385, 1.442695
        %v3448 = vpow.pop %v3447
        %v3449 = vmul.f32 %v3386, 1.442695
        %v3450 = vpow.pop %v3449
        %v3451 = vsel %vm1678, %v3388, 0.0
        %3452 = vadd.xlane.f32.xlu0 %v3451
        %v3453 = vpop.xlane.xlu0 %3452
        %v3454 = vsel %vm1678, %v3390, 0.0
        %3455 = vadd.xlane.f32.xlu0 %v3454
        %v3456 = vpop.xlane.xlu0 %3455
        %v3457 = vsel %vm1678, %v3392, 0.0
        %3458 = vadd.xlane.f32.xlu0 %v3457
        %v3459 = vpop.xlane.xlu0 %3458
        %v3460 = vsel %vm1678, %v3394, 0.0
        %3461 = vadd.xlane.f32.xlu0 %v3460
        %v3462 = vpop.xlane.xlu0 %3461
        %v3463 = vsel %vm1678, %v3396, 0.0
        %3464 = vadd.xlane.f32.xlu0 %v3463
        %v3465 = vpop.xlane.xlu0 %3464
        %v3466 = vsel %vm1678, %v3398, 0.0
        %3467 = vadd.xlane.f32.xlu0 %v3466
        %v3468 = vpop.xlane.xlu0 %3467
        %v3469 = vsel %vm1678, %v3400, 0.0
        %3470 = vadd.xlane.f32.xlu0 %v3469
        %v3471 = vpop.xlane.xlu0 %3470
        %v3472 = vsel %vm1678, %v3402, 0.0
        %3473 = vadd.xlane.f32.xlu0 %v3472
        %v3474 = vpop.xlane.xlu0 %3473
        %v3475 = vsel %vm1678, %v3404, 0.0
        %3476 = vadd.xlane.f32.xlu0 %v3475
        %v3477 = vpop.xlane.xlu0 %3476
        %v3478 = vsel %vm1678, %v3406, 0.0
        %3479 = vadd.xlane.f32.xlu0 %v3478
        %v3480 = vpop.xlane.xlu0 %3479
        %v3481 = vsel %vm1678, %v3408, 0.0
        %3482 = vadd.xlane.f32.xlu0 %v3481
        %v3483 = vpop.xlane.xlu0 %3482
        %v3484 = vsel %vm1678, %v3410, 0.0
        %3485 = vadd.xlane.f32.xlu0 %v3484
        %v3486 = vpop.xlane.xlu0 %3485
        %v3487 = vsel %vm1678, %v3412, 0.0
        %3488 = vadd.xlane.f32.xlu0 %v3487
        %v3489 = vpop.xlane.xlu0 %3488
        %v3490 = vsel %vm1678, %v3414, 0.0
        %3491 = vadd.xlane.f32.xlu0 %v3490
        %v3492 = vpop.xlane.xlu0 %3491
        %v3493 = vsel %vm1678, %v3416, 0.0
        %3494 = vadd.xlane.f32.xlu0 %v3493
        %v3495 = vpop.xlane.xlu0 %3494
        %v3496 = vsel %vm1678, %v3418, 0.0
        %3497 = vadd.xlane.f32.xlu0 %v3496
        %v3498 = vpop.xlane.xlu0 %3497
        %v3499 = vsel %vm1678, %v3420, 0.0
        %3500 = vadd.xlane.f32.xlu0 %v3499
        %v3501 = vpop.xlane.xlu0 %3500
        %v3502 = vsel %vm1678, %v3422, 0.0
        %3503 = vadd.xlane.f32.xlu0 %v3502
        %v3504 = vpop.xlane.xlu0 %3503
        %v3505 = vsel %vm1678, %v3424, 0.0
        %3506 = vadd.xlane.f32.xlu0 %v3505
        %v3507 = vpop.xlane.xlu0 %3506
        %v3508 = vsel %vm1678, %v3426, 0.0
        %3509 = vadd.xlane.f32.xlu0 %v3508
        %v3510 = vpop.xlane.xlu0 %3509
        %v3511 = vsel %vm1678, %v3428, 0.0
        %3512 = vadd.xlane.f32.xlu0 %v3511
        %v3513 = vpop.xlane.xlu0 %3512
        %v3514 = vsel %vm1678, %v3430, 0.0
        %3515 = vadd.xlane.f32.xlu0 %v3514
        %v3516 = vpop.xlane.xlu0 %3515
        %v3517 = vsel %vm1678, %v3432, 0.0
        %3518 = vadd.xlane.f32.xlu0 %v3517
        %v3519 = vpop.xlane.xlu0 %3518
        %v3520 = vsel %vm1678, %v3434, 0.0
        %3521 = vadd.xlane.f32.xlu0 %v3520
        %v3522 = vpop.xlane.xlu0 %3521
        %v3523 = vsel %vm1678, %v3436, 0.0
        %3524 = vadd.xlane.f32.xlu0 %v3523
        %v3525 = vpop.xlane.xlu0 %3524
        %v3526 = vsel %vm1678, %v3438, 0.0
        %3527 = vadd.xlane.f32.xlu0 %v3526
        %v3528 = vpop.xlane.xlu0 %3527
        %v3529 = vsel %vm1678, %v3440, 0.0
        %3530 = vadd.xlane.f32.xlu0 %v3529
        %v3531 = vpop.xlane.xlu0 %3530
        %v3532 = vsel %vm1678, %v3442, 0.0
        %3533 = vadd.xlane.f32.xlu0 %v3532
        %v3534 = vpop.xlane.xlu0 %3533
        %v3535 = vsel %vm1678, %v3444, 0.0
        %3536 = vadd.xlane.f32.xlu0 %v3535
        %v3537 = vpop.xlane.xlu0 %3536
        %v3538 = vsel %vm1678, %v3446, 0.0
        %3539 = vadd.xlane.f32.xlu0 %v3538
        %v3540 = vpop.xlane.xlu0 %3539
        %v3541 = vsel %vm1678, %v3448, 0.0
        %3542 = vadd.xlane.f32.xlu0 %v3541
        %v3543 = vpop.xlane.xlu0 %3542
        %v3544 = vsel %vm1678, %v3450, 0.0
        %3545 = vadd.xlane.f32.xlu0 %v3544
        %v3546 = vpop.xlane.xlu0 %3545
        %v3547 = vrcp.pop %v3453
        %v3548 = vrcp.pop %v3456
        %v3549 = vrcp.pop %v3459
        %v3550 = vrcp.pop %v3462
        %v3551 = vrcp.pop %v3465
        %v3552 = vrcp.pop %v3468
        %v3553 = vrcp.pop %v3471
        %v3554 = vrcp.pop %v3474
        %v3555 = vrcp.pop %v3477
        %v3556 = vrcp.pop %v3480
        %v3557 = vrcp.pop %v3483
        %v3558 = vrcp.pop %v3486
        %v3559 = vrcp.pop %v3489
        %v3560 = vrcp.pop %v3492
        %v3561 = vrcp.pop %v3495
        %v3562 = vrcp.pop %v3498
        %v3563 = vrcp.pop %v3501
        %v3564 = vrcp.pop %v3504
        %v3565 = vrcp.pop %v3507
        %v3566 = vrcp.pop %v3510
        %v3567 = vrcp.pop %v3513
        %v3568 = vrcp.pop %v3516
        %v3569 = vrcp.pop %v3519
        %v3570 = vrcp.pop %v3522
        %v3571 = vrcp.pop %v3525
        %v3572 = vrcp.pop %v3528
        %v3573 = vrcp.pop %v3531
        %v3574 = vrcp.pop %v3534
        %v3575 = vrcp.pop %v3537
        %v3576 = vrcp.pop %v3540
        %v3577 = vrcp.pop %v3543
        %v3578 = vrcp.pop %v3546
        %v3579 = vmul.f32 %v3388, %v3547
        %v3580 = vmul.f32 %v3390, %v3548
        %v3581 = vmul.f32 %v3392, %v3549
        %v3582 = vmul.f32 %v3394, %v3550
        %v3583 = vmul.f32 %v3396, %v3551
        %v3584 = vmul.f32 %v3398, %v3552
        %v3585 = vmul.f32 %v3400, %v3553
        %v3586 = vmul.f32 %v3402, %v3554
        %v3587 = vmul.f32 %v3404, %v3555
        %v3588 = vmul.f32 %v3406, %v3556
        %v3589 = vmul.f32 %v3408, %v3557
        %v3590 = vmul.f32 %v3410, %v3558
        %v3591 = vmul.f32 %v3412, %v3559
        %v3592 = vmul.f32 %v3414, %v3560
        %v3593 = vmul.f32 %v3416, %v3561
        %v3594 = vmul.f32 %v3418, %v3562
        %v3595 = vmul.f32 %v3420, %v3563
        %v3596 = vmul.f32 %v3422, %v3564
        %v3597 = vmul.f32 %v3424, %v3565
        %v3598 = vmul.f32 %v3426, %v3566
        %v3599 = vmul.f32 %v3428, %v3567
        %v3600 = vmul.f32 %v3430, %v3568
        %v3601 = vmul.f32 %v3432, %v3569
        %v3602 = vmul.f32 %v3434, %v3570
        %v3603 = vmul.f32 %v3436, %v3571
        %v3604 = vmul.f32 %v3438, %v3572
        %v3605 = vmul.f32 %v3440, %v3573
        %v3606 = vmul.f32 %v3442, %v3574
        %v3607 = vmul.f32 %v3444, %v3575
        %v3608 = vmul.f32 %v3446, %v3576
        %v3609 = vmul.f32 %v3448, %v3577
        %v3610 = vmul.f32 %v3450, %v3578
        %v3611 = vpack.c.bf16 %v3580, %v3579
        %v3612 = vpack.c.bf16 %v3582, %v3581
        %v3613 = vpack.c.bf16 %v3584, %v3583
        %v3614 = vpack.c.bf16 %v3586, %v3585
        %v3615 = vpack.c.bf16 %v3588, %v3587
        %v3616 = vpack.c.bf16 %v3590, %v3589
        %v3617 = vpack.c.bf16 %v3592, %v3591
        %v3618 = vpack.c.bf16 %v3594, %v3593
        %v3619 = vpack.c.bf16 %v3596, %v3595
        %v3620 = vpack.c.bf16 %v3598, %v3597
        %v3621 = vpack.c.bf16 %v3600, %v3599
        %v3622 = vpack.c.bf16 %v3602, %v3601
        %v3623 = vpack.c.bf16 %v3604, %v3603
        %v3624 = vpack.c.bf16 %v3606, %v3605
        %v3625 = vpack.c.bf16 %v3608, %v3607
        %v3626 = vpack.c.bf16 %v3610, %v3609
        %3627 = vrot.lane.b32.xlu0 %v1532, 80
        %v3628 = vpop.permute.xlu0 %3627
        %3629 = vrot.lane.b32.xlu0 %v1533, 80
        %v3630 = vpop.permute.xlu0 %3629
        %v3633 = vsel %vm1678, %v3611, 0
        %v3636 = vsel %vm1678, %v3612, 0
        %v3639 = vsel %vm1678, %v3613, 0
        %v3642 = vsel %vm1678, %v3614, 0
        %v3645 = vsel %vm1678, %v3615, 0
        %v3648 = vsel %vm1678, %v3616, 0
        %v3651 = vsel %vm1678, %v3617, 0
        %v3654 = vsel %vm1678, %v3618, 0
        %v3657 = vsel %vm1678, %v3619, 0
        %v3660 = vsel %vm1678, %v3620, 0
        %v3663 = vsel %vm1678, %v3621, 0
        %v3666 = vsel %vm1678, %v3622, 0
        %v3669 = vsel %vm1678, %v3623, 0
        %v3672 = vsel %vm1678, %v3624, 0
        %v3675 = vsel %vm1678, %v3625, 0
        %v3678 = vsel %vm1678, %v3626, 0
        %v3681 = vand.u32 %v3630, %v2102
        %3683 = vmatpush.bf16.msra.mxu0 0
        %3684 = vmatpush.bf16.msra.mxu0 0
        %3685 = vmatpush.bf16.msra.mxu0 0
        %3686 = vmatpush.bf16.msra.mxu0 0
        %3687 = vmatpush.bf16.msra.mxu0 0
        %3688 = vmatpush.bf16.msra.mxu0 0
        %3689 = vmatpush.bf16.msra.mxu0 %v3681
        %3690 = vmatpush.bf16.msra.mxu0 %v3628
        %3691 = vmatmul.bf16.gmra.mxu0 %v3633
        %v3692 = vpop.f32.mrf.mxu0
        %v3693 = vadd.f32 0.0, %v3692
        %v3694 = vpop.f32.mrf.mxu0
        %v3695 = vadd.f32 0.0, %v3694
        %3696 = vmatmul.bf16.gmra.mxu0 %v3636
        %v3697 = vpop.f32.mrf.mxu0
        %v3698 = vadd.f32 0.0, %v3697
        %v3699 = vpop.f32.mrf.mxu0
        %v3700 = vadd.f32 0.0, %v3699
        %3701 = vmatmul.bf16.gmra.mxu0 %v3639
        %v3702 = vpop.f32.mrf.mxu0
        %v3703 = vadd.f32 0.0, %v3702
        %v3704 = vpop.f32.mrf.mxu0
        %v3705 = vadd.f32 0.0, %v3704
        %3706 = vmatmul.bf16.gmra.mxu0 %v3642
        %v3707 = vpop.f32.mrf.mxu0
        %v3708 = vadd.f32 0.0, %v3707
        %v3709 = vpop.f32.mrf.mxu0
        %v3710 = vadd.f32 0.0, %v3709
        %3711 = vmatmul.bf16.gmra.mxu0 %v3645
        %v3712 = vpop.f32.mrf.mxu0
        %v3713 = vadd.f32 0.0, %v3712
        %v3714 = vpop.f32.mrf.mxu0
        %v3715 = vadd.f32 0.0, %v3714
        %3716 = vmatmul.bf16.gmra.mxu0 %v3648
        %v3717 = vpop.f32.mrf.mxu0
        %v3718 = vadd.f32 0.0, %v3717
        %v3719 = vpop.f32.mrf.mxu0
        %v3720 = vadd.f32 0.0, %v3719
        %3721 = vmatmul.bf16.gmra.mxu0 %v3651
        %v3722 = vpop.f32.mrf.mxu0
        %v3723 = vadd.f32 0.0, %v3722
        %v3724 = vpop.f32.mrf.mxu0
        %v3725 = vadd.f32 0.0, %v3724
        %3726 = vmatmul.bf16.gmra.mxu0 %v3654
        %v3727 = vpop.f32.mrf.mxu0
        %v3728 = vadd.f32 0.0, %v3727
        %v3729 = vpop.f32.mrf.mxu0
        %v3730 = vadd.f32 0.0, %v3729
        %3731 = vmatmul.bf16.gmra.mxu0 %v3657
        %v3732 = vpop.f32.mrf.mxu0
        %v3733 = vadd.f32 0.0, %v3732
        %v3734 = vpop.f32.mrf.mxu0
        %v3735 = vadd.f32 0.0, %v3734
        %3736 = vmatmul.bf16.gmra.mxu0 %v3660
        %v3737 = vpop.f32.mrf.mxu0
        %v3738 = vadd.f32 0.0, %v3737
        %v3739 = vpop.f32.mrf.mxu0
        %v3740 = vadd.f32 0.0, %v3739
        %3741 = vmatmul.bf16.gmra.mxu0 %v3663
        %v3742 = vpop.f32.mrf.mxu0
        %v3743 = vadd.f32 0.0, %v3742
        %v3744 = vpop.f32.mrf.mxu0
        %v3745 = vadd.f32 0.0, %v3744
        %3746 = vmatmul.bf16.gmra.mxu0 %v3666
        %v3747 = vpop.f32.mrf.mxu0
        %v3748 = vadd.f32 0.0, %v3747
        %v3749 = vpop.f32.mrf.mxu0
        %v3750 = vadd.f32 0.0, %v3749
        %3751 = vmatmul.bf16.gmra.mxu0 %v3669
        %v3752 = vpop.f32.mrf.mxu0
        %v3753 = vadd.f32 0.0, %v3752
        %v3754 = vpop.f32.mrf.mxu0
        %v3755 = vadd.f32 0.0, %v3754
        %3756 = vmatmul.bf16.gmra.mxu0 %v3672
        %v3757 = vpop.f32.mrf.mxu0
        %v3758 = vadd.f32 0.0, %v3757
        %v3759 = vpop.f32.mrf.mxu0
        %v3760 = vadd.f32 0.0, %v3759
        %3761 = vmatmul.bf16.gmra.mxu0 %v3675
        %v3762 = vpop.f32.mrf.mxu0
        %v3763 = vadd.f32 0.0, %v3762
        %v3764 = vpop.f32.mrf.mxu0
        %v3765 = vadd.f32 0.0, %v3764
        %3766 = vmatmul.bf16.gmra.mxu0 %v3678
        %v3767 = vpop.f32.mrf.mxu0
        %v3768 = vadd.f32 0.0, %v3767
        %v3769 = vpop.f32.mrf.mxu0
        %v3770 = vadd.f32 0.0, %v3769
        %3771 = vdwg.mxu0
        %3804 = vrot.lane.b32.xlu0 %v3693, 16
        %v3805 = vpop.permute.xlu0 %3804
        %3806 = vrot.lane.b32.xlu0 %v3695, 16
        %v3807 = vpop.permute.xlu0 %3806
        %3808 = vrot.lane.b32.xlu0 %v3698, 16
        %v3809 = vpop.permute.xlu0 %3808
        %3810 = vrot.lane.b32.xlu0 %v3700, 16
        %v3811 = vpop.permute.xlu0 %3810
        %3812 = vrot.lane.b32.xlu0 %v3703, 16
        %v3813 = vpop.permute.xlu0 %3812
        %3814 = vrot.lane.b32.xlu0 %v3705, 16
        %v3815 = vpop.permute.xlu0 %3814
        %3816 = vrot.lane.b32.xlu0 %v3708, 16
        %v3817 = vpop.permute.xlu0 %3816
        %3818 = vrot.lane.b32.xlu0 %v3710, 16
        %v3819 = vpop.permute.xlu0 %3818
        %3820 = vrot.lane.b32.xlu0 %v3713, 16
        %v3821 = vpop.permute.xlu0 %3820
        %3822 = vrot.lane.b32.xlu0 %v3715, 16
        %v3823 = vpop.permute.xlu0 %3822
        %3824 = vrot.lane.b32.xlu0 %v3718, 16
        %v3825 = vpop.permute.xlu0 %3824
        %3826 = vrot.lane.b32.xlu0 %v3720, 16
        %v3827 = vpop.permute.xlu0 %3826
        %3828 = vrot.lane.b32.xlu0 %v3723, 16
        %v3829 = vpop.permute.xlu0 %3828
        %3830 = vrot.lane.b32.xlu0 %v3725, 16
        %v3831 = vpop.permute.xlu0 %3830
        %3832 = vrot.lane.b32.xlu0 %v3728, 16
        %v3833 = vpop.permute.xlu0 %3832
        %3834 = vrot.lane.b32.xlu0 %v3730, 16
        %v3835 = vpop.permute.xlu0 %3834
        %3836 = vrot.lane.b32.xlu0 %v3733, 16
        %v3837 = vpop.permute.xlu0 %3836
        %3838 = vrot.lane.b32.xlu0 %v3735, 16
        %v3839 = vpop.permute.xlu0 %3838
        %3840 = vrot.lane.b32.xlu0 %v3738, 16
        %v3841 = vpop.permute.xlu0 %3840
        %3842 = vrot.lane.b32.xlu0 %v3740, 16
        %v3843 = vpop.permute.xlu0 %3842
        %3844 = vrot.lane.b32.xlu0 %v3743, 16
        %v3845 = vpop.permute.xlu0 %3844
        %3846 = vrot.lane.b32.xlu0 %v3745, 16
        %v3847 = vpop.permute.xlu0 %3846
        %3848 = vrot.lane.b32.xlu0 %v3748, 16
        %v3849 = vpop.permute.xlu0 %3848
        %3850 = vrot.lane.b32.xlu0 %v3750, 16
        %v3851 = vpop.permute.xlu0 %3850
        %3852 = vrot.lane.b32.xlu0 %v3753, 16
        %v3853 = vpop.permute.xlu0 %3852
        %3854 = vrot.lane.b32.xlu0 %v3755, 16
        %v3855 = vpop.permute.xlu0 %3854
        %3856 = vrot.lane.b32.xlu0 %v3758, 16
        %v3857 = vpop.permute.xlu0 %3856
        %3858 = vrot.lane.b32.xlu0 %v3760, 16
        %v3859 = vpop.permute.xlu0 %3858
        %3860 = vrot.lane.b32.xlu0 %v3763, 16
        %v3861 = vpop.permute.xlu0 %3860
        %3862 = vrot.lane.b32.xlu0 %v3765, 16
        %v3863 = vpop.permute.xlu0 %3862
        %3864 = vrot.lane.b32.xlu0 %v3768, 16
        %v3865 = vpop.permute.xlu0 %3864
        %3866 = vrot.lane.b32.xlu0 %v3770, 16
        %v3867 = vpop.permute.xlu0 %3866
        %vm3900 = vcmask 195712
        %3901 = vst.msk [vmem:[#allocation2] sm:$0xff] %vm3900, %v3805
        %3902 = vst.msk [vmem:[#allocation2 + $0x8] sm:$0xff] %vm3900, %v3807
        %3903 = vst.msk [vmem:[#allocation2 + $0x10] sm:$0xff] %vm3900, %v3809
        %3904 = vst.msk [vmem:[#allocation2 + $0x18] sm:$0xff] %vm3900, %v3811
        %3905 = vst.msk [vmem:[#allocation2 + $0x20] sm:$0xff] %vm3900, %v3813
        %3906 = vst.msk [vmem:[#allocation2 + $0x28] sm:$0xff] %vm3900, %v3815
        %3907 = vst.msk [vmem:[#allocation2 + $0x30] sm:$0xff] %vm3900, %v3817
        %3908 = vst.msk [vmem:[#allocation2 + $0x38] sm:$0xff] %vm3900, %v3819
        %3909 = vst.msk [vmem:[#allocation2 + $0x40] sm:$0xff] %vm3900, %v3821
        %3910 = vst.msk [vmem:[#allocation2 + $0x48] sm:$0xff] %vm3900, %v3823
        %3911 = vst.msk [vmem:[#allocation2 + $0x50] sm:$0xff] %vm3900, %v3825
        %3912 = vst.msk [vmem:[#allocation2 + $0x58] sm:$0xff] %vm3900, %v3827
        %3913 = vst.msk [vmem:[#allocation2 + $0x60] sm:$0xff] %vm3900, %v3829
        %3914 = vst.msk [vmem:[#allocation2 + $0x68] sm:$0xff] %vm3900, %v3831
        %3915 = vst.msk [vmem:[#allocation2 + $0x70] sm:$0xff] %vm3900, %v3833
        %3916 = vst.msk [vmem:[#allocation2 + $0x78] sm:$0xff] %vm3900, %v3835
        %3917 = vst.msk [vmem:[#allocation2 + $0x80] sm:$0xff] %vm3900, %v3837
        %3918 = vst.msk [vmem:[#allocation2 + $0x88] sm:$0xff] %vm3900, %v3839
        %3919 = vst.msk [vmem:[#allocation2 + $0x90] sm:$0xff] %vm3900, %v3841
        %3920 = vst.msk [vmem:[#allocation2 + $0x98] sm:$0xff] %vm3900, %v3843
        %3921 = vst.msk [vmem:[#allocation2 + $0xa0] sm:$0xff] %vm3900, %v3845
        %3922 = vst.msk [vmem:[#allocation2 + $0xa8] sm:$0xff] %vm3900, %v3847
        %3923 = vst.msk [vmem:[#allocation2 + $0xb0] sm:$0xff] %vm3900, %v3849
        %3924 = vst.msk [vmem:[#allocation2 + $0xb8] sm:$0xff] %vm3900, %v3851
        %3925 = vst.msk [vmem:[#allocation2 + $0xc0] sm:$0xff] %vm3900, %v3853
        %3926 = vst.msk [vmem:[#allocation2 + $0xc8] sm:$0xff] %vm3900, %v3855
        %3927 = vst.msk [vmem:[#allocation2 + $0xd0] sm:$0xff] %vm3900, %v3857
        %3928 = vst.msk [vmem:[#allocation2 + $0xd8] sm:$0xff] %vm3900, %v3859
        %3929 = vst.msk [vmem:[#allocation2 + $0xe0] sm:$0xff] %vm3900, %v3861
        %3930 = vst.msk [vmem:[#allocation2 + $0xe8] sm:$0xff] %vm3900, %v3863
        %3931 = vst.msk [vmem:[#allocation2 + $0xf0] sm:$0xff] %vm3900, %v3865
        %3932 = vst.msk [vmem:[#allocation2 + $0xf8] sm:$0xff] %vm3900, %v3867
        %3933 = vrot.lane.b32.xlu0 %v1510, 104
        %v3934 = vpop.permute.xlu0 %3933
        %3935 = vrot.lane.b32.xlu0 %v1511, 104
        %v3936 = vpop.permute.xlu0 %3935
        %3937 = vrot.lane.b32.xlu0 %v1512, 104
        %v3938 = vpop.permute.xlu0 %3937
        %3939 = vrot.lane.b32.xlu0 %v1513, 104
        %v3940 = vpop.permute.xlu0 %3939
        %3941 = vrot.lane.b32.xlu0 %v1514, 104
        %v3942 = vpop.permute.xlu0 %3941
        %3943 = vrot.lane.b32.xlu0 %v1515, 104
        %v3944 = vpop.permute.xlu0 %3943
        %3945 = vrot.lane.b32.xlu0 %v1516, 104
        %v3946 = vpop.permute.xlu0 %3945
        %3947 = vrot.lane.b32.xlu0 %v1517, 104
        %v3948 = vpop.permute.xlu0 %3947
        %3949 = vrot.lane.b32.xlu0 %v1518, 104
        %v3950 = vpop.permute.xlu0 %3949
        %3951 = vrot.lane.b32.xlu0 %v1519, 104
        %v3952 = vpop.permute.xlu0 %3951
        %3953 = vrot.lane.b32.xlu0 %v1520, 104
        %v3954 = vpop.permute.xlu0 %3953
        %3955 = vrot.lane.b32.xlu0 %v1521, 104
        %v3956 = vpop.permute.xlu0 %3955
        %3957 = vrot.lane.b32.xlu0 %v1522, 104
        %v3958 = vpop.permute.xlu0 %3957
        %3959 = vrot.lane.b32.xlu0 %v1523, 104
        %v3960 = vpop.permute.xlu0 %3959
        %3961 = vrot.lane.b32.xlu0 %v1524, 104
        %v3962 = vpop.permute.xlu0 %3961
        %3963 = vrot.lane.b32.xlu0 %v1525, 104
        %v3964 = vpop.permute.xlu0 %3963
        %3965 = vrot.lane.b32.xlu0 %v1532, 104
        %v3966 = vpop.permute.xlu0 %3965
        %3967 = vrot.lane.b32.xlu0 %v1533, 104
        %v3968 = vpop.permute.xlu0 %3967
        %v3970 = vsel %vm1534, %v3934, 0
        %v3973 = vsel %vm1534, %v3936, 0
        %v3976 = vsel %vm1534, %v3938, 0
        %v3979 = vsel %vm1534, %v3940, 0
        %v3982 = vsel %vm1534, %v3942, 0
        %v3985 = vsel %vm1534, %v3944, 0
        %v3988 = vsel %vm1534, %v3946, 0
        %v3991 = vsel %vm1534, %v3948, 0
        %v3994 = vsel %vm1534, %v3950, 0
        %v3997 = vsel %vm1534, %v3952, 0
        %v4000 = vsel %vm1534, %v3954, 0
        %v4003 = vsel %vm1534, %v3956, 0
        %v4006 = vsel %vm1534, %v3958, 0
        %v4009 = vsel %vm1534, %v3960, 0
        %v4012 = vsel %vm1534, %v3962, 0
        %v4015 = vsel %vm1534, %v3964, 0
        %v4018 = vsel %vm1534, %v3966, 0
        %v4021 = vsel %vm1534, %v3968, 0
        %4023 = vmatpush.bf16.xpose.msra.mxu0 0
        %4024 = vmatpush.bf16.xpose.msra.mxu0 0
        %4025 = vmatpush.bf16.xpose.msra.mxu0 0
        %4026 = vmatpush.bf16.xpose.msra.mxu0 0
        %4027 = vmatpush.bf16.xpose.msra.mxu0 0
        %4028 = vmatpush.bf16.xpose.msra.mxu0 0
        %4029 = vmatpush.bf16.xpose.msra.mxu0 %v4021
        %4030 = vmatpush.bf16.xpose.msra.mxu0 %v4018
        %4031 = vmatmul.bf16.gmra.mxu0 %v3970
        %v4032 = vpop.f32.mrf.mxu0
        %v4033 = vadd.f32 %v1379, %v4032
        %v4034 = vpop.f32.mrf.mxu0
        %v4035 = vadd.f32 %v1380, %v4034
        %4036 = vmatmul.bf16.gmra.mxu0 %v3973
        %v4037 = vpop.f32.mrf.mxu0
        %v4038 = vadd.f32 %v1381, %v4037
        %v4039 = vpop.f32.mrf.mxu0
        %v4040 = vadd.f32 %v1382, %v4039
        %4041 = vmatmul.bf16.gmra.mxu0 %v3976
        %v4042 = vpop.f32.mrf.mxu0
        %v4043 = vadd.f32 %v1383, %v4042
        %v4044 = vpop.f32.mrf.mxu0
        %v4045 = vadd.f32 %v1384, %v4044
        %4046 = vmatmul.bf16.gmra.mxu0 %v3979
        %v4047 = vpop.f32.mrf.mxu0
        %v4048 = vadd.f32 %v1385, %v4047
        %v4049 = vpop.f32.mrf.mxu0
        %v4050 = vadd.f32 %v1386, %v4049
        %4051 = vmatmul.bf16.gmra.mxu0 %v3982
        %v4052 = vpop.f32.mrf.mxu0
        %v4053 = vadd.f32 %v1387, %v4052
        %v4054 = vpop.f32.mrf.mxu0
        %v4055 = vadd.f32 %v1388, %v4054
        %4056 = vmatmul.bf16.gmra.mxu0 %v3985
        %v4057 = vpop.f32.mrf.mxu0
        %v4058 = vadd.f32 %v1389, %v4057
        %v4059 = vpop.f32.mrf.mxu0
        %v4060 = vadd.f32 %v1390, %v4059
        %4061 = vmatmul.bf16.gmra.mxu0 %v3988
        %v4062 = vpop.f32.mrf.mxu0
        %v4063 = vadd.f32 %v1391, %v4062
        %v4064 = vpop.f32.mrf.mxu0
        %v4065 = vadd.f32 %v1392, %v4064
        %4066 = vmatmul.bf16.gmra.mxu0 %v3991
        %v4067 = vpop.f32.mrf.mxu0
        %v4068 = vadd.f32 %v1393, %v4067
        %v4069 = vpop.f32.mrf.mxu0
        %v4070 = vadd.f32 %v1394, %v4069
        %4071 = vmatmul.bf16.gmra.mxu0 %v3994
        %v4072 = vpop.f32.mrf.mxu0
        %v4073 = vadd.f32 %v1395, %v4072
        %v4074 = vpop.f32.mrf.mxu0
        %v4075 = vadd.f32 %v1396, %v4074
        %4076 = vmatmul.bf16.gmra.mxu0 %v3997
        %v4077 = vpop.f32.mrf.mxu0
        %v4078 = vadd.f32 %v1397, %v4077
        %v4079 = vpop.f32.mrf.mxu0
        %v4080 = vadd.f32 %v1398, %v4079
        %4081 = vmatmul.bf16.gmra.mxu0 %v4000
        %v4082 = vpop.f32.mrf.mxu0
        %v4083 = vadd.f32 %v1399, %v4082
        %v4084 = vpop.f32.mrf.mxu0
        %v4085 = vadd.f32 %v1400, %v4084
        %4086 = vmatmul.bf16.gmra.mxu0 %v4003
        %v4087 = vpop.f32.mrf.mxu0
        %v4088 = vadd.f32 %v1401, %v4087
        %v4089 = vpop.f32.mrf.mxu0
        %v4090 = vadd.f32 %v1402, %v4089
        %4091 = vmatmul.bf16.gmra.mxu0 %v4006
        %v4092 = vpop.f32.mrf.mxu0
        %v4093 = vadd.f32 %v1403, %v4092
        %v4094 = vpop.f32.mrf.mxu0
        %v4095 = vadd.f32 %v1404, %v4094
        %4096 = vmatmul.bf16.gmra.mxu0 %v4009
        %v4097 = vpop.f32.mrf.mxu0
        %v4098 = vadd.f32 %v1405, %v4097
        %v4099 = vpop.f32.mrf.mxu0
        %v4100 = vadd.f32 %v1406, %v4099
        %4101 = vmatmul.bf16.gmra.mxu0 %v4012
        %v4102 = vpop.f32.mrf.mxu0
        %v4103 = vadd.f32 %v1407, %v4102
        %v4104 = vpop.f32.mrf.mxu0
        %v4105 = vadd.f32 %v1408, %v4104
        %4106 = vmatmul.bf16.gmra.mxu0 %v4015
        %v4107 = vpop.f32.mrf.mxu0
        %v4108 = vadd.f32 %v1409, %v4107
        %v4109 = vpop.f32.mrf.mxu0
        %v4110 = vadd.f32 %v1410, %v4109
        %4111 = vdwg.mxu0
        %v4112 = vsel %vm1678, %v4033, -inf
        %4113 = vmax.xlane.f32.xlu0 %v4112
        %v4114 = vpop.xlane.xlu0 %4113
        %v4115 = vsel %vm1678, %v4035, -inf
        %4116 = vmax.xlane.f32.xlu0 %v4115
        %v4117 = vpop.xlane.xlu0 %4116
        %v4118 = vsel %vm1678, %v4038, -inf
        %4119 = vmax.xlane.f32.xlu0 %v4118
        %v4120 = vpop.xlane.xlu0 %4119
        %v4121 = vsel %vm1678, %v4040, -inf
        %4122 = vmax.xlane.f32.xlu0 %v4121
        %v4123 = vpop.xlane.xlu0 %4122
        %v4124 = vsel %vm1678, %v4043, -inf
        %4125 = vmax.xlane.f32.xlu0 %v4124
        %v4126 = vpop.xlane.xlu0 %4125
        %v4127 = vsel %vm1678, %v4045, -inf
        %4128 = vmax.xlane.f32.xlu0 %v4127
        %v4129 = vpop.xlane.xlu0 %4128
        %v4130 = vsel %vm1678, %v4048, -inf
        %4131 = vmax.xlane.f32.xlu0 %v4130
        %v4132 = vpop.xlane.xlu0 %4131
        %v4133 = vsel %vm1678, %v4050, -inf
        %4134 = vmax.xlane.f32.xlu0 %v4133
        %v4135 = vpop.xlane.xlu0 %4134
        %v4136 = vsel %vm1678, %v4053, -inf
        %4137 = vmax.xlane.f32.xlu0 %v4136
        %v4138 = vpop.xlane.xlu0 %4137
        %v4139 = vsel %vm1678, %v4055, -inf
        %4140 = vmax.xlane.f32.xlu0 %v4139
        %v4141 = vpop.xlane.xlu0 %4140
        %v4142 = vsel %vm1678, %v4058, -inf
        %4143 = vmax.xlane.f32.xlu0 %v4142
        %v4144 = vpop.xlane.xlu0 %4143
        %v4145 = vsel %vm1678, %v4060, -inf
        %4146 = vmax.xlane.f32.xlu0 %v4145
        %v4147 = vpop.xlane.xlu0 %4146
        %v4148 = vsel %vm1678, %v4063, -inf
        %4149 = vmax.xlane.f32.xlu0 %v4148
        %v4150 = vpop.xlane.xlu0 %4149
        %v4151 = vsel %vm1678, %v4065, -inf
        %4152 = vmax.xlane.f32.xlu0 %v4151
        %v4153 = vpop.xlane.xlu0 %4152
        %v4154 = vsel %vm1678, %v4068, -inf
        %4155 = vmax.xlane.f32.xlu0 %v4154
        %v4156 = vpop.xlane.xlu0 %4155
        %v4157 = vsel %vm1678, %v4070, -inf
        %4158 = vmax.xlane.f32.xlu0 %v4157
        %v4159 = vpop.xlane.xlu0 %4158
        %v4160 = vsel %vm1678, %v4073, -inf
        %4161 = vmax.xlane.f32.xlu0 %v4160
        %v4162 = vpop.xlane.xlu0 %4161
        %v4163 = vsel %vm1678, %v4075, -inf
        %4164 = vmax.xlane.f32.xlu0 %v4163
        %v4165 = vpop.xlane.xlu0 %4164
        %v4166 = vsel %vm1678, %v4078, -inf
        %4167 = vmax.xlane.f32.xlu0 %v4166
        %v4168 = vpop.xlane.xlu0 %4167
        %v4169 = vsel %vm1678, %v4080, -inf
        %4170 = vmax.xlane.f32.xlu0 %v4169
        %v4171 = vpop.xlane.xlu0 %4170
        %v4172 = vsel %vm1678, %v4083, -inf
        %4173 = vmax.xlane.f32.xlu0 %v4172
        %v4174 = vpop.xlane.xlu0 %4173
        %v4175 = vsel %vm1678, %v4085, -inf
        %4176 = vmax.xlane.f32.xlu0 %v4175
        %v4177 = vpop.xlane.xlu0 %4176
        %v4178 = vsel %vm1678, %v4088, -inf
        %4179 = vmax.xlane.f32.xlu0 %v4178
        %v4180 = vpop.xlane.xlu0 %4179
        %v4181 = vsel %vm1678, %v4090, -inf
        %4182 = vmax.xlane.f32.xlu0 %v4181
        %v4183 = vpop.xlane.xlu0 %4182
        %v4184 = vsel %vm1678, %v4093, -inf
        %4185 = vmax.xlane.f32.xlu0 %v4184
        %v4186 = vpop.xlane.xlu0 %4185
        %v4187 = vsel %vm1678, %v4095, -inf
        %4188 = vmax.xlane.f32.xlu0 %v4187
        %v4189 = vpop.xlane.xlu0 %4188
        %v4190 = vsel %vm1678, %v4098, -inf
        %4191 = vmax.xlane.f32.xlu0 %v4190
        %v4192 = vpop.xlane.xlu0 %4191
        %v4193 = vsel %vm1678, %v4100, -inf
        %4194 = vmax.xlane.f32.xlu0 %v4193
        %v4195 = vpop.xlane.xlu0 %4194
        %v4196 = vsel %vm1678, %v4103, -inf
        %4197 = vmax.xlane.f32.xlu0 %v4196
        %v4198 = vpop.xlane.xlu0 %4197
        %v4199 = vsel %vm1678, %v4105, -inf
        %4200 = vmax.xlane.f32.xlu0 %v4199
        %v4201 = vpop.xlane.xlu0 %4200
        %v4202 = vsel %vm1678, %v4108, -inf
        %4203 = vmax.xlane.f32.xlu0 %v4202
        %v4204 = vpop.xlane.xlu0 %4203
        %v4205 = vsel %vm1678, %v4110, -inf
        %4206 = vmax.xlane.f32.xlu0 %v4205
        %v4207 = vpop.xlane.xlu0 %4206
        %v4208 = vsub.f32 %v4033, %v4114
        %v4209 = vsub.f32 %v4035, %v4117
        %v4210 = vsub.f32 %v4038, %v4120
        %v4211 = vsub.f32 %v4040, %v4123
        %v4212 = vsub.f32 %v4043, %v4126
        %v4213 = vsub.f32 %v4045, %v4129
        %v4214 = vsub.f32 %v4048, %v4132
        %v4215 = vsub.f32 %v4050, %v4135
        %v4216 = vsub.f32 %v4053, %v4138
        %v4217 = vsub.f32 %v4055, %v4141
        %v4218 = vsub.f32 %v4058, %v4144
        %v4219 = vsub.f32 %v4060, %v4147
        %v4220 = vsub.f32 %v4063, %v4150
        %v4221 = vsub.f32 %v4065, %v4153
        %v4222 = vsub.f32 %v4068, %v4156
        %v4223 = vsub.f32 %v4070, %v4159
        %v4224 = vsub.f32 %v4073, %v4162
        %v4225 = vsub.f32 %v4075, %v4165
        %v4226 = vsub.f32 %v4078, %v4168
        %v4227 = vsub.f32 %v4080, %v4171
        %v4228 = vsub.f32 %v4083, %v4174
        %v4229 = vsub.f32 %v4085, %v4177
        %v4230 = vsub.f32 %v4088, %v4180
        %v4231 = vsub.f32 %v4090, %v4183
        %v4232 = vsub.f32 %v4093, %v4186
        %v4233 = vsub.f32 %v4095, %v4189
        %v4234 = vsub.f32 %v4098, %v4192
        %v4235 = vsub.f32 %v4100, %v4195
        %v4236 = vsub.f32 %v4103, %v4198
        %v4237 = vsub.f32 %v4105, %v4201
        %v4238 = vsub.f32 %v4108, %v4204
        %v4239 = vsub.f32 %v4110, %v4207
        %v4240 = vmul.f32 %v4208, 1.442695
        %v4241 = vpow.pop %v4240
        %v4242 = vmul.f32 %v4209, 1.442695
        %v4243 = vpow.pop %v4242
        %v4244 = vmul.f32 %v4210, 1.442695
        %v4245 = vpow.pop %v4244
        %v4246 = vmul.f32 %v4211, 1.442695
        %v4247 = vpow.pop %v4246
        %v4248 = vmul.f32 %v4212, 1.442695
        %v4249 = vpow.pop %v4248
        %v4250 = vmul.f32 %v4213, 1.442695
        %v4251 = vpow.pop %v4250
        %v4252 = vmul.f32 %v4214, 1.442695
        %v4253 = vpow.pop %v4252
        %v4254 = vmul.f32 %v4215, 1.442695
        %v4255 = vpow.pop %v4254
        %v4256 = vmul.f32 %v4216, 1.442695
        %v4257 = vpow.pop %v4256
        %v4258 = vmul.f32 %v4217, 1.442695
        %v4259 = vpow.pop %v4258
        %v4260 = vmul.f32 %v4218, 1.442695
        %v4261 = vpow.pop %v4260
        %v4262 = vmul.f32 %v4219, 1.442695
        %v4263 = vpow.pop %v4262
        %v4264 = vmul.f32 %v4220, 1.442695
        %v4265 = vpow.pop %v4264
        %v4266 = vmul.f32 %v4221, 1.442695
        %v4267 = vpow.pop %v4266
        %v4268 = vmul.f32 %v4222, 1.442695
        %v4269 = vpow.pop %v4268
        %v4270 = vmul.f32 %v4223, 1.442695
        %v4271 = vpow.pop %v4270
        %v4272 = vmul.f32 %v4224, 1.442695
        %v4273 = vpow.pop %v4272
        %v4274 = vmul.f32 %v4225, 1.442695
        %v4275 = vpow.pop %v4274
        %v4276 = vmul.f32 %v4226, 1.442695
        %v4277 = vpow.pop %v4276
        %v4278 = vmul.f32 %v4227, 1.442695
        %v4279 = vpow.pop %v4278
        %v4280 = vmul.f32 %v4228, 1.442695
        %v4281 = vpow.pop %v4280
        %v4282 = vmul.f32 %v4229, 1.442695
        %v4283 = vpow.pop %v4282
        %v4284 = vmul.f32 %v4230, 1.442695
        %v4285 = vpow.pop %v4284
        %v4286 = vmul.f32 %v4231, 1.442695
        %v4287 = vpow.pop %v4286
        %v4288 = vmul.f32 %v4232, 1.442695
        %v4289 = vpow.pop %v4288
        %v4290 = vmul.f32 %v4233, 1.442695
        %v4291 = vpow.pop %v4290
        %v4292 = vmul.f32 %v4234, 1.442695
        %v4293 = vpow.pop %v4292
        %v4294 = vmul.f32 %v4235, 1.442695
        %v4295 = vpow.pop %v4294
        %v4296 = vmul.f32 %v4236, 1.442695
        %v4297 = vpow.pop %v4296
        %v4298 = vmul.f32 %v4237, 1.442695
        %v4299 = vpow.pop %v4298
        %v4300 = vmul.f32 %v4238, 1.442695
        %v4301 = vpow.pop %v4300
        %v4302 = vmul.f32 %v4239, 1.442695
        %v4303 = vpow.pop %v4302
        %v4304 = vsel %vm1678, %v4241, 0.0
        %4305 = vadd.xlane.f32.xlu0 %v4304
        %v4306 = vpop.xlane.xlu0 %4305
        %v4307 = vsel %vm1678, %v4243, 0.0
        %4308 = vadd.xlane.f32.xlu0 %v4307
        %v4309 = vpop.xlane.xlu0 %4308
        %v4310 = vsel %vm1678, %v4245, 0.0
        %4311 = vadd.xlane.f32.xlu0 %v4310
        %v4312 = vpop.xlane.xlu0 %4311
        %v4313 = vsel %vm1678, %v4247, 0.0
        %4314 = vadd.xlane.f32.xlu0 %v4313
        %v4315 = vpop.xlane.xlu0 %4314
        %v4316 = vsel %vm1678, %v4249, 0.0
        %4317 = vadd.xlane.f32.xlu0 %v4316
        %v4318 = vpop.xlane.xlu0 %4317
        %v4319 = vsel %vm1678, %v4251, 0.0
        %4320 = vadd.xlane.f32.xlu0 %v4319
        %v4321 = vpop.xlane.xlu0 %4320
        %v4322 = vsel %vm1678, %v4253, 0.0
        %4323 = vadd.xlane.f32.xlu0 %v4322
        %v4324 = vpop.xlane.xlu0 %4323
        %v4325 = vsel %vm1678, %v4255, 0.0
        %4326 = vadd.xlane.f32.xlu0 %v4325
        %v4327 = vpop.xlane.xlu0 %4326
        %v4328 = vsel %vm1678, %v4257, 0.0
        %4329 = vadd.xlane.f32.xlu0 %v4328
        %v4330 = vpop.xlane.xlu0 %4329
        %v4331 = vsel %vm1678, %v4259, 0.0
        %4332 = vadd.xlane.f32.xlu0 %v4331
        %v4333 = vpop.xlane.xlu0 %4332
        %v4334 = vsel %vm1678, %v4261, 0.0
        %4335 = vadd.xlane.f32.xlu0 %v4334
        %v4336 = vpop.xlane.xlu0 %4335
        %v4337 = vsel %vm1678, %v4263, 0.0
        %4338 = vadd.xlane.f32.xlu0 %v4337
        %v4339 = vpop.xlane.xlu0 %4338
        %v4340 = vsel %vm1678, %v4265, 0.0
        %4341 = vadd.xlane.f32.xlu0 %v4340
        %v4342 = vpop.xlane.xlu0 %4341
        %v4343 = vsel %vm1678, %v4267, 0.0
        %4344 = vadd.xlane.f32.xlu0 %v4343
        %v4345 = vpop.xlane.xlu0 %4344
        %v4346 = vsel %vm1678, %v4269, 0.0
        %4347 = vadd.xlane.f32.xlu0 %v4346
        %v4348 = vpop.xlane.xlu0 %4347
        %v4349 = vsel %vm1678, %v4271, 0.0
        %4350 = vadd.xlane.f32.xlu0 %v4349
        %v4351 = vpop.xlane.xlu0 %4350
        %v4352 = vsel %vm1678, %v4273, 0.0
        %4353 = vadd.xlane.f32.xlu0 %v4352
        %v4354 = vpop.xlane.xlu0 %4353
        %v4355 = vsel %vm1678, %v4275, 0.0
        %4356 = vadd.xlane.f32.xlu0 %v4355
        %v4357 = vpop.xlane.xlu0 %4356
        %v4358 = vsel %vm1678, %v4277, 0.0
        %4359 = vadd.xlane.f32.xlu0 %v4358
        %v4360 = vpop.xlane.xlu0 %4359
        %v4361 = vsel %vm1678, %v4279, 0.0
        %4362 = vadd.xlane.f32.xlu0 %v4361
        %v4363 = vpop.xlane.xlu0 %4362
        %v4364 = vsel %vm1678, %v4281, 0.0
        %4365 = vadd.xlane.f32.xlu0 %v4364
        %v4366 = vpop.xlane.xlu0 %4365
        %v4367 = vsel %vm1678, %v4283, 0.0
        %4368 = vadd.xlane.f32.xlu0 %v4367
        %v4369 = vpop.xlane.xlu0 %4368
        %v4370 = vsel %vm1678, %v4285, 0.0
        %4371 = vadd.xlane.f32.xlu0 %v4370
        %v4372 = vpop.xlane.xlu0 %4371
        %v4373 = vsel %vm1678, %v4287, 0.0
        %4374 = vadd.xlane.f32.xlu0 %v4373
        %v4375 = vpop.xlane.xlu0 %4374
        %v4376 = vsel %vm1678, %v4289, 0.0
        %4377 = vadd.xlane.f32.xlu0 %v4376
        %v4378 = vpop.xlane.xlu0 %4377
        %v4379 = vsel %vm1678, %v4291, 0.0
        %4380 = vadd.xlane.f32.xlu0 %v4379
        %v4381 = vpop.xlane.xlu0 %4380
        %v4382 = vsel %vm1678, %v4293, 0.0
        %4383 = vadd.xlane.f32.xlu0 %v4382
        %v4384 = vpop.xlane.xlu0 %4383
        %v4385 = vsel %vm1678, %v4295, 0.0
        %4386 = vadd.xlane.f32.xlu0 %v4385
        %v4387 = vpop.xlane.xlu0 %4386
        %v4388 = vsel %vm1678, %v4297, 0.0
        %4389 = vadd.xlane.f32.xlu0 %v4388
        %v4390 = vpop.xlane.xlu0 %4389
        %v4391 = vsel %vm1678, %v4299, 0.0
        %4392 = vadd.xlane.f32.xlu0 %v4391
        %v4393 = vpop.xlane.xlu0 %4392
        %v4394 = vsel %vm1678, %v4301, 0.0
        %4395 = vadd.xlane.f32.xlu0 %v4394
        %v4396 = vpop.xlane.xlu0 %4395
        %v4397 = vsel %vm1678, %v4303, 0.0
        %4398 = vadd.xlane.f32.xlu0 %v4397
        %v4399 = vpop.xlane.xlu0 %4398
        %v4400 = vrcp.pop %v4306
        %v4401 = vrcp.pop %v4309
        %v4402 = vrcp.pop %v4312
        %v4403 = vrcp.pop %v4315
        %v4404 = vrcp.pop %v4318
        %v4405 = vrcp.pop %v4321
        %v4406 = vrcp.pop %v4324
        %v4407 = vrcp.pop %v4327
        %v4408 = vrcp.pop %v4330
        %v4409 = vrcp.pop %v4333
        %v4410 = vrcp.pop %v4336
        %v4411 = vrcp.pop %v4339
        %v4412 = vrcp.pop %v4342
        %v4413 = vrcp.pop %v4345
        %v4414 = vrcp.pop %v4348
        %v4415 = vrcp.pop %v4351
        %v4416 = vrcp.pop %v4354
        %v4417 = vrcp.pop %v4357
        %v4418 = vrcp.pop %v4360
        %v4419 = vrcp.pop %v4363
        %v4420 = vrcp.pop %v4366
        %v4421 = vrcp.pop %v4369
        %v4422 = vrcp.pop %v4372
        %v4423 = vrcp.pop %v4375
        %v4424 = vrcp.pop %v4378
        %v4425 = vrcp.pop %v4381
        %v4426 = vrcp.pop %v4384
        %v4427 = vrcp.pop %v4387
        %v4428 = vrcp.pop %v4390
        %v4429 = vrcp.pop %v4393
        %v4430 = vrcp.pop %v4396
        %v4431 = vrcp.pop %v4399
        %v4432 = vmul.f32 %v4241, %v4400
        %v4433 = vmul.f32 %v4243, %v4401
        %v4434 = vmul.f32 %v4245, %v4402
        %v4435 = vmul.f32 %v4247, %v4403
        %v4436 = vmul.f32 %v4249, %v4404
        %v4437 = vmul.f32 %v4251, %v4405
        %v4438 = vmul.f32 %v4253, %v4406
        %v4439 = vmul.f32 %v4255, %v4407
        %v4440 = vmul.f32 %v4257, %v4408
        %v4441 = vmul.f32 %v4259, %v4409
        %v4442 = vmul.f32 %v4261, %v4410
        %v4443 = vmul.f32 %v4263, %v4411
        %v4444 = vmul.f32 %v4265, %v4412
        %v4445 = vmul.f32 %v4267, %v4413
        %v4446 = vmul.f32 %v4269, %v4414
        %v4447 = vmul.f32 %v4271, %v4415
        %v4448 = vmul.f32 %v4273, %v4416
        %v4449 = vmul.f32 %v4275, %v4417
        %v4450 = vmul.f32 %v4277, %v4418
        %v4451 = vmul.f32 %v4279, %v4419
        %v4452 = vmul.f32 %v4281, %v4420
        %v4453 = vmul.f32 %v4283, %v4421
        %v4454 = vmul.f32 %v4285, %v4422
        %v4455 = vmul.f32 %v4287, %v4423
        %v4456 = vmul.f32 %v4289, %v4424
        %v4457 = vmul.f32 %v4291, %v4425
        %v4458 = vmul.f32 %v4293, %v4426
        %v4459 = vmul.f32 %v4295, %v4427
        %v4460 = vmul.f32 %v4297, %v4428
        %v4461 = vmul.f32 %v4299, %v4429
        %v4462 = vmul.f32 %v4301, %v4430
        %v4463 = vmul.f32 %v4303, %v4431
        %v4464 = vpack.c.bf16 %v4433, %v4432
        %v4465 = vpack.c.bf16 %v4435, %v4434
        %v4466 = vpack.c.bf16 %v4437, %v4436
        %v4467 = vpack.c.bf16 %v4439, %v4438
        %v4468 = vpack.c.bf16 %v4441, %v4440
        %v4469 = vpack.c.bf16 %v4443, %v4442
        %v4470 = vpack.c.bf16 %v4445, %v4444
        %v4471 = vpack.c.bf16 %v4447, %v4446
        %v4472 = vpack.c.bf16 %v4449, %v4448
        %v4473 = vpack.c.bf16 %v4451, %v4450
        %v4474 = vpack.c.bf16 %v4453, %v4452
        %v4475 = vpack.c.bf16 %v4455, %v4454
        %v4476 = vpack.c.bf16 %v4457, %v4456
        %v4477 = vpack.c.bf16 %v4459, %v4458
        %v4478 = vpack.c.bf16 %v4461, %v4460
        %v4479 = vpack.c.bf16 %v4463, %v4462
        %4480 = vrot.lane.b32.xlu0 %v1532, 72
        %v4481 = vpop.permute.xlu0 %4480
        %4482 = vrot.lane.b32.xlu0 %v1533, 72
        %v4483 = vpop.permute.xlu0 %4482
        %v4486 = vsel %vm1678, %v4464, 0
        %v4489 = vsel %vm1678, %v4465, 0
        %v4492 = vsel %vm1678, %v4466, 0
        %v4495 = vsel %vm1678, %v4467, 0
        %v4498 = vsel %vm1678, %v4468, 0
        %v4501 = vsel %vm1678, %v4469, 0
        %v4504 = vsel %vm1678, %v4470, 0
        %v4507 = vsel %vm1678, %v4471, 0
        %v4510 = vsel %vm1678, %v4472, 0
        %v4513 = vsel %vm1678, %v4473, 0
        %v4516 = vsel %vm1678, %v4474, 0
        %v4519 = vsel %vm1678, %v4475, 0
        %v4522 = vsel %vm1678, %v4476, 0
        %v4525 = vsel %vm1678, %v4477, 0
        %v4528 = vsel %vm1678, %v4478, 0
        %v4531 = vsel %vm1678, %v4479, 0
        %v4534 = vand.u32 %v4483, %v2102
        %4536 = vmatpush.bf16.msra.mxu0 0
        %4537 = vmatpush.bf16.msra.mxu0 0
        %4538 = vmatpush.bf16.msra.mxu0 0
        %4539 = vmatpush.bf16.msra.mxu0 0
        %4540 = vmatpush.bf16.msra.mxu0 0
        %4541 = vmatpush.bf16.msra.mxu0 0
        %4542 = vmatpush.bf16.msra.mxu0 %v4534
        %4543 = vmatpush.bf16.msra.mxu0 %v4481
        %4544 = vmatmul.bf16.gmra.mxu0 %v4486
        %v4545 = vpop.f32.mrf.mxu0
        %v4546 = vadd.f32 0.0, %v4545
        %v4547 = vpop.f32.mrf.mxu0
        %v4548 = vadd.f32 0.0, %v4547
        %4549 = vmatmul.bf16.gmra.mxu0 %v4489
        %v4550 = vpop.f32.mrf.mxu0
        %v4551 = vadd.f32 0.0, %v4550
        %v4552 = vpop.f32.mrf.mxu0
        %v4553 = vadd.f32 0.0, %v4552
        %4554 = vmatmul.bf16.gmra.mxu0 %v4492
        %v4555 = vpop.f32.mrf.mxu0
        %v4556 = vadd.f32 0.0, %v4555
        %v4557 = vpop.f32.mrf.mxu0
        %v4558 = vadd.f32 0.0, %v4557
        %4559 = vmatmul.bf16.gmra.mxu0 %v4495
        %v4560 = vpop.f32.mrf.mxu0
        %v4561 = vadd.f32 0.0, %v4560
        %v4562 = vpop.f32.mrf.mxu0
        %v4563 = vadd.f32 0.0, %v4562
        %4564 = vmatmul.bf16.gmra.mxu0 %v4498
        %v4565 = vpop.f32.mrf.mxu0
        %v4566 = vadd.f32 0.0, %v4565
        %v4567 = vpop.f32.mrf.mxu0
        %v4568 = vadd.f32 0.0, %v4567
        %4569 = vmatmul.bf16.gmra.mxu0 %v4501
        %v4570 = vpop.f32.mrf.mxu0
        %v4571 = vadd.f32 0.0, %v4570
        %v4572 = vpop.f32.mrf.mxu0
        %v4573 = vadd.f32 0.0, %v4572
        %4574 = vmatmul.bf16.gmra.mxu0 %v4504
        %v4575 = vpop.f32.mrf.mxu0
        %v4576 = vadd.f32 0.0, %v4575
        %v4577 = vpop.f32.mrf.mxu0
        %v4578 = vadd.f32 0.0, %v4577
        %4579 = vmatmul.bf16.gmra.mxu0 %v4507
        %v4580 = vpop.f32.mrf.mxu0
        %v4581 = vadd.f32 0.0, %v4580
        %v4582 = vpop.f32.mrf.mxu0
        %v4583 = vadd.f32 0.0, %v4582
        %4584 = vmatmul.bf16.gmra.mxu0 %v4510
        %v4585 = vpop.f32.mrf.mxu0
        %v4586 = vadd.f32 0.0, %v4585
        %v4587 = vpop.f32.mrf.mxu0
        %v4588 = vadd.f32 0.0, %v4587
        %4589 = vmatmul.bf16.gmra.mxu0 %v4513
        %v4590 = vpop.f32.mrf.mxu0
        %v4591 = vadd.f32 0.0, %v4590
        %v4592 = vpop.f32.mrf.mxu0
        %v4593 = vadd.f32 0.0, %v4592
        %4594 = vmatmul.bf16.gmra.mxu0 %v4516
        %v4595 = vpop.f32.mrf.mxu0
        %v4596 = vadd.f32 0.0, %v4595
        %v4597 = vpop.f32.mrf.mxu0
        %v4598 = vadd.f32 0.0, %v4597
        %4599 = vmatmul.bf16.gmra.mxu0 %v4519
        %v4600 = vpop.f32.mrf.mxu0
        %v4601 = vadd.f32 0.0, %v4600
        %v4602 = vpop.f32.mrf.mxu0
        %v4603 = vadd.f32 0.0, %v4602
        %4604 = vmatmul.bf16.gmra.mxu0 %v4522
        %v4605 = vpop.f32.mrf.mxu0
        %v4606 = vadd.f32 0.0, %v4605
        %v4607 = vpop.f32.mrf.mxu0
        %v4608 = vadd.f32 0.0, %v4607
        %4609 = vmatmul.bf16.gmra.mxu0 %v4525
        %v4610 = vpop.f32.mrf.mxu0
        %v4611 = vadd.f32 0.0, %v4610
        %v4612 = vpop.f32.mrf.mxu0
        %v4613 = vadd.f32 0.0, %v4612
        %4614 = vmatmul.bf16.gmra.mxu0 %v4528
        %v4615 = vpop.f32.mrf.mxu0
        %v4616 = vadd.f32 0.0, %v4615
        %v4617 = vpop.f32.mrf.mxu0
        %v4618 = vadd.f32 0.0, %v4617
        %4619 = vmatmul.bf16.gmra.mxu0 %v4531
        %v4620 = vpop.f32.mrf.mxu0
        %v4621 = vadd.f32 0.0, %v4620
        %v4622 = vpop.f32.mrf.mxu0
        %v4623 = vadd.f32 0.0, %v4622
        %4624 = vdwg.mxu0
        %4657 = vrot.lane.b32.xlu0 %v4546, 24
        %v4658 = vpop.permute.xlu0 %4657
        %4659 = vrot.lane.b32.xlu0 %v4548, 24
        %v4660 = vpop.permute.xlu0 %4659
        %4661 = vrot.lane.b32.xlu0 %v4551, 24
        %v4662 = vpop.permute.xlu0 %4661
        %4663 = vrot.lane.b32.xlu0 %v4553, 24
        %v4664 = vpop.permute.xlu0 %4663
        %4665 = vrot.lane.b32.xlu0 %v4556, 24
        %v4666 = vpop.permute.xlu0 %4665
        %4667 = vrot.lane.b32.xlu0 %v4558, 24
        %v4668 = vpop.permute.xlu0 %4667
        %4669 = vrot.lane.b32.xlu0 %v4561, 24
        %v4670 = vpop.permute.xlu0 %4669
        %4671 = vrot.lane.b32.xlu0 %v4563, 24
        %v4672 = vpop.permute.xlu0 %4671
        %4673 = vrot.lane.b32.xlu0 %v4566, 24
        %v4674 = vpop.permute.xlu0 %4673
        %4675 = vrot.lane.b32.xlu0 %v4568, 24
        %v4676 = vpop.permute.xlu0 %4675
        %4677 = vrot.lane.b32.xlu0 %v4571, 24
        %v4678 = vpop.permute.xlu0 %4677
        %4679 = vrot.lane.b32.xlu0 %v4573, 24
        %v4680 = vpop.permute.xlu0 %4679
        %4681 = vrot.lane.b32.xlu0 %v4576, 24
        %v4682 = vpop.permute.xlu0 %4681
        %4683 = vrot.lane.b32.xlu0 %v4578, 24
        %v4684 = vpop.permute.xlu0 %4683
        %4685 = vrot.lane.b32.xlu0 %v4581, 24
        %v4686 = vpop.permute.xlu0 %4685
        %4687 = vrot.lane.b32.xlu0 %v4583, 24
        %v4688 = vpop.permute.xlu0 %4687
        %4689 = vrot.lane.b32.xlu0 %v4586, 24
        %v4690 = vpop.permute.xlu0 %4689
        %4691 = vrot.lane.b32.xlu0 %v4588, 24
        %v4692 = vpop.permute.xlu0 %4691
        %4693 = vrot.lane.b32.xlu0 %v4591, 24
        %v4694 = vpop.permute.xlu0 %4693
        %4695 = vrot.lane.b32.xlu0 %v4593, 24
        %v4696 = vpop.permute.xlu0 %4695
        %4697 = vrot.lane.b32.xlu0 %v4596, 24
        %v4698 = vpop.permute.xlu0 %4697
        %4699 = vrot.lane.b32.xlu0 %v4598, 24
        %v4700 = vpop.permute.xlu0 %4699
        %4701 = vrot.lane.b32.xlu0 %v4601, 24
        %v4702 = vpop.permute.xlu0 %4701
        %4703 = vrot.lane.b32.xlu0 %v4603, 24
        %v4704 = vpop.permute.xlu0 %4703
        %4705 = vrot.lane.b32.xlu0 %v4606, 24
        %v4706 = vpop.permute.xlu0 %4705
        %4707 = vrot.lane.b32.xlu0 %v4608, 24
        %v4708 = vpop.permute.xlu0 %4707
        %4709 = vrot.lane.b32.xlu0 %v4611, 24
        %v4710 = vpop.permute.xlu0 %4709
        %4711 = vrot.lane.b32.xlu0 %v4613, 24
        %v4712 = vpop.permute.xlu0 %4711
        %4713 = vrot.lane.b32.xlu0 %v4616, 24
        %v4714 = vpop.permute.xlu0 %4713
        %4715 = vrot.lane.b32.xlu0 %v4618, 24
        %v4716 = vpop.permute.xlu0 %4715
        %4717 = vrot.lane.b32.xlu0 %v4621, 24
        %v4718 = vpop.permute.xlu0 %4717
        %4719 = vrot.lane.b32.xlu0 %v4623, 24
        %v4720 = vpop.permute.xlu0 %4719
        %vm4753 = vcmask 261312
        %4754 = vst.msk [vmem:[#allocation2] sm:$0xff] %vm4753, %v4658
        %4755 = vst.msk [vmem:[#allocation2 + $0x8] sm:$0xff] %vm4753, %v4660
        %4756 = vst.msk [vmem:[#allocation2 + $0x10] sm:$0xff] %vm4753, %v4662
        %4757 = vst.msk [vmem:[#allocation2 + $0x18] sm:$0xff] %vm4753, %v4664
        %4758 = vst.msk [vmem:[#allocation2 + $0x20] sm:$0xff] %vm4753, %v4666
        %4759 = vst.msk [vmem:[#allocation2 + $0x28] sm:$0xff] %vm4753, %v4668
        %4760 = vst.msk [vmem:[#allocation2 + $0x30] sm:$0xff] %vm4753, %v4670
        %4761 = vst.msk [vmem:[#allocation2 + $0x38] sm:$0xff] %vm4753, %v4672
        %4762 = vst.msk [vmem:[#allocation2 + $0x40] sm:$0xff] %vm4753, %v4674
        %4763 = vst.msk [vmem:[#allocation2 + $0x48] sm:$0xff] %vm4753, %v4676
        %4764 = vst.msk [vmem:[#allocation2 + $0x50] sm:$0xff] %vm4753, %v4678
        %4765 = vst.msk [vmem:[#allocation2 + $0x58] sm:$0xff] %vm4753, %v4680
        %4766 = vst.msk [vmem:[#allocation2 + $0x60] sm:$0xff] %vm4753, %v4682
        %4767 = vst.msk [vmem:[#allocation2 + $0x68] sm:$0xff] %vm4753, %v4684
        %4768 = vst.msk [vmem:[#allocation2 + $0x70] sm:$0xff] %vm4753, %v4686
        %4769 = vst.msk [vmem:[#allocation2 + $0x78] sm:$0xff] %vm4753, %v4688
        %4770 = vst.msk [vmem:[#allocation2 + $0x80] sm:$0xff] %vm4753, %v4690
        %4771 = vst.msk [vmem:[#allocation2 + $0x88] sm:$0xff] %vm4753, %v4692
        %4772 = vst.msk [vmem:[#allocation2 + $0x90] sm:$0xff] %vm4753, %v4694
        %4773 = vst.msk [vmem:[#allocation2 + $0x98] sm:$0xff] %vm4753, %v4696
        %4774 = vst.msk [vmem:[#allocation2 + $0xa0] sm:$0xff] %vm4753, %v4698
        %4775 = vst.msk [vmem:[#allocation2 + $0xa8] sm:$0xff] %vm4753, %v4700
        %4776 = vst.msk [vmem:[#allocation2 + $0xb0] sm:$0xff] %vm4753, %v4702
        %4777 = vst.msk [vmem:[#allocation2 + $0xb8] sm:$0xff] %vm4753, %v4704
        %4778 = vst.msk [vmem:[#allocation2 + $0xc0] sm:$0xff] %vm4753, %v4706
        %4779 = vst.msk [vmem:[#allocation2 + $0xc8] sm:$0xff] %vm4753, %v4708
        %4780 = vst.msk [vmem:[#allocation2 + $0xd0] sm:$0xff] %vm4753, %v4710
        %4781 = vst.msk [vmem:[#allocation2 + $0xd8] sm:$0xff] %vm4753, %v4712
        %4782 = vst.msk [vmem:[#allocation2 + $0xe0] sm:$0xff] %vm4753, %v4714
        %4783 = vst.msk [vmem:[#allocation2 + $0xe8] sm:$0xff] %vm4753, %v4716
        %4784 = vst.msk [vmem:[#allocation2 + $0xf0] sm:$0xff] %vm4753, %v4718
        %4785 = vst.msk [vmem:[#allocation2 + $0xf8] sm:$0xff] %vm4753, %v4720
        %v4786 = vld [vmem:[%s8] sm:$0xf]
        %v4787 = vld [vmem:[%s8 + $0x4] sm:$0xf]
        %v4788 = vld [vmem:[#allocation2] sm:$0xff]
        %v4789 = vld [vmem:[#allocation2 + $0x8] sm:$0xff]
        %v4790 = vld [vmem:[#allocation2 + $0x10] sm:$0xff]
        %v4791 = vld [vmem:[#allocation2 + $0x18] sm:$0xff]
        %v4792 = vld [vmem:[#allocation2 + $0x20] sm:$0xff]
        %v4793 = vld [vmem:[#allocation2 + $0x28] sm:$0xff]
        %v4794 = vld [vmem:[#allocation2 + $0x30] sm:$0xff]
        %v4795 = vld [vmem:[#allocation2 + $0x38] sm:$0xff]
        %v4796 = vld [vmem:[#allocation2 + $0x40] sm:$0xff]
        %v4797 = vld [vmem:[#allocation2 + $0x48] sm:$0xff]
        %v4798 = vld [vmem:[#allocation2 + $0x50] sm:$0xff]
        %v4799 = vld [vmem:[#allocation2 + $0x58] sm:$0xff]
        %v4800 = vld [vmem:[#allocation2 + $0x60] sm:$0xff]
        %v4801 = vld [vmem:[#allocation2 + $0x68] sm:$0xff]
        %v4802 = vld [vmem:[#allocation2 + $0x70] sm:$0xff]
        %v4803 = vld [vmem:[#allocation2 + $0x78] sm:$0xff]
        %v4804 = vld [vmem:[#allocation2 + $0x80] sm:$0xff]
        %v4805 = vld [vmem:[#allocation2 + $0x88] sm:$0xff]
        %v4806 = vld [vmem:[#allocation2 + $0x90] sm:$0xff]
        %v4807 = vld [vmem:[#allocation2 + $0x98] sm:$0xff]
        %v4808 = vld [vmem:[#allocation2 + $0xa0] sm:$0xff]
        %v4809 = vld [vmem:[#allocation2 + $0xa8] sm:$0xff]
        %v4810 = vld [vmem:[#allocation2 + $0xb0] sm:$0xff]
        %v4811 = vld [vmem:[#allocation2 + $0xb8] sm:$0xff]
        %v4812 = vld [vmem:[#allocation2 + $0xc0] sm:$0xff]
        %v4813 = vld [vmem:[#allocation2 + $0xc8] sm:$0xff]
        %v4814 = vld [vmem:[#allocation2 + $0xd0] sm:$0xff]
        %v4815 = vld [vmem:[#allocation2 + $0xd8] sm:$0xff]
        %v4816 = vld [vmem:[#allocation2 + $0xe0] sm:$0xff]
        %v4817 = vld [vmem:[#allocation2 + $0xe8] sm:$0xff]
        %v4818 = vld [vmem:[#allocation2 + $0xf0] sm:$0xff]
        %v4819 = vld [vmem:[#allocation2 + $0xf8] sm:$0xff]
        %v4820 = vpack.c.bf16 %v4789, %v4788
        %v4821 = vpack.c.bf16 %v4791, %v4790
        %v4822 = vpack.c.bf16 %v4793, %v4792
        %v4823 = vpack.c.bf16 %v4795, %v4794
        %v4824 = vpack.c.bf16 %v4797, %v4796
        %v4825 = vpack.c.bf16 %v4799, %v4798
        %v4826 = vpack.c.bf16 %v4801, %v4800
        %v4827 = vpack.c.bf16 %v4803, %v4802
        %v4828 = vpack.c.bf16 %v4805, %v4804
        %v4829 = vpack.c.bf16 %v4807, %v4806
        %v4830 = vpack.c.bf16 %v4809, %v4808
        %v4831 = vpack.c.bf16 %v4811, %v4810
        %v4832 = vpack.c.bf16 %v4813, %v4812
        %v4833 = vpack.c.bf16 %v4815, %v4814
        %v4834 = vpack.c.bf16 %v4817, %v4816
        %v4835 = vpack.c.bf16 %v4819, %v4818
        %v4836 = vld [vmem:[%s9] sm:$0xff]
        %v4837 = vld [vmem:[%s9 + $0x8] sm:$0xff]
        %4839 = vset.pattern.permute.xlu0 0
        %4840 = vperm.xlu0 %4839, %v4836
        %v4841 = vpop.permute.xlu0 %4840
        %4844 = vset.pattern.permute.xlu0 0
        %4845 = vperm.xlu0 %4844, %v4837
        %v4846 = vpop.permute.xlu0 %4845
        %v4850 = vunpack.c.l.b16 %v4786
        %v4851 = vunpack.c.l.b16 %v4787
        %v4852 = vpack.c.b16 %v4851, %v4850
        %v4854 = vsel %vm804, %v4852, 0
        %v4857 = vsel %vm804, %v4820, 0
        %v4860 = vsel %vm804, %v4821, 0
        %v4863 = vsel %vm804, %v4822, 0
        %v4866 = vsel %vm804, %v4823, 0
        %v4869 = vsel %vm804, %v4824, 0
        %v4872 = vsel %vm804, %v4825, 0
        %v4875 = vsel %vm804, %v4826, 0
        %v4878 = vsel %vm804, %v4827, 0
        %v4881 = vsel %vm804, %v4828, 0
        %v4884 = vsel %vm804, %v4829, 0
        %v4887 = vsel %vm804, %v4830, 0
        %v4890 = vsel %vm804, %v4831, 0
        %v4893 = vsel %vm804, %v4832, 0
        %v4896 = vsel %vm804, %v4833, 0
        %v4899 = vsel %vm804, %v4834, 0
        %v4902 = vsel %vm804, %v4835, 0
        %4904 = vmatpush.bf16.xpose.msra.mxu0 %v4878
        %4905 = vmatpush.bf16.xpose.msra.mxu0 %v4875
        %4906 = vmatpush.bf16.xpose.msra.mxu0 %v4872
        %4907 = vmatpush.bf16.xpose.msra.mxu0 %v4869
        %4908 = vmatpush.bf16.xpose.msra.mxu0 %v4866
        %4909 = vmatpush.bf16.xpose.msra.mxu0 %v4863
        %4910 = vmatpush.bf16.xpose.msra.mxu0 %v4860
        %4911 = vmatpush.bf16.xpose.msra.mxu0 %v4857
        %4912 = vmatmul.bf16.gmra.mxu0 %v4854
        %v4913 = vpop.f32.mrf.mxu0
        %v4914 = vadd.f32 %v4841, %v4913
        %v4915 = vpop.f32.mrf.mxu0
        %v4916 = vadd.f32 %v4846, %v4915
        %4917 = vdwg.mxu0
        %4918 = vmatpush.bf16.xpose.msra.mxu0 %v4902
        %4919 = vmatpush.bf16.xpose.msra.mxu0 %v4899
        %4920 = vmatpush.bf16.xpose.msra.mxu0 %v4896
        %4921 = vmatpush.bf16.xpose.msra.mxu0 %v4893
        %4922 = vmatpush.bf16.xpose.msra.mxu0 %v4890
        %4923 = vmatpush.bf16.xpose.msra.mxu0 %v4887
        %4924 = vmatpush.bf16.xpose.msra.mxu0 %v4884
        %4925 = vmatpush.bf16.xpose.msra.mxu0 %v4881
        %4926 = vmatmul.bf16.gmra.mxu0 %v4854
        %v4927 = vpop.f32.mrf.mxu0
        %v4928 = vadd.f32 %v4841, %v4927
        %v4929 = vpop.f32.mrf.mxu0
        %v4930 = vadd.f32 %v4846, %v4929
        %4931 = vdwg.mxu0
        %4932 = vst [vmem:[%s434] sm:$0xff] %v4914
        %4933 = vst [vmem:[%s434 + $0x8] sm:$0xff] %v4928
        %4934 = vst [vmem:[%s434 + $0x10] sm:$0xff] %v4916
        %4935 = vst [vmem:[%s434 + $0x18] sm:$0xff] %v4930
        %s4936 = sand.u32 %s280, 1
        %s4937 = scalar_lea.sflag [#allocation4], %s4936
        %s4938 = sand.u32 %s280, 1
        %s4939 = smul.addr %s4938, 32
        %s4940 = scalar_lea.vmem [#allocation3], %s4939
        // Predicated region
        $region61: #{tpu_custom_call.1} parent=59 // pred_check
          %p4941 = pneg %p290
        $region62: #{tpu_custom_call.1} parent=59 // pred_check_branch
          %4943 = sbr.rel (%p4941) target = $region64
        $region63: #{tpu_custom_call.1} parent=59 // pred_region
          %s4944 = smul.u32 2, %s29
          %4946 = vsyncadd %s4937, 0
          %s4947 = smul.addr %s28, 8
          %s4948 = sadd.s32 %s4944, %s4947
          %s4949 = smul.addr %s4948, 8
          %s4950 = scalar_lea.hbm %s10, %s4949
          %s4951 = sshll.u32 %s4940, 4
          %s4952 = int_to_ptr.vmem [resolvable:$true] %s4951
          %s4953 = sshll.u32 %s4950, 4
          %s4954 = int_to_ptr.hbm [resolvable:$true] %s4953
          %4959 = dma.vmem_to_hbm [thread:$0]  %s4952, 512, %s4954, %s4937, 256, 512, 16
        $region64: #{tpu_custom_call.1} parent=59 // pred_fallthru
          _
      $region60: #{tpu_custom_call.1} parent=5 // pred_fallthru
        _
      %p4960 = scmp.le.s32.totalorder 2, %s19
      // Predicated region
      $region65: #{tpu_custom_call.1} parent=5 // pred_check
        %p4961 = pneg %p4960
      $region66: #{tpu_custom_call.1} parent=5 // pred_check_branch
        %4963 = sbr.rel (%p4961) target = $region68
      $region67: #{tpu_custom_call.1} parent=5 // pred_region
        %s4964 = ssub.s32 %s19, 2
        // Predicated region
        $region69: #{tpu_custom_call.1} parent=67 // pred_check
          %p4965 = pneg %p296
        $region70: #{tpu_custom_call.1} parent=67 // pred_check_branch
          %4967 = sbr.rel (%p4965) target = $region72
        $region71: #{tpu_custom_call.1} parent=67 // pred_region
          %s4968 = sand.u32 %s281, 1
          %s4969 = scalar_lea.sflag [#allocation4], %s4968
          %s4970 = sand.u32 %s281, 1
          %s4971 = smul.addr %s4970, 32
          %s4972 = scalar_lea.vmem [#allocation3], %s4971
          %4974 = dma.done %s4969, 512
        $region72: #{tpu_custom_call.1} parent=67 // pred_fallthru
          _
      $region68: #{tpu_custom_call.1} parent=5 // pred_fallthru
        _
    $region6: #{tpu_custom_call.1} parent=1 // loop_footer
      %s23 = sadd.s32 1, %s19
    $region7: #{tpu_custom_call.1} parent=1 // loop_footer_branch
      %18 = sbr.rel target = $region3
    $region8: #{tpu_custom_call.1} parent=1 // loop_exit
      _
    %4975 = vsyncpa [#allocation4], 1
    %s4976 = scalar_lea.sflag [#allocation4], 1
    %4977 = vsyncpa %s4976, 1

</llo_original>
